<compile_context>
chip_gen: v6e
topology: v6e:2x2x1
jax: 0.10.0
libtpu: 0.0.40
codegen_flags: <defaults>
</compile_context>

<pallas_src>
import jax
import jax.numpy as jnp
from jax import lax
from jax.experimental import pallas as pl
from jax.experimental.pallas import tpu as pltpu

_EPS = 1e-5


def _silu(v):
    # x * sigmoid(x); sigmoid lowers to the EUP (logistic) instead of a VALU divide chain.
    return v * jax.nn.sigmoid(v)


# ------------------------------ fused DownBlock kernel ------------------------------

def _make_downblock_kernel(N, H, W, cin, cout, identity1):
    NH = N * H
    WCout = W * cout
    n_p1 = 10 + (0 if identity1 else 2)

    def bn_silu(x2, gamma_wc, beta_wc, C):
        # Training-mode BatchNorm2d (batch stats, biased variance) + SiLU on (NH, W*C) data.
        stats = jnp.concatenate(
            [jnp.mean(x2, axis=0, keepdims=True),
             jnp.mean(x2 * x2, axis=0, keepdims=True)], axis=0)          # (2, W*C)
        red = stats[:, 0:C]
        for wi in range(1, W):                                           # reduce the W groups
            red = red + stats[:, wi * C:(wi + 1) * C]
        red = red * (1.0 / W)                                            # (2, C): [E[x], E[x^2]]
        red_wc = jnp.concatenate([red] * W, axis=1)                      # tile back to (2, W*C)
        mu = red_wc[0:1, :]
        var = red_wc[1:2, :] - mu * mu                                   # biased batch variance
        scale = gamma_wc * lax.rsqrt(var + _EPS)
        bias = beta_wc - mu * scale
        return _silu(x2 * scale + bias)

    def conv3x3(h2, band_ref):
        # Block-banded 3x3 'SAME' conv: one (NH, W*Cin) x (W*Cin, W*Cout) MXU matmul per dy tap.
        h_in_img = lax.broadcasted_iota(jnp.int32, (NH, 1), 0) % H
        up = pltpu.roll(h2, shift=1, axis=0) * (h_in_img != 0).astype(jnp.float32)
        dn = pltpu.roll(h2, shift=NH - 1, axis=0) * (h_in_img != H - 1).astype(jnp.float32)
        acc = jnp.dot(up.astype(jnp.bfloat16), band_ref[0],
                      preferred_element_type=jnp.float32)
        acc = acc + jnp.dot(h2.astype(jnp.bfloat16), band_ref[1],
                            preferred_element_type=jnp.float32)
        acc = acc + jnp.dot(dn.astype(jnp.bfloat16), band_ref[2],
                            preferred_element_type=jnp.float32)
        return acc                                                       # (NH, W*Cout) f32

    def resblock(x2, t_bf16, prm, C_in, identity):
        g1, be1, band1, b1, wt, bt, g2, be2, band2, b2 = prm[:10]
        h2 = bn_silu(x2, g1[...], be1[...], C_in)
        acc = conv3x3(h2, band1) + b1[...]
        # time-embedding MLP output, broadcast over (h, w) in the lane-dense layout
        tout = jnp.dot(t_bf16, wt[...], preferred_element_type=jnp.float32) + bt[...]  # (N, cout)
        tadd = jnp.concatenate([tout] * W, axis=1)                       # (N, W*cout)
        acc = acc + jnp.broadcast_to(tadd[:, None, :], (N, H, WCout)).reshape(NH, WCout)
        g2d = bn_silu(acc, g2[...], be2[...], cout)
        acc2 = conv3x3(g2d, band2) + b2[...]
        if identity:
            return acc2 + x2                                             # nn.Identity skip
        wres, bres = prm[10], prm[11]
        res = jnp.dot(x2.astype(jnp.bfloat16), wres[...],
                      preferred_element_type=jnp.float32) + bres[...]    # block-diag 1x1 conv
        return acc2 + res

    def kernel(*refs):
        x_ref, temb_ref = refs[0], refs[1]
        p1 = refs[2:2 + n_p1]
        p2 = refs[2 + n_p1:2 + n_p1 + 10]
        skip_ref = refs[2 + n_p1 + 10]
        pool_ref = refs[2 + n_p1 + 11]

        x2 = x_ref[...].astype(jnp.float32)                              # (NH, W*cin) lane-dense
        t_bf16 = _silu(temb_ref[...].astype(jnp.float32)).astype(jnp.bfloat16)

        h = resblock(x2, t_bf16, p1, cin, identity1)                     # block1 (VMEM-resident)
        skip = resblock(h, t_bf16, p2, cout, True)                       # block2 (identity skip)
        skip_ref[...] = skip.astype(skip_ref.dtype)                      # 128-lane dense store

        # Fused MaxPool2d(2), lane-dense: roll+max over W pairs, adjacent-row max over H pairs,
        # then compact the even W-groups with static slices.
        rolled = pltpu.roll(skip, shift=WCout - cout, axis=1)            # lane j <- lane j + cout
        mw = jnp.maximum(skip, rolled)                                   # even W-groups hold max
        mh = jnp.max(mw.reshape(N * (H // 2), 2, WCout), axis=1)         # max over H pairs
        pooled = jnp.concatenate(
            [mh[:, (2 * m) * cout:(2 * m) * cout + cout] for m in range(W // 2)], axis=1)
        pool_ref[...] = pooled.astype(pool_ref.dtype)

    return kernel


# ------------------------------ host-side weight packing ------------------------------

def _pack_band(w_hwio, W):
    """HWIO (3,3,Cin,Cout) conv weight -> (3, W*Cin, W*Cout) block-banded bf16 (one band per
    dy tap); the dx taps and the W-direction 'SAME' zero padding live in the band structure."""
    bands = []
    for dy in range(3):
        b = 0.0
        for dx in range(3):
            b = b + jnp.kron(jnp.eye(W, k=1 - dx, dtype=w_hwio.dtype), w_hwio[dy, dx])
        bands.append(b)
    return jnp.stack(bands).astype(jnp.bfloat16)


def _pack_resblock_args(p, W):
    args = [
        jnp.tile(p["g1"], (1, W)), jnp.tile(p["be1"], (1, W)),           # pre-tiled BN1 affine
        _pack_band(p["w1"], W), jnp.tile(p["b1"], (1, W)),               # banded conv1 + bias
        p["wt"].astype(jnp.bfloat16), p["bt"],                           # time MLP
        jnp.tile(p["g2"], (1, W)), jnp.tile(p["be2"], (1, W)),           # pre-tiled BN2 affine
        _pack_band(p["w2"], W), jnp.tile(p["b2"], (1, W)),               # banded conv2 + bias
    ]
    if "wres" in p:                                                      # 1x1 conv -> block-diag
        args.append(jnp.kron(jnp.eye(W, dtype=p["wres"].dtype),
                             p["wres"]).astype(jnp.bfloat16))
        args.append(jnp.tile(p["bres"], (1, W)))
    return args


# ------------------------------ DownBlock wrapper ------------------------------

def downblock_forward(x_nchw, t_emb, params):
    """Matches DownBlock.forward: returns (pool(x), x), both NCHW."""
    N, cin, H, W = x_nchw.shape
    cout = params["block1"]["w1"].shape[-1]
    identity1 = "wres" not in params["block1"]

    # Single boundary transpose NCHW -> NHWC, then lane-dense (N*H, W*C) for the whole kernel.
    x = jnp.transpose(x_nchw, (0, 2, 3, 1)).reshape(N * H, W * cin)
    args = [x, t_emb] + _pack_resblock_args(params["block1"], W) \
                      + _pack_resblock_args(params["block2"], W)

    vmem_spec = pl.BlockSpec(memory_space=pltpu.MemorySpace.VMEM)
    out_shape = (jax.ShapeDtypeStruct((N * H, W * cout), jnp.float32),
                 jax.ShapeDtypeStruct((N * (H // 2), (W // 2) * cout), jnp.float32))

    # Advisory cost estimate + explicit VMEM budget (capped below v7x's 64 MiB physical VMEM).
    nhw = N * H * W
    flops = 2 * nhw * (9 * cin * cout + 27 * cout * cout
                       + (0 if identity1 else cin * cout))
    transcendentals = nhw * (cin + 3 * cout)
    param_bytes = sum(int(a.size) * a.dtype.itemsize for a in args[1:])
    io_bytes = 4 * (nhw * cin + nhw * cout + N * (H // 2) * (W // 2) * cout) + param_bytes
    act_bytes = 4 * nhw * max(cin, cout)
    vmem_limit = int(min(48 * 2 ** 20, max(16 * 2 ** 20, 12 * act_bytes + 4 * param_bytes)))

    skip_dense, pooled_dense = pl.pallas_call(
        _make_downblock_kernel(N, H, W, cin, cout, identity1),
        out_shape=out_shape,
        in_specs=[vmem_spec] * len(args),
        out_specs=(vmem_spec, vmem_spec),
        compiler_params=pltpu.CompilerParams(vmem_limit_bytes=vmem_limit),
        cost_estimate=pl.CostEstimate(flops=flops, transcendentals=transcendentals,
                                      bytes_accessed=io_bytes),
    )(*args)

    skip = jnp.transpose(skip_dense.reshape(N, H, W, cout), (0, 3, 1, 2))
    pooled = jnp.transpose(pooled_dense.reshape(N, H // 2, W // 2, cout), (0, 3, 1, 2))
    return pooled, skip


# ------------------------------ deterministic init ------------------------------

def _init_resblock(key, cin, cout, tdim):
    ks = jax.random.split(key, 12)
    p = {
        "g1":  1.0 + 0.1 * jax.random.normal(ks[0], (1, cin), jnp.float32),
        "be1": 0.1 * jax.random.normal(ks[1], (1, cin), jnp.float32),
        "w1":  0.2 * jax.random.normal(ks[2], (3, 3, cin, cout), jnp.float32),   # HWIO
        "b1":  0.1 * jax.random.normal(ks[3], (1, cout), jnp.float32),
        "wt":  0.2 * jax.random.normal(ks[4], (tdim, cout), jnp.float32),
        "bt":  0.1 * jax.random.normal(ks[5], (1, cout), jnp.float32),
        "g2":  1.0 + 0.1 * jax.random.normal(ks[6], (1, cout), jnp.float32),
        "be2": 0.1 * jax.random.normal(ks[7], (1, cout), jnp.float32),
        "w2":  0.2 * jax.random.normal(ks[8], (3, 3, cout, cout), jnp.float32),  # HWIO
        "b2":  0.1 * jax.random.normal(ks[9], (1, cout), jnp.float32),
    }
    if cin != cout:
        p["wres"] = 0.2 * jax.random.normal(ks[10], (cin, cout), jnp.float32)    # 1x1 conv
        p["bres"] = 0.1 * jax.random.normal(ks[11], (1, cout), jnp.float32)
    # cin == cout -> nn.Identity: no residual params, kernel does a plain add.
    return p


# ------------------------------ pure-JAX reference ------------------------------
# Same numerics policy as the kernel (bf16 matmul/conv operands, f32 accumulation) so the
# comparison isolates structural correctness.

def _ref_resblock(x, t_emb, p):
    def bn_silu(v, g, b):
        mu = v.mean(axis=(0, 1, 2), keepdims=True)
        var = ((v - mu) ** 2).mean(axis=(0, 1, 2), keepdims=True)
        y = (v - mu) * lax.rsqrt(var + _EPS) * g.reshape(1, 1, 1, -1) + b.reshape(1, 1, 1, -1)
        return _silu(y)

    def conv3x3(v, w, b):
        y = lax.conv_general_dilated(
            v.astype(jnp.bfloat16), w.astype(jnp.bfloat16), (1, 1), "SAME",
            dimension_numbers=("NHWC", "HWIO", "NHWC"),
            preferred_element_type=jnp.float32)
        return y + b.reshape(1, 1, 1, -1)

    h = conv3x3(bn_silu(x, p["g1"], p["be1"]), p["w1"], p["b1"])
    t = _silu(t_emb).astype(jnp.bfloat16)
    tout = jnp.dot(t, p["wt"].astype(jnp.bfloat16),
                   preferred_element_type=jnp.float32) + p["bt"]
    h = h + tout[:, None, None, :]
    h = conv3x3(bn_silu(h, p["g2"], p["be2"]), p["w2"], p["b2"])
    if "wres" in p:
        res = jnp.einsum("nhwc,co->nhwo", x.astype(jnp.bfloat16),
                         p["wres"].astype(jnp.bfloat16),
                         preferred_element_type=jnp.float32) + p["bres"].reshape(1, 1, 1, -1)
    else:
        res = x
    return h + res


def _ref_downblock(x_nchw, t_emb, params):
    x = jnp.transpose(x_nchw, (0, 2, 3, 1))
    h = _ref_resblock(x, t_emb, params["block1"])
    skip = _ref_resblock(h, t_emb, params["block2"])
    N, H, W, C = skip.shape
    pooled = skip.reshape(N, H // 2, 2, W // 2, 2, C).max(axis=(2, 4))
    return jnp.transpose(pooled, (0, 3, 1, 2)), jnp.transpose(skip, (0, 3, 1, 2))


# ------------------------------------ main ------------------------------------

if __name__ == "__main__":
    key = jax.random.PRNGKey(0)
    N, CIN, COUT, TDIM, H, W = 2, 4, 8, 32, 16, 16
    k_x, k_t, k_b1, k_b2 = jax.random.split(key, 4)

    x = jax.random.normal(k_x, (N, CIN, H, W), jnp.float32)    # NCHW, like the PyTorch module
    t_emb = jax.random.normal(k_t, (N, TDIM), jnp.float32)
    params = {
        "block1": _init_resblock(k_b1, CIN, COUT, TDIM),
        "block2": _init_resblock(k_b2, COUT, COUT, TDIM),
    }

    pooled, skip = jax.jit(downblock_forward)(x, t_emb, params)
    jax.block_until_ready((pooled, skip))

    assert pooled.shape == (N, COUT, H // 2, W // 2)
    assert skip.shape == (N, COUT, H, W)

    ref_pooled, ref_skip = _ref_downblock(x, t_emb, params)
    # Both sides use bf16 matmul/conv operands with f32 accumulation; remaining differences are
    # accumulation order and ~1-ulp bf16 rounding flips, well inside 2e-2.
    assert jnp.allclose(skip, ref_skip, atol=2e-2, rtol=2e-2), \
        float(jnp.max(jnp.abs(skip - ref_skip)))
    assert jnp.allclose(pooled, ref_pooled, atol=2e-2, rtol=2e-2), \
        float(jnp.max(jnp.abs(pooled - ref_pooled)))

    print("KERNEL_OK")
</pallas_src>

<mosaic_0001>
module attributes {stable_mosaic.version = 11 : i64} {
  func.func @kernel(%arg0: memref<32x64xf32, #tpu.memory_space<vmem>>, %arg1: memref<2x32xf32, #tpu.memory_space<vmem>>, %arg2: memref<1x64xf32, #tpu.memory_space<vmem>>, %arg3: memref<1x64xf32, #tpu.memory_space<vmem>>, %arg4: memref<3x64x128xbf16, #tpu.memory_space<vmem>>, %arg5: memref<1x128xf32, #tpu.memory_space<vmem>>, %arg6: memref<32x8xbf16, #tpu.memory_space<vmem>>, %arg7: memref<1x8xf32, #tpu.memory_space<vmem>>, %arg8: memref<1x128xf32, #tpu.memory_space<vmem>>, %arg9: memref<1x128xf32, #tpu.memory_space<vmem>>, %arg10: memref<3x128x128xbf16, #tpu.memory_space<vmem>>, %arg11: memref<1x128xf32, #tpu.memory_space<vmem>>, %arg12: memref<64x128xbf16, #tpu.memory_space<vmem>>, %arg13: memref<1x128xf32, #tpu.memory_space<vmem>>, %arg14: memref<1x128xf32, #tpu.memory_space<vmem>>, %arg15: memref<1x128xf32, #tpu.memory_space<vmem>>, %arg16: memref<3x128x128xbf16, #tpu.memory_space<vmem>>, %arg17: memref<1x128xf32, #tpu.memory_space<vmem>>, %arg18: memref<32x8xbf16, #tpu.memory_space<vmem>>, %arg19: memref<1x8xf32, #tpu.memory_space<vmem>>, %arg20: memref<1x128xf32, #tpu.memory_space<vmem>>, %arg21: memref<1x128xf32, #tpu.memory_space<vmem>>, %arg22: memref<3x128x128xbf16, #tpu.memory_space<vmem>>, %arg23: memref<1x128xf32, #tpu.memory_space<vmem>>, %arg24: memref<32x128xf32, #tpu.memory_space<vmem>>, %arg25: memref<16x64xf32, #tpu.memory_space<vmem>>) attributes {dimension_semantics = [], scalar_prefetch = 0 : i64, scratch_operands = 0 : i64, tpu.core_type = #tpu.core_type<tc>} {
    %c0 = arith.constant 0 : index
    %c0_0 = arith.constant 0 : index
    %0 = vector.load %arg0[%c0, %c0_0] : memref<32x64xf32, #tpu.memory_space<vmem>>, vector<32x64xf32>
    %c0_1 = arith.constant 0 : index
    %c0_2 = arith.constant 0 : index
    %1 = vector.load %arg1[%c0_1, %c0_2] : memref<2x32xf32, #tpu.memory_space<vmem>>, vector<2x32xf32>
    %2 = arith.negf %1 : vector<2x32xf32>
    %3 = math.exp %2 : vector<2x32xf32>
    %cst = arith.constant 1.000000e+00 : f32
    %4 = vector.broadcast %cst : f32 to vector<2x32xf32>
    %5 = arith.addf %4, %3 : vector<2x32xf32>
    %6 = arith.divf %4, %5 : vector<2x32xf32>
    %7 = arith.mulf %1, %6 : vector<2x32xf32>
    %8 = arith.truncf %7 : vector<2x32xf32> to vector<2x32xbf16>
    %c0_3 = arith.constant 0 : index
    %c0_4 = arith.constant 0 : index
    %9 = vector.load %arg2[%c0_3, %c0_4] : memref<1x64xf32, #tpu.memory_space<vmem>>, vector<1x64xf32>
    %c0_5 = arith.constant 0 : index
    %c0_6 = arith.constant 0 : index
    %10 = vector.load %arg3[%c0_5, %c0_6] : memref<1x64xf32, #tpu.memory_space<vmem>>, vector<1x64xf32>
    %cst_7 = arith.constant dense<0.000000e+00> : vector<64xf32>
    %11 = vector.multi_reduction <add>, %0, %cst_7 [0] : vector<32x64xf32> to vector<64xf32>
    %12 = vector.shape_cast %11 : vector<64xf32> to vector<1x64xf32>
    %cst_8 = arith.constant 3.200000e+01 : f32
    %13 = vector.broadcast %cst_8 : f32 to vector<1x64xf32>
    %14 = arith.divf %12, %13 : vector<1x64xf32>
    %15 = arith.mulf %0, %0 : vector<32x64xf32>
    %cst_9 = arith.constant dense<0.000000e+00> : vector<64xf32>
    %16 = vector.multi_reduction <add>, %15, %cst_9 [0] : vector<32x64xf32> to vector<64xf32>
    %17 = vector.shape_cast %16 : vector<64xf32> to vector<1x64xf32>
    %cst_10 = arith.constant 3.200000e+01 : f32
    %18 = vector.broadcast %cst_10 : f32 to vector<1x64xf32>
    %19 = arith.divf %17, %18 : vector<1x64xf32>
    %20 = tpu.concatenate %14, %19 in 0 : vector<1x64xf32>, vector<1x64xf32> -> vector<2x64xf32>
    %21 = vector.extract_strided_slice %20 {offsets = [0, 0], sizes = [2, 4], strides = [1, 1]} : vector<2x64xf32> to vector<2x4xf32>
    %22 = vector.extract_strided_slice %20 {offsets = [0, 4], sizes = [2, 4], strides = [1, 1]} : vector<2x64xf32> to vector<2x4xf32>
    %23 = arith.addf %21, %22 : vector<2x4xf32>
    %24 = vector.extract_strided_slice %20 {offsets = [0, 8], sizes = [2, 4], strides = [1, 1]} : vector<2x64xf32> to vector<2x4xf32>
    %25 = arith.addf %23, %24 : vector<2x4xf32>
    %26 = vector.extract_strided_slice %20 {offsets = [0, 12], sizes = [2, 4], strides = [1, 1]} : vector<2x64xf32> to vector<2x4xf32>
    %27 = arith.addf %25, %26 : vector<2x4xf32>
    %28 = vector.extract_strided_slice %20 {offsets = [0, 16], sizes = [2, 4], strides = [1, 1]} : vector<2x64xf32> to vector<2x4xf32>
    %29 = arith.addf %27, %28 : vector<2x4xf32>
    %30 = vector.extract_strided_slice %20 {offsets = [0, 20], sizes = [2, 4], strides = [1, 1]} : vector<2x64xf32> to vector<2x4xf32>
    %31 = arith.addf %29, %30 : vector<2x4xf32>
    %32 = vector.extract_strided_slice %20 {offsets = [0, 24], sizes = [2, 4], strides = [1, 1]} : vector<2x64xf32> to vector<2x4xf32>
    %33 = arith.addf %31, %32 : vector<2x4xf32>
    %34 = vector.extract_strided_slice %20 {offsets = [0, 28], sizes = [2, 4], strides = [1, 1]} : vector<2x64xf32> to vector<2x4xf32>
    %35 = arith.addf %33, %34 : vector<2x4xf32>
    %36 = vector.extract_strided_slice %20 {offsets = [0, 32], sizes = [2, 4], strides = [1, 1]} : vector<2x64xf32> to vector<2x4xf32>
    %37 = arith.addf %35, %36 : vector<2x4xf32>
    %38 = vector.extract_strided_slice %20 {offsets = [0, 36], sizes = [2, 4], strides = [1, 1]} : vector<2x64xf32> to vector<2x4xf32>
    %39 = arith.addf %37, %38 : vector<2x4xf32>
    %40 = vector.extract_strided_slice %20 {offsets = [0, 40], sizes = [2, 4], strides = [1, 1]} : vector<2x64xf32> to vector<2x4xf32>
    %41 = arith.addf %39, %40 : vector<2x4xf32>
    %42 = vector.extract_strided_slice %20 {offsets = [0, 44], sizes = [2, 4], strides = [1, 1]} : vector<2x64xf32> to vector<2x4xf32>
    %43 = arith.addf %41, %42 : vector<2x4xf32>
    %44 = vector.extract_strided_slice %20 {offsets = [0, 48], sizes = [2, 4], strides = [1, 1]} : vector<2x64xf32> to vector<2x4xf32>
    %45 = arith.addf %43, %44 : vector<2x4xf32>
    %46 = vector.extract_strided_slice %20 {offsets = [0, 52], sizes = [2, 4], strides = [1, 1]} : vector<2x64xf32> to vector<2x4xf32>
    %47 = arith.addf %45, %46 : vector<2x4xf32>
    %48 = vector.extract_strided_slice %20 {offsets = [0, 56], sizes = [2, 4], strides = [1, 1]} : vector<2x64xf32> to vector<2x4xf32>
    %49 = arith.addf %47, %48 : vector<2x4xf32>
    %50 = vector.extract_strided_slice %20 {offsets = [0, 60], sizes = [2, 4], strides = [1, 1]} : vector<2x64xf32> to vector<2x4xf32>
    %51 = arith.addf %49, %50 : vector<2x4xf32>
    %cst_11 = arith.constant 6.250000e-02 : f32
    %52 = vector.broadcast %cst_11 : f32 to vector<2x4xf32>
    %53 = arith.mulf %51, %52 : vector<2x4xf32>
    %54 = tpu.concatenate %53, %53, %53, %53, %53, %53, %53, %53, %53, %53, %53, %53, %53, %53, %53, %53 in 1 : vector<2x4xf32>, vector<2x4xf32>, vector<2x4xf32>, vector<2x4xf32>, vector<2x4xf32>, vector<2x4xf32>, vector<2x4xf32>, vector<2x4xf32>, vector<2x4xf32>, vector<2x4xf32>, vector<2x4xf32>, vector<2x4xf32>, vector<2x4xf32>, vector<2x4xf32>, vector<2x4xf32>, vector<2x4xf32> -> vector<2x64xf32>
    %55 = vector.extract_strided_slice %54 {offsets = [0, 0], sizes = [1, 64], strides = [1, 1]} : vector<2x64xf32> to vector<1x64xf32>
    %56 = vector.extract_strided_slice %54 {offsets = [1, 0], sizes = [1, 64], strides = [1, 1]} : vector<2x64xf32> to vector<1x64xf32>
    %57 = arith.mulf %55, %55 : vector<1x64xf32>
    %58 = arith.subf %56, %57 : vector<1x64xf32>
    %cst_12 = arith.constant 9.99999974E-6 : f32
    %59 = vector.broadcast %cst_12 : f32 to vector<1x64xf32>
    %60 = arith.addf %58, %59 : vector<1x64xf32>
    %61 = math.rsqrt %60 : vector<1x64xf32>
    %62 = arith.mulf %9, %61 : vector<1x64xf32>
    %63 = arith.mulf %55, %62 : vector<1x64xf32>
    %64 = arith.subf %10, %63 : vector<1x64xf32>
    %65 = vector.broadcast %62 : vector<1x64xf32> to vector<32x64xf32>
    %66 = arith.mulf %0, %65 : vector<32x64xf32>
    %67 = vector.broadcast %64 : vector<1x64xf32> to vector<32x64xf32>
    %68 = arith.addf %66, %67 : vector<32x64xf32>
    %69 = arith.negf %68 : vector<32x64xf32>
    %70 = math.exp %69 : vector<32x64xf32>
    %cst_13 = arith.constant 1.000000e+00 : f32
    %71 = vector.broadcast %cst_13 : f32 to vector<32x64xf32>
    %72 = arith.addf %71, %70 : vector<32x64xf32>
    %73 = arith.divf %71, %72 : vector<32x64xf32>
    %74 = arith.mulf %68, %73 : vector<32x64xf32>
    %75 = tpu.iota {dimensions = array<i32: 0>} : vector<32x1xi32>
    %c16_i32 = arith.constant 16 : i32
    %c0_i32 = arith.constant 0 : i32
    %76 = arith.cmpi eq, %c16_i32, %c0_i32 : i32
    %c1_i32 = arith.constant 1 : i32
    %77 = arith.select %76, %c1_i32, %c16_i32 : i32
    %78 = vector.broadcast %77 : i32 to vector<32x1xi32>
    %79 = arith.remsi %75, %78 : vector<32x1xi32>
    %c0_i32_14 = arith.constant 0 : i32
    %80 = vector.broadcast %c0_i32_14 : i32 to vector<32x1xi32>
    %81 = arith.cmpi ne, %79, %80 : vector<32x1xi32>
    %c0_i32_15 = arith.constant 0 : i32
    %82 = vector.broadcast %c0_i32_15 : i32 to vector<32x1xi32>
    %83 = arith.cmpi slt, %79, %82 : vector<32x1xi32>
    %c0_i32_16 = arith.constant 0 : i32
    %84 = arith.cmpi slt, %77, %c0_i32_16 : i32
    %85 = vector.broadcast %84 : i1 to vector<32x1xi1>
    %86 = vector.broadcast %85 : vector<32x1xi1> to vector<32x1xi1>
    %87 = arith.xori %83, %86 : vector<32x1xi1>
    %88 = arith.andi %87, %81 : vector<32x1xi1>
    %89 = vector.broadcast %77 : i32 to vector<32x1xi32>
    %90 = arith.addi %79, %89 : vector<32x1xi32>
    %91 = arith.select %88, %90, %79 : vector<32x1xi1>, vector<32x1xi32>
    %c1_i32_17 = arith.constant 1 : i32
    %92 = tpu.dynamic_rotate %74 by %c1_i32_17 dim 0 : vector<32x64xf32>, i32 -> vector<32x64xf32>
    %c0_i32_18 = arith.constant 0 : i32
    %93 = vector.broadcast %c0_i32_18 : i32 to vector<32x1xi32>
    %94 = arith.cmpi ne, %91, %93 : vector<32x1xi32>
    %95 = arith.extui %94 : vector<32x1xi1> to vector<32x1xi32>
    %96 = arith.sitofp %95 : vector<32x1xi32> to vector<32x1xf32>
    %97 = vector.broadcast %96 : vector<32x1xf32> to vector<32x64xf32>
    %98 = arith.mulf %92, %97 : vector<32x64xf32>
    %c31_i32 = arith.constant 31 : i32
    %99 = tpu.dynamic_rotate %74 by %c31_i32 dim 0 : vector<32x64xf32>, i32 -> vector<32x64xf32>
    %c15_i32 = arith.constant 15 : i32
    %100 = vector.broadcast %c15_i32 : i32 to vector<32x1xi32>
    %101 = arith.cmpi ne, %91, %100 : vector<32x1xi32>
    %102 = arith.extui %101 : vector<32x1xi1> to vector<32x1xi32>
    %103 = arith.sitofp %102 : vector<32x1xi32> to vector<32x1xf32>
    %104 = vector.broadcast %103 : vector<32x1xf32> to vector<32x64xf32>
    %105 = arith.mulf %99, %104 : vector<32x64xf32>
    %106 = arith.truncf %98 : vector<32x64xf32> to vector<32x64xbf16>
    %c0_19 = arith.constant 0 : index
    %c0_20 = arith.constant 0 : index
    %c0_21 = arith.constant 0 : index
    %107 = vector.load %arg4[%c0_19, %c0_20, %c0_21] : memref<3x64x128xbf16, #tpu.memory_space<vmem>>, vector<1x64x128xbf16>
    %108 = vector.shape_cast %107 : vector<1x64x128xbf16> to vector<64x128xbf16>
    %cst_22 = arith.constant dense<0.000000e+00> : vector<32x128xf32>
    %109 = tpu.matmul %106, %108, %cst_22 {dimension_numbers = #tpu.dot_dimension_numbers<[1], [0], [0], [1], [0, 0, 1, 1], [], []>} : vector<32x64xbf16>, vector<64x128xbf16>, vector<32x128xf32> -> vector<32x128xf32>
    %110 = arith.truncf %74 : vector<32x64xf32> to vector<32x64xbf16>
    %c1 = arith.constant 1 : index
    %c0_23 = arith.constant 0 : index
    %c0_24 = arith.constant 0 : index
    %111 = vector.load %arg4[%c1, %c0_23, %c0_24] : memref<3x64x128xbf16, #tpu.memory_space<vmem>>, vector<1x64x128xbf16>
    %112 = vector.shape_cast %111 : vector<1x64x128xbf16> to vector<64x128xbf16>
    %cst_25 = arith.constant dense<0.000000e+00> : vector<32x128xf32>
    %113 = tpu.matmul %110, %112, %cst_25 {dimension_numbers = #tpu.dot_dimension_numbers<[1], [0], [0], [1], [0, 0, 1, 1], [], []>} : vector<32x64xbf16>, vector<64x128xbf16>, vector<32x128xf32> -> vector<32x128xf32>
    %114 = arith.addf %109, %113 : vector<32x128xf32>
    %115 = arith.truncf %105 : vector<32x64xf32> to vector<32x64xbf16>
    %c2 = arith.constant 2 : index
    %c0_26 = arith.constant 0 : index
    %c0_27 = arith.constant 0 : index
    %116 = vector.load %arg4[%c2, %c0_26, %c0_27] : memref<3x64x128xbf16, #tpu.memory_space<vmem>>, vector<1x64x128xbf16>
    %117 = vector.shape_cast %116 : vector<1x64x128xbf16> to vector<64x128xbf16>
    %cst_28 = arith.constant dense<0.000000e+00> : vector<32x128xf32>
    %118 = tpu.matmul %115, %117, %cst_28 {dimension_numbers = #tpu.dot_dimension_numbers<[1], [0], [0], [1], [0, 0, 1, 1], [], []>} : vector<32x64xbf16>, vector<64x128xbf16>, vector<32x128xf32> -> vector<32x128xf32>
    %119 = arith.addf %114, %118 : vector<32x128xf32>
    %c0_29 = arith.constant 0 : index
    %c0_30 = arith.constant 0 : index
    %120 = vector.load %arg5[%c0_29, %c0_30] : memref<1x128xf32, #tpu.memory_space<vmem>>, vector<1x128xf32>
    %121 = vector.broadcast %120 : vector<1x128xf32> to vector<32x128xf32>
    %122 = arith.addf %119, %121 : vector<32x128xf32>
    %c0_31 = arith.constant 0 : index
    %c0_32 = arith.constant 0 : index
    %123 = vector.load %arg6[%c0_31, %c0_32] : memref<32x8xbf16, #tpu.memory_space<vmem>>, vector<32x8xbf16>
    %cst_33 = arith.constant dense<0.000000e+00> : vector<2x8xf32>
    %124 = tpu.matmul %8, %123, %cst_33 {dimension_numbers = #tpu.dot_dimension_numbers<[1], [0], [0], [1], [0, 0, 1, 1], [], []>} : vector<2x32xbf16>, vector<32x8xbf16>, vector<2x8xf32> -> vector<2x8xf32>
    %c0_34 = arith.constant 0 : index
    %c0_35 = arith.constant 0 : index
    %125 = vector.load %arg7[%c0_34, %c0_35] : memref<1x8xf32, #tpu.memory_space<vmem>>, vector<1x8xf32>
    %126 = vector.broadcast %125 : vector<1x8xf32> to vector<2x8xf32>
    %127 = arith.addf %124, %126 : vector<2x8xf32>
    %128 = tpu.concatenate %127, %127, %127, %127, %127, %127, %127, %127, %127, %127, %127, %127, %127, %127, %127, %127 in 1 : vector<2x8xf32>, vector<2x8xf32>, vector<2x8xf32>, vector<2x8xf32>, vector<2x8xf32>, vector<2x8xf32>, vector<2x8xf32>, vector<2x8xf32>, vector<2x8xf32>, vector<2x8xf32>, vector<2x8xf32>, vector<2x8xf32>, vector<2x8xf32>, vector<2x8xf32>, vector<2x8xf32>, vector<2x8xf32> -> vector<2x128xf32>
    %129 = vector.shape_cast %128 : vector<2x128xf32> to vector<2x1x128xf32>
    %130 = vector.shape_cast %129 : vector<2x1x128xf32> to vector<2x1x128xf32>
    %131 = vector.broadcast %130 : vector<2x1x128xf32> to vector<2x16x128xf32>
    %132 = vector.shape_cast %131 : vector<2x16x128xf32> to vector<32x128xf32>
    %133 = arith.addf %122, %132 : vector<32x128xf32>
    %c0_36 = arith.constant 0 : index
    %c0_37 = arith.constant 0 : index
    %134 = vector.load %arg8[%c0_36, %c0_37] : memref<1x128xf32, #tpu.memory_space<vmem>>, vector<1x128xf32>
    %c0_38 = arith.constant 0 : index
    %c0_39 = arith.constant 0 : index
    %135 = vector.load %arg9[%c0_38, %c0_39] : memref<1x128xf32, #tpu.memory_space<vmem>>, vector<1x128xf32>
    %cst_40 = arith.constant dense<0.000000e+00> : vector<128xf32>
    %136 = vector.multi_reduction <add>, %133, %cst_40 [0] : vector<32x128xf32> to vector<128xf32>
    %137 = vector.shape_cast %136 : vector<128xf32> to vector<1x128xf32>
    %cst_41 = arith.constant 3.200000e+01 : f32
    %138 = vector.broadcast %cst_41 : f32 to vector<1x128xf32>
    %139 = arith.divf %137, %138 : vector<1x128xf32>
    %140 = arith.mulf %133, %133 : vector<32x128xf32>
    %cst_42 = arith.constant dense<0.000000e+00> : vector<128xf32>
    %141 = vector.multi_reduction <add>, %140, %cst_42 [0] : vector<32x128xf32> to vector<128xf32>
    %142 = vector.shape_cast %141 : vector<128xf32> to vector<1x128xf32>
    %cst_43 = arith.constant 3.200000e+01 : f32
    %143 = vector.broadcast %cst_43 : f32 to vector<1x128xf32>
    %144 = arith.divf %142, %143 : vector<1x128xf32>
    %145 = tpu.concatenate %139, %144 in 0 : vector<1x128xf32>, vector<1x128xf32> -> vector<2x128xf32>
    %146 = vector.extract_strided_slice %145 {offsets = [0, 0], sizes = [2, 8], strides = [1, 1]} : vector<2x128xf32> to vector<2x8xf32>
    %147 = vector.extract_strided_slice %145 {offsets = [0, 8], sizes = [2, 8], strides = [1, 1]} : vector<2x128xf32> to vector<2x8xf32>
    %148 = arith.addf %146, %147 : vector<2x8xf32>
    %149 = vector.extract_strided_slice %145 {offsets = [0, 16], sizes = [2, 8], strides = [1, 1]} : vector<2x128xf32> to vector<2x8xf32>
    %150 = arith.addf %148, %149 : vector<2x8xf32>
    %151 = vector.extract_strided_slice %145 {offsets = [0, 24], sizes = [2, 8], strides = [1, 1]} : vector<2x128xf32> to vector<2x8xf32>
    %152 = arith.addf %150, %151 : vector<2x8xf32>
    %153 = vector.extract_strided_slice %145 {offsets = [0, 32], sizes = [2, 8], strides = [1, 1]} : vector<2x128xf32> to vector<2x8xf32>
    %154 = arith.addf %152, %153 : vector<2x8xf32>
    %155 = vector.extract_strided_slice %145 {offsets = [0, 40], sizes = [2, 8], strides = [1, 1]} : vector<2x128xf32> to vector<2x8xf32>
    %156 = arith.addf %154, %155 : vector<2x8xf32>
    %157 = vector.extract_strided_slice %145 {offsets = [0, 48], sizes = [2, 8], strides = [1, 1]} : vector<2x128xf32> to vector<2x8xf32>
    %158 = arith.addf %156, %157 : vector<2x8xf32>
    %159 = vector.extract_strided_slice %145 {offsets = [0, 56], sizes = [2, 8], strides = [1, 1]} : vector<2x128xf32> to vector<2x8xf32>
    %160 = arith.addf %158, %159 : vector<2x8xf32>
    %161 = vector.extract_strided_slice %145 {offsets = [0, 64], sizes = [2, 8], strides = [1, 1]} : vector<2x128xf32> to vector<2x8xf32>
    %162 = arith.addf %160, %161 : vector<2x8xf32>
    %163 = vector.extract_strided_slice %145 {offsets = [0, 72], sizes = [2, 8], strides = [1, 1]} : vector<2x128xf32> to vector<2x8xf32>
    %164 = arith.addf %162, %163 : vector<2x8xf32>
    %165 = vector.extract_strided_slice %145 {offsets = [0, 80], sizes = [2, 8], strides = [1, 1]} : vector<2x128xf32> to vector<2x8xf32>
    %166 = arith.addf %164, %165 : vector<2x8xf32>
    %167 = vector.extract_strided_slice %145 {offsets = [0, 88], sizes = [2, 8], strides = [1, 1]} : vector<2x128xf32> to vector<2x8xf32>
    %168 = arith.addf %166, %167 : vector<2x8xf32>
    %169 = vector.extract_strided_slice %145 {offsets = [0, 96], sizes = [2, 8], strides = [1, 1]} : vector<2x128xf32> to vector<2x8xf32>
    %170 = arith.addf %168, %169 : vector<2x8xf32>
    %171 = vector.extract_strided_slice %145 {offsets = [0, 104], sizes = [2, 8], strides = [1, 1]} : vector<2x128xf32> to vector<2x8xf32>
    %172 = arith.addf %170, %171 : vector<2x8xf32>
    %173 = vector.extract_strided_slice %145 {offsets = [0, 112], sizes = [2, 8], strides = [1, 1]} : vector<2x128xf32> to vector<2x8xf32>
    %174 = arith.addf %172, %173 : vector<2x8xf32>
    %175 = vector.extract_strided_slice %145 {offsets = [0, 120], sizes = [2, 8], strides = [1, 1]} : vector<2x128xf32> to vector<2x8xf32>
    %176 = arith.addf %174, %175 : vector<2x8xf32>
    %cst_44 = arith.constant 6.250000e-02 : f32
    %177 = vector.broadcast %cst_44 : f32 to vector<2x8xf32>
    %178 = arith.mulf %176, %177 : vector<2x8xf32>
    %179 = tpu.concatenate %178, %178, %178, %178, %178, %178, %178, %178, %178, %178, %178, %178, %178, %178, %178, %178 in 1 : vector<2x8xf32>, vector<2x8xf32>, vector<2x8xf32>, vector<2x8xf32>, vector<2x8xf32>, vector<2x8xf32>, vector<2x8xf32>, vector<2x8xf32>, vector<2x8xf32>, vector<2x8xf32>, vector<2x8xf32>, vector<2x8xf32>, vector<2x8xf32>, vector<2x8xf32>, vector<2x8xf32>, vector<2x8xf32> -> vector<2x128xf32>
    %180 = vector.extract_strided_slice %179 {offsets = [0, 0], sizes = [1, 128], strides = [1, 1]} : vector<2x128xf32> to vector<1x128xf32>
    %181 = vector.extract_strided_slice %179 {offsets = [1, 0], sizes = [1, 128], strides = [1, 1]} : vector<2x128xf32> to vector<1x128xf32>
    %182 = arith.mulf %180, %180 : vector<1x128xf32>
    %183 = arith.subf %181, %182 : vector<1x128xf32>
    %cst_45 = arith.constant 9.99999974E-6 : f32
    %184 = vector.broadcast %cst_45 : f32 to vector<1x128xf32>
    %185 = arith.addf %183, %184 : vector<1x128xf32>
    %186 = math.rsqrt %185 : vector<1x128xf32>
    %187 = arith.mulf %134, %186 : vector<1x128xf32>
    %188 = arith.mulf %180, %187 : vector<1x128xf32>
    %189 = arith.subf %135, %188 : vector<1x128xf32>
    %190 = vector.broadcast %187 : vector<1x128xf32> to vector<32x128xf32>
    %191 = arith.mulf %133, %190 : vector<32x128xf32>
    %192 = vector.broadcast %189 : vector<1x128xf32> to vector<32x128xf32>
    %193 = arith.addf %191, %192 : vector<32x128xf32>
    %194 = arith.negf %193 : vector<32x128xf32>
    %195 = math.exp %194 : vector<32x128xf32>
    %cst_46 = arith.constant 1.000000e+00 : f32
    %196 = vector.broadcast %cst_46 : f32 to vector<32x128xf32>
    %197 = arith.addf %196, %195 : vector<32x128xf32>
    %198 = arith.divf %196, %197 : vector<32x128xf32>
    %199 = arith.mulf %193, %198 : vector<32x128xf32>
    %200 = tpu.iota {dimensions = array<i32: 0>} : vector<32x1xi32>
    %c16_i32_47 = arith.constant 16 : i32
    %c0_i32_48 = arith.constant 0 : i32
    %201 = arith.cmpi eq, %c16_i32_47, %c0_i32_48 : i32
    %c1_i32_49 = arith.constant 1 : i32
    %202 = arith.select %201, %c1_i32_49, %c16_i32_47 : i32
    %203 = vector.broadcast %202 : i32 to vector<32x1xi32>
    %204 = arith.remsi %200, %203 : vector<32x1xi32>
    %c0_i32_50 = arith.constant 0 : i32
    %205 = vector.broadcast %c0_i32_50 : i32 to vector<32x1xi32>
    %206 = arith.cmpi ne, %204, %205 : vector<32x1xi32>
    %c0_i32_51 = arith.constant 0 : i32
    %207 = vector.broadcast %c0_i32_51 : i32 to vector<32x1xi32>
    %208 = arith.cmpi slt, %204, %207 : vector<32x1xi32>
    %c0_i32_52 = arith.constant 0 : i32
    %209 = arith.cmpi slt, %202, %c0_i32_52 : i32
    %210 = vector.broadcast %209 : i1 to vector<32x1xi1>
    %211 = vector.broadcast %210 : vector<32x1xi1> to vector<32x1xi1>
    %212 = arith.xori %208, %211 : vector<32x1xi1>
    %213 = arith.andi %212, %206 : vector<32x1xi1>
    %214 = vector.broadcast %202 : i32 to vector<32x1xi32>
    %215 = arith.addi %204, %214 : vector<32x1xi32>
    %216 = arith.select %213, %215, %204 : vector<32x1xi1>, vector<32x1xi32>
    %c1_i32_53 = arith.constant 1 : i32
    %217 = tpu.dynamic_rotate %199 by %c1_i32_53 dim 0 : vector<32x128xf32>, i32 -> vector<32x128xf32>
    %c0_i32_54 = arith.constant 0 : i32
    %218 = vector.broadcast %c0_i32_54 : i32 to vector<32x1xi32>
    %219 = arith.cmpi ne, %216, %218 : vector<32x1xi32>
    %220 = arith.extui %219 : vector<32x1xi1> to vector<32x1xi32>
    %221 = arith.sitofp %220 : vector<32x1xi32> to vector<32x1xf32>
    %222 = vector.broadcast %221 : vector<32x1xf32> to vector<32x128xf32>
    %223 = arith.mulf %217, %222 : vector<32x128xf32>
    %c31_i32_55 = arith.constant 31 : i32
    %224 = tpu.dynamic_rotate %199 by %c31_i32_55 dim 0 : vector<32x128xf32>, i32 -> vector<32x128xf32>
    %c15_i32_56 = arith.constant 15 : i32
    %225 = vector.broadcast %c15_i32_56 : i32 to vector<32x1xi32>
    %226 = arith.cmpi ne, %216, %225 : vector<32x1xi32>
    %227 = arith.extui %226 : vector<32x1xi1> to vector<32x1xi32>
    %228 = arith.sitofp %227 : vector<32x1xi32> to vector<32x1xf32>
    %229 = vector.broadcast %228 : vector<32x1xf32> to vector<32x128xf32>
    %230 = arith.mulf %224, %229 : vector<32x128xf32>
    %231 = arith.truncf %223 : vector<32x128xf32> to vector<32x128xbf16>
    %c0_57 = arith.constant 0 : index
    %c0_58 = arith.constant 0 : index
    %c0_59 = arith.constant 0 : index
    %232 = vector.load %arg10[%c0_57, %c0_58, %c0_59] : memref<3x128x128xbf16, #tpu.memory_space<vmem>>, vector<1x128x128xbf16>
    %233 = vector.shape_cast %232 : vector<1x128x128xbf16> to vector<128x128xbf16>
    %cst_60 = arith.constant dense<0.000000e+00> : vector<32x128xf32>
    %234 = tpu.matmul %231, %233, %cst_60 {dimension_numbers = #tpu.dot_dimension_numbers<[1], [0], [0], [1], [0, 0, 1, 1], [], []>} : vector<32x128xbf16>, vector<128x128xbf16>, vector<32x128xf32> -> vector<32x128xf32>
    %235 = arith.truncf %199 : vector<32x128xf32> to vector<32x128xbf16>
    %c1_61 = arith.constant 1 : index
    %c0_62 = arith.constant 0 : index
    %c0_63 = arith.constant 0 : index
    %236 = vector.load %arg10[%c1_61, %c0_62, %c0_63] : memref<3x128x128xbf16, #tpu.memory_space<vmem>>, vector<1x128x128xbf16>
    %237 = vector.shape_cast %236 : vector<1x128x128xbf16> to vector<128x128xbf16>
    %cst_64 = arith.constant dense<0.000000e+00> : vector<32x128xf32>
    %238 = tpu.matmul %235, %237, %cst_64 {dimension_numbers = #tpu.dot_dimension_numbers<[1], [0], [0], [1], [0, 0, 1, 1], [], []>} : vector<32x128xbf16>, vector<128x128xbf16>, vector<32x128xf32> -> vector<32x128xf32>
    %239 = arith.addf %234, %238 : vector<32x128xf32>
    %240 = arith.truncf %230 : vector<32x128xf32> to vector<32x128xbf16>
    %c2_65 = arith.constant 2 : index
    %c0_66 = arith.constant 0 : index
    %c0_67 = arith.constant 0 : index
    %241 = vector.load %arg10[%c2_65, %c0_66, %c0_67] : memref<3x128x128xbf16, #tpu.memory_space<vmem>>, vector<1x128x128xbf16>
    %242 = vector.shape_cast %241 : vector<1x128x128xbf16> to vector<128x128xbf16>
    %cst_68 = arith.constant dense<0.000000e+00> : vector<32x128xf32>
    %243 = tpu.matmul %240, %242, %cst_68 {dimension_numbers = #tpu.dot_dimension_numbers<[1], [0], [0], [1], [0, 0, 1, 1], [], []>} : vector<32x128xbf16>, vector<128x128xbf16>, vector<32x128xf32> -> vector<32x128xf32>
    %244 = arith.addf %239, %243 : vector<32x128xf32>
    %c0_69 = arith.constant 0 : index
    %c0_70 = arith.constant 0 : index
    %245 = vector.load %arg11[%c0_69, %c0_70] : memref<1x128xf32, #tpu.memory_space<vmem>>, vector<1x128xf32>
    %246 = vector.broadcast %245 : vector<1x128xf32> to vector<32x128xf32>
    %247 = arith.addf %244, %246 : vector<32x128xf32>
    %248 = arith.truncf %0 : vector<32x64xf32> to vector<32x64xbf16>
    %c0_71 = arith.constant 0 : index
    %c0_72 = arith.constant 0 : index
    %249 = vector.load %arg12[%c0_71, %c0_72] : memref<64x128xbf16, #tpu.memory_space<vmem>>, vector<64x128xbf16>
    %cst_73 = arith.constant dense<0.000000e+00> : vector<32x128xf32>
    %250 = tpu.matmul %248, %249, %cst_73 {dimension_numbers = #tpu.dot_dimension_numbers<[1], [0], [0], [1], [0, 0, 1, 1], [], []>} : vector<32x64xbf16>, vector<64x128xbf16>, vector<32x128xf32> -> vector<32x128xf32>
    %c0_74 = arith.constant 0 : index
    %c0_75 = arith.constant 0 : index
    %251 = vector.load %arg13[%c0_74, %c0_75] : memref<1x128xf32, #tpu.memory_space<vmem>>, vector<1x128xf32>
    %252 = vector.broadcast %251 : vector<1x128xf32> to vector<32x128xf32>
    %253 = arith.addf %250, %252 : vector<32x128xf32>
    %254 = arith.addf %247, %253 : vector<32x128xf32>
    %c0_76 = arith.constant 0 : index
    %c0_77 = arith.constant 0 : index
    %255 = vector.load %arg14[%c0_76, %c0_77] : memref<1x128xf32, #tpu.memory_space<vmem>>, vector<1x128xf32>
    %c0_78 = arith.constant 0 : index
    %c0_79 = arith.constant 0 : index
    %256 = vector.load %arg15[%c0_78, %c0_79] : memref<1x128xf32, #tpu.memory_space<vmem>>, vector<1x128xf32>
    %cst_80 = arith.constant dense<0.000000e+00> : vector<128xf32>
    %257 = vector.multi_reduction <add>, %254, %cst_80 [0] : vector<32x128xf32> to vector<128xf32>
    %258 = vector.shape_cast %257 : vector<128xf32> to vector<1x128xf32>
    %cst_81 = arith.constant 3.200000e+01 : f32
    %259 = vector.broadcast %cst_81 : f32 to vector<1x128xf32>
    %260 = arith.divf %258, %259 : vector<1x128xf32>
    %261 = arith.mulf %254, %254 : vector<32x128xf32>
    %cst_82 = arith.constant dense<0.000000e+00> : vector<128xf32>
    %262 = vector.multi_reduction <add>, %261, %cst_82 [0] : vector<32x128xf32> to vector<128xf32>
    %263 = vector.shape_cast %262 : vector<128xf32> to vector<1x128xf32>
    %cst_83 = arith.constant 3.200000e+01 : f32
    %264 = vector.broadcast %cst_83 : f32 to vector<1x128xf32>
    %265 = arith.divf %263, %264 : vector<1x128xf32>
    %266 = tpu.concatenate %260, %265 in 0 : vector<1x128xf32>, vector<1x128xf32> -> vector<2x128xf32>
    %267 = vector.extract_strided_slice %266 {offsets = [0, 0], sizes = [2, 8], strides = [1, 1]} : vector<2x128xf32> to vector<2x8xf32>
    %268 = vector.extract_strided_slice %266 {offsets = [0, 8], sizes = [2, 8], strides = [1, 1]} : vector<2x128xf32> to vector<2x8xf32>
    %269 = arith.addf %267, %268 : vector<2x8xf32>
    %270 = vector.extract_strided_slice %266 {offsets = [0, 16], sizes = [2, 8], strides = [1, 1]} : vector<2x128xf32> to vector<2x8xf32>
    %271 = arith.addf %269, %270 : vector<2x8xf32>
    %272 = vector.extract_strided_slice %266 {offsets = [0, 24], sizes = [2, 8], strides = [1, 1]} : vector<2x128xf32> to vector<2x8xf32>
    %273 = arith.addf %271, %272 : vector<2x8xf32>
    %274 = vector.extract_strided_slice %266 {offsets = [0, 32], sizes = [2, 8], strides = [1, 1]} : vector<2x128xf32> to vector<2x8xf32>
    %275 = arith.addf %273, %274 : vector<2x8xf32>
    %276 = vector.extract_strided_slice %266 {offsets = [0, 40], sizes = [2, 8], strides = [1, 1]} : vector<2x128xf32> to vector<2x8xf32>
    %277 = arith.addf %275, %276 : vector<2x8xf32>
    %278 = vector.extract_strided_slice %266 {offsets = [0, 48], sizes = [2, 8], strides = [1, 1]} : vector<2x128xf32> to vector<2x8xf32>
    %279 = arith.addf %277, %278 : vector<2x8xf32>
    %280 = vector.extract_strided_slice %266 {offsets = [0, 56], sizes = [2, 8], strides = [1, 1]} : vector<2x128xf32> to vector<2x8xf32>
    %281 = arith.addf %279, %280 : vector<2x8xf32>
    %282 = vector.extract_strided_slice %266 {offsets = [0, 64], sizes = [2, 8], strides = [1, 1]} : vector<2x128xf32> to vector<2x8xf32>
    %283 = arith.addf %281, %282 : vector<2x8xf32>
    %284 = vector.extract_strided_slice %266 {offsets = [0, 72], sizes = [2, 8], strides = [1, 1]} : vector<2x128xf32> to vector<2x8xf32>
    %285 = arith.addf %283, %284 : vector<2x8xf32>
    %286 = vector.extract_strided_slice %266 {offsets = [0, 80], sizes = [2, 8], strides = [1, 1]} : vector<2x128xf32> to vector<2x8xf32>
    %287 = arith.addf %285, %286 : vector<2x8xf32>
    %288 = vector.extract_strided_slice %266 {offsets = [0, 88], sizes = [2, 8], strides = [1, 1]} : vector<2x128xf32> to vector<2x8xf32>
    %289 = arith.addf %287, %288 : vector<2x8xf32>
    %290 = vector.extract_strided_slice %266 {offsets = [0, 96], sizes = [2, 8], strides = [1, 1]} : vector<2x128xf32> to vector<2x8xf32>
    %291 = arith.addf %289, %290 : vector<2x8xf32>
    %292 = vector.extract_strided_slice %266 {offsets = [0, 104], sizes = [2, 8], strides = [1, 1]} : vector<2x128xf32> to vector<2x8xf32>
    %293 = arith.addf %291, %292 : vector<2x8xf32>
    %294 = vector.extract_strided_slice %266 {offsets = [0, 112], sizes = [2, 8], strides = [1, 1]} : vector<2x128xf32> to vector<2x8xf32>
    %295 = arith.addf %293, %294 : vector<2x8xf32>
    %296 = vector.extract_strided_slice %266 {offsets = [0, 120], sizes = [2, 8], strides = [1, 1]} : vector<2x128xf32> to vector<2x8xf32>
    %297 = arith.addf %295, %296 : vector<2x8xf32>
    %cst_84 = arith.constant 6.250000e-02 : f32
    %298 = vector.broadcast %cst_84 : f32 to vector<2x8xf32>
    %299 = arith.mulf %297, %298 : vector<2x8xf32>
    %300 = tpu.concatenate %299, %299, %299, %299, %299, %299, %299, %299, %299, %299, %299, %299, %299, %299, %299, %299 in 1 : vector<2x8xf32>, vector<2x8xf32>, vector<2x8xf32>, vector<2x8xf32>, vector<2x8xf32>, vector<2x8xf32>, vector<2x8xf32>, vector<2x8xf32>, vector<2x8xf32>, vector<2x8xf32>, vector<2x8xf32>, vector<2x8xf32>, vector<2x8xf32>, vector<2x8xf32>, vector<2x8xf32>, vector<2x8xf32> -> vector<2x128xf32>
    %301 = vector.extract_strided_slice %300 {offsets = [0, 0], sizes = [1, 128], strides = [1, 1]} : vector<2x128xf32> to vector<1x128xf32>
    %302 = vector.extract_strided_slice %300 {offsets = [1, 0], sizes = [1, 128], strides = [1, 1]} : vector<2x128xf32> to vector<1x128xf32>
    %303 = arith.mulf %301, %301 : vector<1x128xf32>
    %304 = arith.subf %302, %303 : vector<1x128xf32>
    %cst_85 = arith.constant 9.99999974E-6 : f32
    %305 = vector.broadcast %cst_85 : f32 to vector<1x128xf32>
    %306 = arith.addf %304, %305 : vector<1x128xf32>
    %307 = math.rsqrt %306 : vector<1x128xf32>
    %308 = arith.mulf %255, %307 : vector<1x128xf32>
    %309 = arith.mulf %301, %308 : vector<1x128xf32>
    %310 = arith.subf %256, %309 : vector<1x128xf32>
    %311 = vector.broadcast %308 : vector<1x128xf32> to vector<32x128xf32>
    %312 = arith.mulf %254, %311 : vector<32x128xf32>
    %313 = vector.broadcast %310 : vector<1x128xf32> to vector<32x128xf32>
    %314 = arith.addf %312, %313 : vector<32x128xf32>
    %315 = arith.negf %314 : vector<32x128xf32>
    %316 = math.exp %315 : vector<32x128xf32>
    %cst_86 = arith.constant 1.000000e+00 : f32
    %317 = vector.broadcast %cst_86 : f32 to vector<32x128xf32>
    %318 = arith.addf %317, %316 : vector<32x128xf32>
    %319 = arith.divf %317, %318 : vector<32x128xf32>
    %320 = arith.mulf %314, %319 : vector<32x128xf32>
    %321 = tpu.iota {dimensions = array<i32: 0>} : vector<32x1xi32>
    %c16_i32_87 = arith.constant 16 : i32
    %c0_i32_88 = arith.constant 0 : i32
    %322 = arith.cmpi eq, %c16_i32_87, %c0_i32_88 : i32
    %c1_i32_89 = arith.constant 1 : i32
    %323 = arith.select %322, %c1_i32_89, %c16_i32_87 : i32
    %324 = vector.broadcast %323 : i32 to vector<32x1xi32>
    %325 = arith.remsi %321, %324 : vector<32x1xi32>
    %c0_i32_90 = arith.constant 0 : i32
    %326 = vector.broadcast %c0_i32_90 : i32 to vector<32x1xi32>
    %327 = arith.cmpi ne, %325, %326 : vector<32x1xi32>
    %c0_i32_91 = arith.constant 0 : i32
    %328 = vector.broadcast %c0_i32_91 : i32 to vector<32x1xi32>
    %329 = arith.cmpi slt, %325, %328 : vector<32x1xi32>
    %c0_i32_92 = arith.constant 0 : i32
    %330 = arith.cmpi slt, %323, %c0_i32_92 : i32
    %331 = vector.broadcast %330 : i1 to vector<32x1xi1>
    %332 = vector.broadcast %331 : vector<32x1xi1> to vector<32x1xi1>
    %333 = arith.xori %329, %332 : vector<32x1xi1>
    %334 = arith.andi %333, %327 : vector<32x1xi1>
    %335 = vector.broadcast %323 : i32 to vector<32x1xi32>
    %336 = arith.addi %325, %335 : vector<32x1xi32>
    %337 = arith.select %334, %336, %325 : vector<32x1xi1>, vector<32x1xi32>
    %c1_i32_93 = arith.constant 1 : i32
    %338 = tpu.dynamic_rotate %320 by %c1_i32_93 dim 0 : vector<32x128xf32>, i32 -> vector<32x128xf32>
    %c0_i32_94 = arith.constant 0 : i32
    %339 = vector.broadcast %c0_i32_94 : i32 to vector<32x1xi32>
    %340 = arith.cmpi ne, %337, %339 : vector<32x1xi32>
    %341 = arith.extui %340 : vector<32x1xi1> to vector<32x1xi32>
    %342 = arith.sitofp %341 : vector<32x1xi32> to vector<32x1xf32>
    %343 = vector.broadcast %342 : vector<32x1xf32> to vector<32x128xf32>
    %344 = arith.mulf %338, %343 : vector<32x128xf32>
    %c31_i32_95 = arith.constant 31 : i32
    %345 = tpu.dynamic_rotate %320 by %c31_i32_95 dim 0 : vector<32x128xf32>, i32 -> vector<32x128xf32>
    %c15_i32_96 = arith.constant 15 : i32
    %346 = vector.broadcast %c15_i32_96 : i32 to vector<32x1xi32>
    %347 = arith.cmpi ne, %337, %346 : vector<32x1xi32>
    %348 = arith.extui %347 : vector<32x1xi1> to vector<32x1xi32>
    %349 = arith.sitofp %348 : vector<32x1xi32> to vector<32x1xf32>
    %350 = vector.broadcast %349 : vector<32x1xf32> to vector<32x128xf32>
    %351 = arith.mulf %345, %350 : vector<32x128xf32>
    %352 = arith.truncf %344 : vector<32x128xf32> to vector<32x128xbf16>
    %c0_97 = arith.constant 0 : index
    %c0_98 = arith.constant 0 : index
    %c0_99 = arith.constant 0 : index
    %353 = vector.load %arg16[%c0_97, %c0_98, %c0_99] : memref<3x128x128xbf16, #tpu.memory_space<vmem>>, vector<1x128x128xbf16>
    %354 = vector.shape_cast %353 : vector<1x128x128xbf16> to vector<128x128xbf16>
    %cst_100 = arith.constant dense<0.000000e+00> : vector<32x128xf32>
    %355 = tpu.matmul %352, %354, %cst_100 {dimension_numbers = #tpu.dot_dimension_numbers<[1], [0], [0], [1], [0, 0, 1, 1], [], []>} : vector<32x128xbf16>, vector<128x128xbf16>, vector<32x128xf32> -> vector<32x128xf32>
    %356 = arith.truncf %320 : vector<32x128xf32> to vector<32x128xbf16>
    %c1_101 = arith.constant 1 : index
    %c0_102 = arith.constant 0 : index
    %c0_103 = arith.constant 0 : index
    %357 = vector.load %arg16[%c1_101, %c0_102, %c0_103] : memref<3x128x128xbf16, #tpu.memory_space<vmem>>, vector<1x128x128xbf16>
    %358 = vector.shape_cast %357 : vector<1x128x128xbf16> to vector<128x128xbf16>
    %cst_104 = arith.constant dense<0.000000e+00> : vector<32x128xf32>
    %359 = tpu.matmul %356, %358, %cst_104 {dimension_numbers = #tpu.dot_dimension_numbers<[1], [0], [0], [1], [0, 0, 1, 1], [], []>} : vector<32x128xbf16>, vector<128x128xbf16>, vector<32x128xf32> -> vector<32x128xf32>
    %360 = arith.addf %355, %359 : vector<32x128xf32>
    %361 = arith.truncf %351 : vector<32x128xf32> to vector<32x128xbf16>
    %c2_105 = arith.constant 2 : index
    %c0_106 = arith.constant 0 : index
    %c0_107 = arith.constant 0 : index
    %362 = vector.load %arg16[%c2_105, %c0_106, %c0_107] : memref<3x128x128xbf16, #tpu.memory_space<vmem>>, vector<1x128x128xbf16>
    %363 = vector.shape_cast %362 : vector<1x128x128xbf16> to vector<128x128xbf16>
    %cst_108 = arith.constant dense<0.000000e+00> : vector<32x128xf32>
    %364 = tpu.matmul %361, %363, %cst_108 {dimension_numbers = #tpu.dot_dimension_numbers<[1], [0], [0], [1], [0, 0, 1, 1], [], []>} : vector<32x128xbf16>, vector<128x128xbf16>, vector<32x128xf32> -> vector<32x128xf32>
    %365 = arith.addf %360, %364 : vector<32x128xf32>
    %c0_109 = arith.constant 0 : index
    %c0_110 = arith.constant 0 : index
    %366 = vector.load %arg17[%c0_109, %c0_110] : memref<1x128xf32, #tpu.memory_space<vmem>>, vector<1x128xf32>
    %367 = vector.broadcast %366 : vector<1x128xf32> to vector<32x128xf32>
    %368 = arith.addf %365, %367 : vector<32x128xf32>
    %c0_111 = arith.constant 0 : index
    %c0_112 = arith.constant 0 : index
    %369 = vector.load %arg18[%c0_111, %c0_112] : memref<32x8xbf16, #tpu.memory_space<vmem>>, vector<32x8xbf16>
    %cst_113 = arith.constant dense<0.000000e+00> : vector<2x8xf32>
    %370 = tpu.matmul %8, %369, %cst_113 {dimension_numbers = #tpu.dot_dimension_numbers<[1], [0], [0], [1], [0, 0, 1, 1], [], []>} : vector<2x32xbf16>, vector<32x8xbf16>, vector<2x8xf32> -> vector<2x8xf32>
    %c0_114 = arith.constant 0 : index
    %c0_115 = arith.constant 0 : index
    %371 = vector.load %arg19[%c0_114, %c0_115] : memref<1x8xf32, #tpu.memory_space<vmem>>, vector<1x8xf32>
    %372 = vector.broadcast %371 : vector<1x8xf32> to vector<2x8xf32>
    %373 = arith.addf %370, %372 : vector<2x8xf32>
    %374 = tpu.concatenate %373, %373, %373, %373, %373, %373, %373, %373, %373, %373, %373, %373, %373, %373, %373, %373 in 1 : vector<2x8xf32>, vector<2x8xf32>, vector<2x8xf32>, vector<2x8xf32>, vector<2x8xf32>, vector<2x8xf32>, vector<2x8xf32>, vector<2x8xf32>, vector<2x8xf32>, vector<2x8xf32>, vector<2x8xf32>, vector<2x8xf32>, vector<2x8xf32>, vector<2x8xf32>, vector<2x8xf32>, vector<2x8xf32> -> vector<2x128xf32>
    %375 = vector.shape_cast %374 : vector<2x128xf32> to vector<2x1x128xf32>
    %376 = vector.shape_cast %375 : vector<2x1x128xf32> to vector<2x1x128xf32>
    %377 = vector.broadcast %376 : vector<2x1x128xf32> to vector<2x16x128xf32>
    %378 = vector.shape_cast %377 : vector<2x16x128xf32> to vector<32x128xf32>
    %379 = arith.addf %368, %378 : vector<32x128xf32>
    %c0_116 = arith.constant 0 : index
    %c0_117 = arith.constant 0 : index
    %380 = vector.load %arg20[%c0_116, %c0_117] : memref<1x128xf32, #tpu.memory_space<vmem>>, vector<1x128xf32>
    %c0_118 = arith.constant 0 : index
    %c0_119 = arith.constant 0 : index
    %381 = vector.load %arg21[%c0_118, %c0_119] : memref<1x128xf32, #tpu.memory_space<vmem>>, vector<1x128xf32>
    %cst_120 = arith.constant dense<0.000000e+00> : vector<128xf32>
    %382 = vector.multi_reduction <add>, %379, %cst_120 [0] : vector<32x128xf32> to vector<128xf32>
    %383 = vector.shape_cast %382 : vector<128xf32> to vector<1x128xf32>
    %cst_121 = arith.constant 3.200000e+01 : f32
    %384 = vector.broadcast %cst_121 : f32 to vector<1x128xf32>
    %385 = arith.divf %383, %384 : vector<1x128xf32>
    %386 = arith.mulf %379, %379 : vector<32x128xf32>
    %cst_122 = arith.constant dense<0.000000e+00> : vector<128xf32>
    %387 = vector.multi_reduction <add>, %386, %cst_122 [0] : vector<32x128xf32> to vector<128xf32>
    %388 = vector.shape_cast %387 : vector<128xf32> to vector<1x128xf32>
    %cst_123 = arith.constant 3.200000e+01 : f32
    %389 = vector.broadcast %cst_123 : f32 to vector<1x128xf32>
    %390 = arith.divf %388, %389 : vector<1x128xf32>
    %391 = tpu.concatenate %385, %390 in 0 : vector<1x128xf32>, vector<1x128xf32> -> vector<2x128xf32>
    %392 = vector.extract_strided_slice %391 {offsets = [0, 0], sizes = [2, 8], strides = [1, 1]} : vector<2x128xf32> to vector<2x8xf32>
    %393 = vector.extract_strided_slice %391 {offsets = [0, 8], sizes = [2, 8], strides = [1, 1]} : vector<2x128xf32> to vector<2x8xf32>
    %394 = arith.addf %392, %393 : vector<2x8xf32>
    %395 = vector.extract_strided_slice %391 {offsets = [0, 16], sizes = [2, 8], strides = [1, 1]} : vector<2x128xf32> to vector<2x8xf32>
    %396 = arith.addf %394, %395 : vector<2x8xf32>
    %397 = vector.extract_strided_slice %391 {offsets = [0, 24], sizes = [2, 8], strides = [1, 1]} : vector<2x128xf32> to vector<2x8xf32>
    %398 = arith.addf %396, %397 : vector<2x8xf32>
    %399 = vector.extract_strided_slice %391 {offsets = [0, 32], sizes = [2, 8], strides = [1, 1]} : vector<2x128xf32> to vector<2x8xf32>
    %400 = arith.addf %398, %399 : vector<2x8xf32>
    %401 = vector.extract_strided_slice %391 {offsets = [0, 40], sizes = [2, 8], strides = [1, 1]} : vector<2x128xf32> to vector<2x8xf32>
    %402 = arith.addf %400, %401 : vector<2x8xf32>
    %403 = vector.extract_strided_slice %391 {offsets = [0, 48], sizes = [2, 8], strides = [1, 1]} : vector<2x128xf32> to vector<2x8xf32>
    %404 = arith.addf %402, %403 : vector<2x8xf32>
    %405 = vector.extract_strided_slice %391 {offsets = [0, 56], sizes = [2, 8], strides = [1, 1]} : vector<2x128xf32> to vector<2x8xf32>
    %406 = arith.addf %404, %405 : vector<2x8xf32>
    %407 = vector.extract_strided_slice %391 {offsets = [0, 64], sizes = [2, 8], strides = [1, 1]} : vector<2x128xf32> to vector<2x8xf32>
    %408 = arith.addf %406, %407 : vector<2x8xf32>
    %409 = vector.extract_strided_slice %391 {offsets = [0, 72], sizes = [2, 8], strides = [1, 1]} : vector<2x128xf32> to vector<2x8xf32>
    %410 = arith.addf %408, %409 : vector<2x8xf32>
    %411 = vector.extract_strided_slice %391 {offsets = [0, 80], sizes = [2, 8], strides = [1, 1]} : vector<2x128xf32> to vector<2x8xf32>
    %412 = arith.addf %410, %411 : vector<2x8xf32>
    %413 = vector.extract_strided_slice %391 {offsets = [0, 88], sizes = [2, 8], strides = [1, 1]} : vector<2x128xf32> to vector<2x8xf32>
    %414 = arith.addf %412, %413 : vector<2x8xf32>
    %415 = vector.extract_strided_slice %391 {offsets = [0, 96], sizes = [2, 8], strides = [1, 1]} : vector<2x128xf32> to vector<2x8xf32>
    %416 = arith.addf %414, %415 : vector<2x8xf32>
    %417 = vector.extract_strided_slice %391 {offsets = [0, 104], sizes = [2, 8], strides = [1, 1]} : vector<2x128xf32> to vector<2x8xf32>
    %418 = arith.addf %416, %417 : vector<2x8xf32>
    %419 = vector.extract_strided_slice %391 {offsets = [0, 112], sizes = [2, 8], strides = [1, 1]} : vector<2x128xf32> to vector<2x8xf32>
    %420 = arith.addf %418, %419 : vector<2x8xf32>
    %421 = vector.extract_strided_slice %391 {offsets = [0, 120], sizes = [2, 8], strides = [1, 1]} : vector<2x128xf32> to vector<2x8xf32>
    %422 = arith.addf %420, %421 : vector<2x8xf32>
    %cst_124 = arith.constant 6.250000e-02 : f32
    %423 = vector.broadcast %cst_124 : f32 to vector<2x8xf32>
    %424 = arith.mulf %422, %423 : vector<2x8xf32>
    %425 = tpu.concatenate %424, %424, %424, %424, %424, %424, %424, %424, %424, %424, %424, %424, %424, %424, %424, %424 in 1 : vector<2x8xf32>, vector<2x8xf32>, vector<2x8xf32>, vector<2x8xf32>, vector<2x8xf32>, vector<2x8xf32>, vector<2x8xf32>, vector<2x8xf32>, vector<2x8xf32>, vector<2x8xf32>, vector<2x8xf32>, vector<2x8xf32>, vector<2x8xf32>, vector<2x8xf32>, vector<2x8xf32>, vector<2x8xf32> -> vector<2x128xf32>
    %426 = vector.extract_strided_slice %425 {offsets = [0, 0], sizes = [1, 128], strides = [1, 1]} : vector<2x128xf32> to vector<1x128xf32>
    %427 = vector.extract_strided_slice %425 {offsets = [1, 0], sizes = [1, 128], strides = [1, 1]} : vector<2x128xf32> to vector<1x128xf32>
    %428 = arith.mulf %426, %426 : vector<1x128xf32>
    %429 = arith.subf %427, %428 : vector<1x128xf32>
    %cst_125 = arith.constant 9.99999974E-6 : f32
    %430 = vector.broadcast %cst_125 : f32 to vector<1x128xf32>
    %431 = arith.addf %429, %430 : vector<1x128xf32>
    %432 = math.rsqrt %431 : vector<1x128xf32>
    %433 = arith.mulf %380, %432 : vector<1x128xf32>
    %434 = arith.mulf %426, %433 : vector<1x128xf32>
    %435 = arith.subf %381, %434 : vector<1x128xf32>
    %436 = vector.broadcast %433 : vector<1x128xf32> to vector<32x128xf32>
    %437 = arith.mulf %379, %436 : vector<32x128xf32>
    %438 = vector.broadcast %435 : vector<1x128xf32> to vector<32x128xf32>
    %439 = arith.addf %437, %438 : vector<32x128xf32>
    %440 = arith.negf %439 : vector<32x128xf32>
    %441 = math.exp %440 : vector<32x128xf32>
    %cst_126 = arith.constant 1.000000e+00 : f32
    %442 = vector.broadcast %cst_126 : f32 to vector<32x128xf32>
    %443 = arith.addf %442, %441 : vector<32x128xf32>
    %444 = arith.divf %442, %443 : vector<32x128xf32>
    %445 = arith.mulf %439, %444 : vector<32x128xf32>
    %446 = tpu.iota {dimensions = array<i32: 0>} : vector<32x1xi32>
    %c16_i32_127 = arith.constant 16 : i32
    %c0_i32_128 = arith.constant 0 : i32
    %447 = arith.cmpi eq, %c16_i32_127, %c0_i32_128 : i32
    %c1_i32_129 = arith.constant 1 : i32
    %448 = arith.select %447, %c1_i32_129, %c16_i32_127 : i32
    %449 = vector.broadcast %448 : i32 to vector<32x1xi32>
    %450 = arith.remsi %446, %449 : vector<32x1xi32>
    %c0_i32_130 = arith.constant 0 : i32
    %451 = vector.broadcast %c0_i32_130 : i32 to vector<32x1xi32>
    %452 = arith.cmpi ne, %450, %451 : vector<32x1xi32>
    %c0_i32_131 = arith.constant 0 : i32
    %453 = vector.broadcast %c0_i32_131 : i32 to vector<32x1xi32>
    %454 = arith.cmpi slt, %450, %453 : vector<32x1xi32>
    %c0_i32_132 = arith.constant 0 : i32
    %455 = arith.cmpi slt, %448, %c0_i32_132 : i32
    %456 = vector.broadcast %455 : i1 to vector<32x1xi1>
    %457 = vector.broadcast %456 : vector<32x1xi1> to vector<32x1xi1>
    %458 = arith.xori %454, %457 : vector<32x1xi1>
    %459 = arith.andi %458, %452 : vector<32x1xi1>
    %460 = vector.broadcast %448 : i32 to vector<32x1xi32>
    %461 = arith.addi %450, %460 : vector<32x1xi32>
    %462 = arith.select %459, %461, %450 : vector<32x1xi1>, vector<32x1xi32>
    %c1_i32_133 = arith.constant 1 : i32
    %463 = tpu.dynamic_rotate %445 by %c1_i32_133 dim 0 : vector<32x128xf32>, i32 -> vector<32x128xf32>
    %c0_i32_134 = arith.constant 0 : i32
    %464 = vector.broadcast %c0_i32_134 : i32 to vector<32x1xi32>
    %465 = arith.cmpi ne, %462, %464 : vector<32x1xi32>
    %466 = arith.extui %465 : vector<32x1xi1> to vector<32x1xi32>
    %467 = arith.sitofp %466 : vector<32x1xi32> to vector<32x1xf32>
    %468 = vector.broadcast %467 : vector<32x1xf32> to vector<32x128xf32>
    %469 = arith.mulf %463, %468 : vector<32x128xf32>
    %c31_i32_135 = arith.constant 31 : i32
    %470 = tpu.dynamic_rotate %445 by %c31_i32_135 dim 0 : vector<32x128xf32>, i32 -> vector<32x128xf32>
    %c15_i32_136 = arith.constant 15 : i32
    %471 = vector.broadcast %c15_i32_136 : i32 to vector<32x1xi32>
    %472 = arith.cmpi ne, %462, %471 : vector<32x1xi32>
    %473 = arith.extui %472 : vector<32x1xi1> to vector<32x1xi32>
    %474 = arith.sitofp %473 : vector<32x1xi32> to vector<32x1xf32>
    %475 = vector.broadcast %474 : vector<32x1xf32> to vector<32x128xf32>
    %476 = arith.mulf %470, %475 : vector<32x128xf32>
    %477 = arith.truncf %469 : vector<32x128xf32> to vector<32x128xbf16>
    %c0_137 = arith.constant 0 : index
    %c0_138 = arith.constant 0 : index
    %c0_139 = arith.constant 0 : index
    %478 = vector.load %arg22[%c0_137, %c0_138, %c0_139] : memref<3x128x128xbf16, #tpu.memory_space<vmem>>, vector<1x128x128xbf16>
    %479 = vector.shape_cast %478 : vector<1x128x128xbf16> to vector<128x128xbf16>
    %cst_140 = arith.constant dense<0.000000e+00> : vector<32x128xf32>
    %480 = tpu.matmul %477, %479, %cst_140 {dimension_numbers = #tpu.dot_dimension_numbers<[1], [0], [0], [1], [0, 0, 1, 1], [], []>} : vector<32x128xbf16>, vector<128x128xbf16>, vector<32x128xf32> -> vector<32x128xf32>
    %481 = arith.truncf %445 : vector<32x128xf32> to vector<32x128xbf16>
    %c1_141 = arith.constant 1 : index
    %c0_142 = arith.constant 0 : index
    %c0_143 = arith.constant 0 : index
    %482 = vector.load %arg22[%c1_141, %c0_142, %c0_143] : memref<3x128x128xbf16, #tpu.memory_space<vmem>>, vector<1x128x128xbf16>
    %483 = vector.shape_cast %482 : vector<1x128x128xbf16> to vector<128x128xbf16>
    %cst_144 = arith.constant dense<0.000000e+00> : vector<32x128xf32>
    %484 = tpu.matmul %481, %483, %cst_144 {dimension_numbers = #tpu.dot_dimension_numbers<[1], [0], [0], [1], [0, 0, 1, 1], [], []>} : vector<32x128xbf16>, vector<128x128xbf16>, vector<32x128xf32> -> vector<32x128xf32>
    %485 = arith.addf %480, %484 : vector<32x128xf32>
    %486 = arith.truncf %476 : vector<32x128xf32> to vector<32x128xbf16>
    %c2_145 = arith.constant 2 : index
    %c0_146 = arith.constant 0 : index
    %c0_147 = arith.constant 0 : index
    %487 = vector.load %arg22[%c2_145, %c0_146, %c0_147] : memref<3x128x128xbf16, #tpu.memory_space<vmem>>, vector<1x128x128xbf16>
    %488 = vector.shape_cast %487 : vector<1x128x128xbf16> to vector<128x128xbf16>
    %cst_148 = arith.constant dense<0.000000e+00> : vector<32x128xf32>
    %489 = tpu.matmul %486, %488, %cst_148 {dimension_numbers = #tpu.dot_dimension_numbers<[1], [0], [0], [1], [0, 0, 1, 1], [], []>} : vector<32x128xbf16>, vector<128x128xbf16>, vector<32x128xf32> -> vector<32x128xf32>
    %490 = arith.addf %485, %489 : vector<32x128xf32>
    %c0_149 = arith.constant 0 : index
    %c0_150 = arith.constant 0 : index
    %491 = vector.load %arg23[%c0_149, %c0_150] : memref<1x128xf32, #tpu.memory_space<vmem>>, vector<1x128xf32>
    %492 = vector.broadcast %491 : vector<1x128xf32> to vector<32x128xf32>
    %493 = arith.addf %490, %492 : vector<32x128xf32>
    %494 = arith.addf %493, %254 : vector<32x128xf32>
    %c0_151 = arith.constant 0 : index
    %c0_152 = arith.constant 0 : index
    %495 = vector.load %arg24[%c0_151, %c0_152] : memref<32x128xf32, #tpu.memory_space<vmem>>, vector<32x128xf32>
    tpu.vector_store %arg24[%c0_151, %c0_152], %494 {strides = array<i32>} : memref<32x128xf32, #tpu.memory_space<vmem>>, vector<32x128xf32>,
    %c120_i32 = arith.constant 120 : i32
    %496 = tpu.dynamic_rotate %494 by %c120_i32 dim 1 : vector<32x128xf32>, i32 -> vector<32x128xf32>
    %497 = arith.maximumf %494, %496 : vector<32x128xf32>
    %498 = vector.shape_cast %497 : vector<32x128xf32> to vector<16x2x128xf32>
    %cst_153 = arith.constant dense<0xFF800000> : vector<16x128xf32>
    %499 = vector.multi_reduction <maximumf>, %498, %cst_153 [1] : vector<16x2x128xf32> to vector<16x128xf32>
    %500 = vector.extract_strided_slice %499 {offsets = [0, 0], sizes = [16, 8], strides = [1, 1]} : vector<16x128xf32> to vector<16x8xf32>
    %501 = vector.extract_strided_slice %499 {offsets = [0, 16], sizes = [16, 8], strides = [1, 1]} : vector<16x128xf32> to vector<16x8xf32>
    %502 = vector.extract_strided_slice %499 {offsets = [0, 32], sizes = [16, 8], strides = [1, 1]} : vector<16x128xf32> to vector<16x8xf32>
    %503 = vector.extract_strided_slice %499 {offsets = [0, 48], sizes = [16, 8], strides = [1, 1]} : vector<16x128xf32> to vector<16x8xf32>
    %504 = vector.extract_strided_slice %499 {offsets = [0, 64], sizes = [16, 8], strides = [1, 1]} : vector<16x128xf32> to vector<16x8xf32>
    %505 = vector.extract_strided_slice %499 {offsets = [0, 80], sizes = [16, 8], strides = [1, 1]} : vector<16x128xf32> to vector<16x8xf32>
    %506 = vector.extract_strided_slice %499 {offsets = [0, 96], sizes = [16, 8], strides = [1, 1]} : vector<16x128xf32> to vector<16x8xf32>
    %507 = vector.extract_strided_slice %499 {offsets = [0, 112], sizes = [16, 8], strides = [1, 1]} : vector<16x128xf32> to vector<16x8xf32>
    %508 = tpu.concatenate %500, %501, %502, %503, %504, %505, %506, %507 in 1 : vector<16x8xf32>, vector<16x8xf32>, vector<16x8xf32>, vector<16x8xf32>, vector<16x8xf32>, vector<16x8xf32>, vector<16x8xf32>, vector<16x8xf32> -> vector<16x64xf32>
    %c0_154 = arith.constant 0 : index
    %c0_155 = arith.constant 0 : index
    %509 = vector.load %arg25[%c0_154, %c0_155] : memref<16x64xf32, #tpu.memory_space<vmem>>, vector<16x64xf32>
    tpu.vector_store %arg25[%c0_154, %c0_155], %508 {strides = array<i32>} : memref<16x64xf32, #tpu.memory_space<vmem>>, vector<16x64xf32>,
    return
  }
}

</mosaic_0001>

<llo_original>
// kernel: downblock_forward.1
$region0: #{downblock_forward.1}
  #allocation0 [shape = 'u32[]', space=smem, size = 0x4, offset = 0x4, fixed_abs, tag = 'smem constant byte address 0x4 - core index']
  #allocation1 [shape = 'u32[144,128]{1,0:T(1,128)}', space=vmem, size = 0x12000, scoped, tag = 'internal scratch']
  %s0 = inlined_call_operand.vmem [shape: f32[32,64], index: 0, kind: input, shape index: {}]
  %s1 = inlined_call_operand.vmem [shape: f32[2,32], index: 1, kind: input, shape index: {}]
  %s2 = inlined_call_operand.vmem [shape: f32[1,64], index: 2, kind: input, shape index: {}]
  %s3 = inlined_call_operand.vmem [shape: f32[1,64], index: 3, kind: input, shape index: {}]
  %s4 = inlined_call_operand.vmem [shape: bf16[3,64,128], index: 4, kind: input, shape index: {}]
  %s5 = inlined_call_operand.vmem [shape: f32[1,128], index: 5, kind: input, shape index: {}]
  %s6 = inlined_call_operand.vmem [shape: bf16[32,8], index: 6, kind: input, shape index: {}]
  %s7 = inlined_call_operand.vmem [shape: f32[1,8], index: 7, kind: input, shape index: {}]
  %s8 = inlined_call_operand.vmem [shape: f32[1,128], index: 8, kind: input, shape index: {}]
  %s9 = inlined_call_operand.vmem [shape: f32[1,128], index: 9, kind: input, shape index: {}]
  %s10 = inlined_call_operand.vmem [shape: bf16[3,128,128], index: 10, kind: input, shape index: {}]
  %s11 = inlined_call_operand.vmem [shape: f32[1,128], index: 11, kind: input, shape index: {}]
  %s12 = inlined_call_operand.vmem [shape: bf16[64,128], index: 12, kind: input, shape index: {}]
  %s13 = inlined_call_operand.vmem [shape: f32[1,128], index: 13, kind: input, shape index: {}]
  %s14 = inlined_call_operand.vmem [shape: f32[1,128], index: 14, kind: input, shape index: {}]
  %s15 = inlined_call_operand.vmem [shape: f32[1,128], index: 15, kind: input, shape index: {}]
  %s16 = inlined_call_operand.vmem [shape: bf16[3,128,128], index: 16, kind: input, shape index: {}]
  %s17 = inlined_call_operand.vmem [shape: f32[1,128], index: 17, kind: input, shape index: {}]
  %s18 = inlined_call_operand.vmem [shape: bf16[32,8], index: 18, kind: input, shape index: {}]
  %s19 = inlined_call_operand.vmem [shape: f32[1,8], index: 19, kind: input, shape index: {}]
  %s20 = inlined_call_operand.vmem [shape: f32[1,128], index: 20, kind: input, shape index: {}]
  %s21 = inlined_call_operand.vmem [shape: f32[1,128], index: 21, kind: input, shape index: {}]
  %s22 = inlined_call_operand.vmem [shape: bf16[3,128,128], index: 22, kind: input, shape index: {}]
  %s23 = inlined_call_operand.vmem [shape: f32[1,128], index: 23, kind: input, shape index: {}]
  %s24 = inlined_call_operand.vmem [shape: f32[32,128], index: 24, kind: output, shape index: {0}]
  %s25 = inlined_call_operand.vmem [shape: f32[16,64], index: 25, kind: output, shape index: {1}]
  %26 = xla_tuple %s24, %s25
  %s27 = sld [smem:[#allocation0]]
  $region114: #{downblock_forward.1} parent=0
    _
  %s29 = ssub.s32 1, %s27
  %s30 = scalar_select 0, %s29, %s27
  // Predicated region
  $region2: #{downblock_forward.1} parent=0 // pred_check
    _
  $region3: #{downblock_forward.1} parent=0 // pred_check_branch
    %32 = sbr.rel (0) target = $region5
  $region4: #{downblock_forward.1} parent=0 // pred_region
    _
  $region5: #{downblock_forward.1} parent=0 // pred_fallthru
    _
  // Predicated region
  $region6: #{downblock_forward.1} parent=0 // pred_check
    _
  $region7: #{downblock_forward.1} parent=0 // pred_check_branch
    %34 = sbr.rel (0) target = $region9
  $region8: #{downblock_forward.1} parent=0 // pred_region
    _
  $region9: #{downblock_forward.1} parent=0 // pred_fallthru
    _
  // Predicated region
  $region10: #{downblock_forward.1} parent=0 // pred_check
    _
  $region11: #{downblock_forward.1} parent=0 // pred_check_branch
    %36 = sbr.rel (0) target = $region13
  $region12: #{downblock_forward.1} parent=0 // pred_region
    _
  $region13: #{downblock_forward.1} parent=0 // pred_fallthru
    _
  // Predicated region
  $region14: #{downblock_forward.1} parent=0 // pred_check
    _
  $region15: #{downblock_forward.1} parent=0 // pred_check_branch
    %38 = sbr.rel (0) target = $region17
  $region16: #{downblock_forward.1} parent=0 // pred_region
    _
  $region17: #{downblock_forward.1} parent=0 // pred_fallthru
    _
  // Predicated region
  $region18: #{downblock_forward.1} parent=0 // pred_check
    _
  $region19: #{downblock_forward.1} parent=0 // pred_check_branch
    %40 = sbr.rel (0) target = $region21
  $region20: #{downblock_forward.1} parent=0 // pred_region
    _
  $region21: #{downblock_forward.1} parent=0 // pred_fallthru
    _
  // Predicated region
  $region22: #{downblock_forward.1} parent=0 // pred_check
    _
  $region23: #{downblock_forward.1} parent=0 // pred_check_branch
    %42 = sbr.rel (0) target = $region25
  $region24: #{downblock_forward.1} parent=0 // pred_region
    _
  $region25: #{downblock_forward.1} parent=0 // pred_fallthru
    _
  // Predicated region
  $region26: #{downblock_forward.1} parent=0 // pred_check
    _
  $region27: #{downblock_forward.1} parent=0 // pred_check_branch
    %44 = sbr.rel (0) target = $region29
  $region28: #{downblock_forward.1} parent=0 // pred_region
    _
  $region29: #{downblock_forward.1} parent=0 // pred_fallthru
    _
  // Predicated region
  $region30: #{downblock_forward.1} parent=0 // pred_check
    _
  $region31: #{downblock_forward.1} parent=0 // pred_check_branch
    %46 = sbr.rel (0) target = $region33
  $region32: #{downblock_forward.1} parent=0 // pred_region
    _
  $region33: #{downblock_forward.1} parent=0 // pred_fallthru
    _
  // Predicated region
  $region34: #{downblock_forward.1} parent=0 // pred_check
    _
  $region35: #{downblock_forward.1} parent=0 // pred_check_branch
    %48 = sbr.rel (0) target = $region37
  $region36: #{downblock_forward.1} parent=0 // pred_region
    _
  $region37: #{downblock_forward.1} parent=0 // pred_fallthru
    _
  // Predicated region
  $region38: #{downblock_forward.1} parent=0 // pred_check
    _
  $region39: #{downblock_forward.1} parent=0 // pred_check_branch
    %50 = sbr.rel (0) target = $region41
  $region40: #{downblock_forward.1} parent=0 // pred_region
    _
  $region41: #{downblock_forward.1} parent=0 // pred_fallthru
    _
  // Predicated region
  $region42: #{downblock_forward.1} parent=0 // pred_check
    _
  $region43: #{downblock_forward.1} parent=0 // pred_check_branch
    %52 = sbr.rel (0) target = $region45
  $region44: #{downblock_forward.1} parent=0 // pred_region
    _
  $region45: #{downblock_forward.1} parent=0 // pred_fallthru
    _
  // Predicated region
  $region46: #{downblock_forward.1} parent=0 // pred_check
    _
  $region47: #{downblock_forward.1} parent=0 // pred_check_branch
    %54 = sbr.rel (0) target = $region49
  $region48: #{downblock_forward.1} parent=0 // pred_region
    _
  $region49: #{downblock_forward.1} parent=0 // pred_fallthru
    _
  // Predicated region
  $region50: #{downblock_forward.1} parent=0 // pred_check
    _
  $region51: #{downblock_forward.1} parent=0 // pred_check_branch
    %56 = sbr.rel (0) target = $region53
  $region52: #{downblock_forward.1} parent=0 // pred_region
    _
  $region53: #{downblock_forward.1} parent=0 // pred_fallthru
    _
  // Predicated region
  $region54: #{downblock_forward.1} parent=0 // pred_check
    _
  $region55: #{downblock_forward.1} parent=0 // pred_check_branch
    %58 = sbr.rel (0) target = $region57
  $region56: #{downblock_forward.1} parent=0 // pred_region
    _
  $region57: #{downblock_forward.1} parent=0 // pred_fallthru
    _
  // Predicated region
  $region58: #{downblock_forward.1} parent=0 // pred_check
    _
  $region59: #{downblock_forward.1} parent=0 // pred_check_branch
    %60 = sbr.rel (0) target = $region61
  $region60: #{downblock_forward.1} parent=0 // pred_region
    _
  $region61: #{downblock_forward.1} parent=0 // pred_fallthru
    _
  // Predicated region
  $region62: #{downblock_forward.1} parent=0 // pred_check
    _
  $region63: #{downblock_forward.1} parent=0 // pred_check_branch
    %62 = sbr.rel (0) target = $region65
  $region64: #{downblock_forward.1} parent=0 // pred_region
    _
  $region65: #{downblock_forward.1} parent=0 // pred_fallthru
    _
  // Predicated region
  $region66: #{downblock_forward.1} parent=0 // pred_check
    _
  $region67: #{downblock_forward.1} parent=0 // pred_check_branch
    %64 = sbr.rel (0) target = $region69
  $region68: #{downblock_forward.1} parent=0 // pred_region
    _
  $region69: #{downblock_forward.1} parent=0 // pred_fallthru
    _
  // Predicated region
  $region70: #{downblock_forward.1} parent=0 // pred_check
    _
  $region71: #{downblock_forward.1} parent=0 // pred_check_branch
    %66 = sbr.rel (0) target = $region73
  $region72: #{downblock_forward.1} parent=0 // pred_region
    _
  $region73: #{downblock_forward.1} parent=0 // pred_fallthru
    _
  // Predicated region
  $region74: #{downblock_forward.1} parent=0 // pred_check
    _
  $region75: #{downblock_forward.1} parent=0 // pred_check_branch
    %68 = sbr.rel (0) target = $region77
  $region76: #{downblock_forward.1} parent=0 // pred_region
    _
  $region77: #{downblock_forward.1} parent=0 // pred_fallthru
    _
  // Predicated region
  $region78: #{downblock_forward.1} parent=0 // pred_check
    _
  $region79: #{downblock_forward.1} parent=0 // pred_check_branch
    %70 = sbr.rel (0) target = $region81
  $region80: #{downblock_forward.1} parent=0 // pred_region
    _
  $region81: #{downblock_forward.1} parent=0 // pred_fallthru
    _
  // Predicated region
  $region82: #{downblock_forward.1} parent=0 // pred_check
    _
  $region83: #{downblock_forward.1} parent=0 // pred_check_branch
    %72 = sbr.rel (0) target = $region85
  $region84: #{downblock_forward.1} parent=0 // pred_region
    _
  $region85: #{downblock_forward.1} parent=0 // pred_fallthru
    _
  // Predicated region
  $region86: #{downblock_forward.1} parent=0 // pred_check
    _
  $region87: #{downblock_forward.1} parent=0 // pred_check_branch
    %74 = sbr.rel (0) target = $region89
  $region88: #{downblock_forward.1} parent=0 // pred_region
    _
  $region89: #{downblock_forward.1} parent=0 // pred_fallthru
    _
  // Predicated region
  $region90: #{downblock_forward.1} parent=0 // pred_check
    _
  $region91: #{downblock_forward.1} parent=0 // pred_check_branch
    %76 = sbr.rel (0) target = $region93
  $region92: #{downblock_forward.1} parent=0 // pred_region
    _
  $region93: #{downblock_forward.1} parent=0 // pred_fallthru
    _
  // Predicated region
  $region94: #{downblock_forward.1} parent=0 // pred_check
    _
  $region95: #{downblock_forward.1} parent=0 // pred_check_branch
    %78 = sbr.rel (0) target = $region97
  $region96: #{downblock_forward.1} parent=0 // pred_region
    _
  $region97: #{downblock_forward.1} parent=0 // pred_fallthru
    _
  %v80 = vld [vmem:[%s0] sm:$0xff]
  %v81 = vld [vmem:[%s0 + $0x8] sm:$0xff]
  %v82 = vld [vmem:[%s0 + $0x10] sm:$0xff]
  %v83 = vld [vmem:[%s0 + $0x18] sm:$0xff]
  %v84 = vld [vmem:[%s1] sm:$0x3]
  %v85 = vxor.u32 %v84, 2147483648
  %v86 = vmul.f32 %v85, 1.442695
  %v87 = vpow.pop %v86
  %v88 = vadd.f32 %v87, 1.0
  %v89 = vrcp.pop %v88
  %v90 = vmul.f32 1.0, %v89
  %v91 = vmul.f32 %v84, %v90
  %v92 = vpack.c.bf16 %v91, %v91
  %v93 = vld [vmem:[%s2] sm:$0x1]
  %v94 = vld [vmem:[%s3] sm:$0x1]
  %vm95 = vcmask 523264
  %v96 = vsel %vm95, %v80, 0.0
  %v97 = vsel %vm95, %v81, 0.0
  %v98 = vadd.f32 %v96, %v97
  %v99 = vsel %vm95, %v82, 0.0
  %v100 = vadd.f32 %v98, %v99
  %v101 = vsel %vm95, %v83, 0.0
  %v102 = vadd.f32 %v100, %v101
  %v103 = vrot.slane %v102, 4
  %v104 = vadd.f32 %v102, %v103
  %v105 = vrot.slane %v104, 2
  %v106 = vadd.f32 %v104, %v105
  %v107 = vrot.slane %v106, 1
  %v108 = vadd.f32 %v106, %v107
  %v109 = vrcp.pop 32.0
  %v110 = vmul.f32 %v108, %v109
  %v111 = vmul.f32 %v80, %v80
  %v112 = vmul.f32 %v81, %v81
  %v113 = vmul.f32 %v82, %v82
  %v114 = vmul.f32 %v83, %v83
  %v115 = vsel %vm95, %v111, 0.0
  %v116 = vsel %vm95, %v112, 0.0
  %v117 = vadd.f32 %v115, %v116
  %v118 = vsel %vm95, %v113, 0.0
  %v119 = vadd.f32 %v117, %v118
  %v120 = vsel %vm95, %v114, 0.0
  %v121 = vadd.f32 %v119, %v120
  %v122 = vrot.slane %v121, 4
  %v123 = vadd.f32 %v121, %v122
  %v124 = vrot.slane %v123, 2
  %v125 = vadd.f32 %v123, %v124
  %v126 = vrot.slane %v125, 1
  %v127 = vadd.f32 %v125, %v126
  %v128 = vmul.f32 %v127, %v109
  %vm129 = vcmask 1040384
  %v130 = vsel %vm129, %v110, %v128
  %132 = vrot.lane.b32.xlu0 %v130, 124
  %v133 = vpop.permute.xlu0 %132
  %v135 = vadd.f32 %v130, %v133
  %136 = vrot.lane.b32.xlu0 %v130, 120
  %v137 = vpop.permute.xlu0 %136
  %v139 = vadd.f32 %v135, %v137
  %140 = vrot.lane.b32.xlu0 %v130, 116
  %v141 = vpop.permute.xlu0 %140
  %v143 = vadd.f32 %v139, %v141
  %144 = vrot.lane.b32.xlu0 %v130, 112
  %v145 = vpop.permute.xlu0 %144
  %v147 = vadd.f32 %v143, %v145
  %148 = vrot.lane.b32.xlu0 %v130, 108
  %v149 = vpop.permute.xlu0 %148
  %v151 = vadd.f32 %v147, %v149
  %152 = vrot.lane.b32.xlu0 %v130, 104
  %v153 = vpop.permute.xlu0 %152
  %v155 = vadd.f32 %v151, %v153
  %156 = vrot.lane.b32.xlu0 %v130, 100
  %v157 = vpop.permute.xlu0 %156
  %v159 = vadd.f32 %v155, %v157
  %160 = vrot.lane.b32.xlu0 %v130, 96
  %v161 = vpop.permute.xlu0 %160
  %v163 = vadd.f32 %v159, %v161
  %164 = vrot.lane.b32.xlu0 %v130, 92
  %v165 = vpop.permute.xlu0 %164
  %v167 = vadd.f32 %v163, %v165
  %168 = vrot.lane.b32.xlu0 %v130, 88
  %v169 = vpop.permute.xlu0 %168
  %v171 = vadd.f32 %v167, %v169
  %172 = vrot.lane.b32.xlu0 %v130, 84
  %v173 = vpop.permute.xlu0 %172
  %v175 = vadd.f32 %v171, %v173
  %176 = vrot.lane.b32.xlu0 %v130, 80
  %v177 = vpop.permute.xlu0 %176
  %v179 = vadd.f32 %v175, %v177
  %180 = vrot.lane.b32.xlu0 %v130, 76
  %v181 = vpop.permute.xlu0 %180
  %v183 = vadd.f32 %v179, %v181
  %184 = vrot.lane.b32.xlu0 %v130, 72
  %v185 = vpop.permute.xlu0 %184
  %v187 = vadd.f32 %v183, %v185
  %188 = vrot.lane.b32.xlu0 %v130, 68
  %v189 = vpop.permute.xlu0 %188
  %v191 = vadd.f32 %v187, %v189
  %v192 = vmul.f32 %v191, 0.0625
  %194 = vrot.lane.b32.xlu0 %v192, 4
  %v195 = vpop.permute.xlu0 %194
  %197 = vrot.lane.b32.xlu0 %v192, 8
  %v198 = vpop.permute.xlu0 %197
  %200 = vrot.lane.b32.xlu0 %v192, 12
  %v201 = vpop.permute.xlu0 %200
  %203 = vrot.lane.b32.xlu0 %v192, 16
  %v204 = vpop.permute.xlu0 %203
  %206 = vrot.lane.b32.xlu0 %v192, 20
  %v207 = vpop.permute.xlu0 %206
  %209 = vrot.lane.b32.xlu0 %v192, 24
  %v210 = vpop.permute.xlu0 %209
  %212 = vrot.lane.b32.xlu0 %v192, 28
  %v213 = vpop.permute.xlu0 %212
  %215 = vrot.lane.b32.xlu0 %v192, 32
  %v216 = vpop.permute.xlu0 %215
  %218 = vrot.lane.b32.xlu0 %v192, 36
  %v219 = vpop.permute.xlu0 %218
  %221 = vrot.lane.b32.xlu0 %v192, 40
  %v222 = vpop.permute.xlu0 %221
  %224 = vrot.lane.b32.xlu0 %v192, 44
  %v225 = vpop.permute.xlu0 %224
  %227 = vrot.lane.b32.xlu0 %v192, 48
  %v228 = vpop.permute.xlu0 %227
  %230 = vrot.lane.b32.xlu0 %v192, 52
  %v231 = vpop.permute.xlu0 %230
  %233 = vrot.lane.b32.xlu0 %v192, 56
  %v234 = vpop.permute.xlu0 %233
  %236 = vrot.lane.b32.xlu0 %v192, 60
  %v237 = vpop.permute.xlu0 %236
  %vm239 = vcmask 31744
  %v240 = vsel %vm239, %v192, %v195
  %vm241 = vcmask 64512
  %v242 = vsel %vm241, %v240, %v198
  %vm243 = vcmask 97280
  %v244 = vsel %vm243, %v242, %v201
  %vm245 = vcmask 130048
  %v246 = vsel %vm245, %v244, %v204
  %vm247 = vcmask 162816
  %v248 = vsel %vm247, %v246, %v207
  %vm249 = vcmask 195584
  %v250 = vsel %vm249, %v248, %v210
  %vm251 = vcmask 228352
  %v252 = vsel %vm251, %v250, %v213
  %vm253 = vcmask 261120
  %v254 = vsel %vm253, %v252, %v216
  %vm255 = vcmask 293888
  %v256 = vsel %vm255, %v254, %v219
  %vm257 = vcmask 326656
  %v258 = vsel %vm257, %v256, %v222
  %vm259 = vcmask 359424
  %v260 = vsel %vm259, %v258, %v225
  %vm261 = vcmask 392192
  %v262 = vsel %vm261, %v260, %v228
  %vm263 = vcmask 424960
  %v264 = vsel %vm263, %v262, %v231
  %vm265 = vcmask 457728
  %v266 = vsel %vm265, %v264, %v234
  %vm267 = vcmask 490496
  %v268 = vsel %vm267, %v266, %v237
  %v269 = vmul.f32 %v268, %v268
  %v271 = vrot.slane %v269, 7
  %v273 = vsub.f32 %v268, %v271
  %v274 = vadd.f32 %v273, 1e-05
  %v275 = vrsqrt.pop %v274
  %v278 = vunpack.c.l.s4 1966171168
  %v279 = vunpack.c.0.s8 %v278
  %v280 = vlaneseq
  %v281 = vshrl.u32 %v280, 7
  %v282 = vsub.s32 %v279, %v281
  %v283 = vrot.slane %v275, %v282
  %v284 = vcombine.high %v283, %v283
  %v286 = vunpack.c.l.s4 1966171168
  %v287 = vunpack.c.0.s8 %v286
  %v288 = vlaneseq
  %v289 = vshrl.u32 %v288, 7
  %v290 = vsub.s32 %v287, %v289
  %v291 = vrot.slane %v284, %v290
  %v293 = vmul.f32 %v93, %v291
  %v294 = vmul.f32 %v268, %v293
  %v295 = vsub.f32 %v94, %v294
  %v297 = vlaneseq
  %v298 = vshrl.u32 %v297, 7
  %v299 = vsub.s32 0, %v298
  %v300 = vrot.slane %v293, %v299
  %v302 = vmul.f32 %v80, %v300
  %v303 = vmul.f32 %v81, %v300
  %v304 = vmul.f32 %v82, %v300
  %v305 = vmul.f32 %v83, %v300
  %v307 = vlaneseq
  %v308 = vshrl.u32 %v307, 7
  %v309 = vsub.s32 0, %v308
  %v310 = vrot.slane %v295, %v309
  %v312 = vadd.f32 %v302, %v310
  %v313 = vadd.f32 %v303, %v310
  %v314 = vadd.f32 %v304, %v310
  %v315 = vadd.f32 %v305, %v310
  %v316 = vxor.u32 %v312, 2147483648
  %v317 = vxor.u32 %v313, 2147483648
  %v318 = vxor.u32 %v314, 2147483648
  %v319 = vxor.u32 %v315, 2147483648
  %v320 = vmul.f32 %v316, 1.442695
  %v321 = vpow.pop %v320
  %v322 = vmul.f32 %v317, 1.442695
  %v323 = vpow.pop %v322
  %v324 = vmul.f32 %v318, 1.442695
  %v325 = vpow.pop %v324
  %v326 = vmul.f32 %v319, 1.442695
  %v327 = vpow.pop %v326
  %v328 = vadd.f32 %v321, 1.0
  %v329 = vadd.f32 %v323, 1.0
  %v330 = vadd.f32 %v325, 1.0
  %v331 = vadd.f32 %v327, 1.0
  %v332 = vrcp.pop %v328
  %v333 = vmul.f32 1.0, %v332
  %v334 = vrcp.pop %v329
  %v335 = vmul.f32 1.0, %v334
  %v336 = vrcp.pop %v330
  %v337 = vmul.f32 1.0, %v336
  %v338 = vrcp.pop %v331
  %v339 = vmul.f32 1.0, %v338
  %v340 = vmul.f32 %v312, %v333
  %v341 = vmul.f32 %v313, %v335
  %v342 = vmul.f32 %v314, %v337
  %v343 = vmul.f32 %v315, %v339
  %v344 = vlaneseq
  %v345 = vshrl.u32 %v344, 7
  %v346 = vadd.s32 %v345, 8
  %v347 = vadd.s32 %v345, 16
  %v348 = vadd.s32 %v345, 24
  %vm349 = vcmp.lt.s32.totalorder %v345, 0
  %v350 = vsub.s32 0, %v345
  %v351 = vsel %vm349, %v350, %v345
  %v352 = vshrl.u32 %v351, 4
  %v353 = vand.u32 %v351, 15
  %v354 = vsub.s32 0, %v353
  %v355 = vsel %vm349, %v354, %v353
  %vm356 = vcmp.lt.s32.totalorder %v346, 0
  %v357 = vsub.s32 0, %v346
  %v358 = vsel %vm356, %v357, %v346
  %v359 = vshrl.u32 %v358, 4
  %v360 = vand.u32 %v358, 15
  %v361 = vsub.s32 0, %v360
  %v362 = vsel %vm356, %v361, %v360
  %vm363 = vcmp.lt.s32.totalorder %v347, 0
  %v364 = vsub.s32 0, %v347
  %v365 = vsel %vm363, %v364, %v347
  %v366 = vshrl.u32 %v365, 4
  %v367 = vand.u32 %v365, 15
  %v368 = vsub.s32 0, %v367
  %v369 = vsel %vm363, %v368, %v367
  %vm370 = vcmp.lt.s32.totalorder %v348, 0
  %v371 = vsub.s32 0, %v348
  %v372 = vsel %vm370, %v371, %v348
  %v373 = vshrl.u32 %v372, 4
  %v374 = vand.u32 %v372, 15
  %v375 = vsub.s32 0, %v374
  %v376 = vsel %vm370, %v375, %v374
  %vm377 = vcmp.ne.s32.totalorder %v355, 0
  %vm378 = vcmp.ne.s32.totalorder %v362, 0
  %vm379 = vcmp.ne.s32.totalorder %v369, 0
  %vm380 = vcmp.ne.s32.totalorder %v376, 0
  %vm381 = vcmp.lt.s32.totalorder %v355, 0
  %vm382 = vcmp.lt.s32.totalorder %v362, 0
  %vm383 = vcmp.lt.s32.totalorder %v369, 0
  %vm384 = vcmp.lt.s32.totalorder %v376, 0
  %vm385 = vmand %vm381, %vm377
  %vm386 = vmand %vm382, %vm378
  %vm387 = vmand %vm383, %vm379
  %vm388 = vmand %vm384, %vm380
  %v389 = vadd.s32 %v355, 16
  %v390 = vadd.s32 %v362, 16
  %v391 = vadd.s32 %v369, 16
  %v392 = vadd.s32 %v376, 16
  %v393 = vsel %vm385, %v389, %v355
  %v394 = vsel %vm386, %v390, %v362
  %v395 = vsel %vm387, %v391, %v369
  %v396 = vsel %vm388, %v392, %v376
  %v397 = vrot.slane %v340, 7
  %v398 = vrot.slane %v341, 7
  %v399 = vrot.slane %v342, 7
  %v400 = vrot.slane %v343, 7
  %vm401 = vcmp.lt.s32.totalorder %v345, 1
  %v402 = vsel %vm401, %v399, %v400
  %v403 = vsel %vm401, %v398, %v399
  %v404 = vsel %vm401, %v397, %v398
  %v405 = vsel %vm401, %v400, %v397
  %vm406 = vcmp.ne.s32.totalorder %v393, 0
  %vm407 = vcmp.ne.s32.totalorder %v394, 0
  %vm408 = vcmp.ne.s32.totalorder %v395, 0
  %vm409 = vcmp.ne.s32.totalorder %v396, 0
  %v410 = vsel %vm406, 1, 0
  %v411 = vsel %vm407, 1, 0
  %v412 = vsel %vm408, 1, 0
  %v413 = vsel %vm409, 1, 0
  %v414 = vcvt.s32.f32 %v410
  %v415 = vcvt.s32.f32 %v411
  %v416 = vcvt.s32.f32 %v412
  %v417 = vcvt.s32.f32 %v413
  %v418 = vmul.f32 %v405, %v414
  %v419 = vmul.f32 %v404, %v415
  %v420 = vmul.f32 %v403, %v416
  %v421 = vmul.f32 %v402, %v417
  %v422 = vrot.slane %v340, 1
  %v423 = vrot.slane %v341, 1
  %v424 = vrot.slane %v342, 1
  %v425 = vrot.slane %v343, 1
  %vm426 = vcmp.lt.s32.totalorder %v345, 7
  %v427 = vsel %vm426, %v424, %v425
  %v428 = vsel %vm426, %v423, %v424
  %v429 = vsel %vm426, %v422, %v423
  %v430 = vsel %vm426, %v425, %v422
  %vm431 = vcmp.ne.s32.totalorder %v393, 15
  %vm432 = vcmp.ne.s32.totalorder %v394, 15
  %vm433 = vcmp.ne.s32.totalorder %v395, 15
  %vm434 = vcmp.ne.s32.totalorder %v396, 15
  %v435 = vsel %vm431, 1, 0
  %v436 = vsel %vm432, 1, 0
  %v437 = vsel %vm433, 1, 0
  %v438 = vsel %vm434, 1, 0
  %v439 = vcvt.s32.f32 %v435
  %v440 = vcvt.s32.f32 %v436
  %v441 = vcvt.s32.f32 %v437
  %v442 = vcvt.s32.f32 %v438
  %v443 = vmul.f32 %v429, %v439
  %v444 = vmul.f32 %v428, %v440
  %v445 = vmul.f32 %v427, %v441
  %v446 = vmul.f32 %v430, %v442
  %v447 = vpack.c.bf16 %v419, %v418
  %v448 = vpack.c.bf16 %v421, %v420
  %v449 = vld [vmem:[%s4] sm:$0xf]
  %v450 = vld [vmem:[%s4 + $0x4] sm:$0xf]
  %v451 = vld [vmem:[%s4 + $0x8] sm:$0xf]
  %v452 = vld [vmem:[%s4 + $0xc] sm:$0xf]
  %v453 = vld [vmem:[%s4 + $0x10] sm:$0xf]
  %v454 = vld [vmem:[%s4 + $0x14] sm:$0xf]
  %v455 = vld [vmem:[%s4 + $0x18] sm:$0xf]
  %v456 = vld [vmem:[%s4 + $0x1c] sm:$0xf]
  %v457 = vpack.c.bf16 %v341, %v340
  %v458 = vpack.c.bf16 %v343, %v342
  %s459 = scalar_lea.vmem %s4, 32
  %v460 = vld [vmem:[%s459] sm:$0xf]
  %v461 = vld [vmem:[%s459 + $0x4] sm:$0xf]
  %v462 = vld [vmem:[%s459 + $0x8] sm:$0xf]
  %v463 = vld [vmem:[%s459 + $0xc] sm:$0xf]
  %v464 = vld [vmem:[%s459 + $0x10] sm:$0xf]
  %v465 = vld [vmem:[%s459 + $0x14] sm:$0xf]
  %v466 = vld [vmem:[%s459 + $0x18] sm:$0xf]
  %v467 = vld [vmem:[%s459 + $0x1c] sm:$0xf]
  %v476 = vunpack.c.l.b16 %v460
  %v477 = vunpack.c.l.b16 %v461
  %v478 = vunpack.c.l.b16 %v462
  %v479 = vunpack.c.l.b16 %v463
  %v480 = vunpack.c.l.b16 %v464
  %v481 = vunpack.c.l.b16 %v465
  %v482 = vunpack.c.l.b16 %v466
  %v483 = vunpack.c.l.b16 %v467
  %v484 = vpack.c.b16 %v477, %v476
  %v485 = vpack.c.b16 %v479, %v478
  %v486 = vpack.c.b16 %v481, %v480
  %v487 = vpack.c.b16 %v483, %v482
  %v493 = vsel %vm95, %v457, 0
  %v496 = vsel %vm95, %v458, 0
  %498 = vmatprep.subr.bf16.mxu0 0
  %499 = vmatpush1.bf16.msra.mxu0 0
  %500 = vmatprep.subr.bf16.mxu0 0
  %501 = vmatpush1.bf16.msra.mxu0 0
  %502 = vmatprep.subr.bf16.mxu0 0
  %503 = vmatpush1.bf16.msra.mxu0 0
  %504 = vmatprep.subr.bf16.mxu0 0
  %505 = vmatpush1.bf16.msra.mxu0 0
  %506 = vmatprep.subr.bf16.mxu0 0
  %507 = vmatpush1.bf16.msra.mxu0 %v487
  %508 = vmatprep.subr.bf16.mxu0 0
  %509 = vmatpush1.bf16.msra.mxu0 %v486
  %510 = vmatprep.subr.bf16.mxu0 0
  %511 = vmatpush1.bf16.msra.mxu0 %v485
  %512 = vmatprep.subr.bf16.mxu0 0
  %513 = vmatpush1.bf16.msra.mxu0 %v484
  %514 = vmatprep.subr.bf16.mxu0 0
  %515 = vmatpush2.bf16.msra.mxu0 0
  %516 = vmatprep.subr.bf16.mxu0 0
  %517 = vmatpush2.bf16.msra.mxu0 0
  %518 = vmatprep.subr.bf16.mxu0 0
  %519 = vmatpush2.bf16.msra.mxu0 0
  %520 = vmatprep.subr.bf16.mxu0 0
  %521 = vmatpush2.bf16.msra.mxu0 0
  %522 = vmatprep.subr.bf16.mxu0 0
  %523 = vmatpush2.bf16.msra.mxu0 0
  %524 = vmatprep.subr.bf16.mxu0 0
  %525 = vmatpush2.bf16.msra.mxu0 0
  %526 = vmatprep.subr.bf16.mxu0 0
  %527 = vmatpush2.bf16.msra.mxu0 0
  %528 = vmatprep.subr.bf16.mxu0 0
  %529 = vmatpush2.bf16.msra.mxu0 0
  %530 = vmatprep.mubr.bf16.mxu0 0
  %531 = vmatmul.mubr.bf16.gmra.mxu0 %v493
  %v532 = vpop.f32.mrf.mxu0
  %v533 = vadd.f32 0.0, %v532
  %v534 = vpop.f32.mrf.mxu0
  %v535 = vpop.f32.mrf.mxu0
  %v536 = vadd.f32 0.0, %v535
  %v537 = vpop.f32.mrf.mxu0
  %538 = vmatprep.mubr.bf16.mxu0 0
  %539 = vmatmul.mubr.bf16.gmra.mxu0 %v496
  %v540 = vpop.f32.mrf.mxu0
  %v541 = vadd.f32 0.0, %v540
  %v542 = vpop.f32.mrf.mxu0
  %v543 = vpop.f32.mrf.mxu0
  %v544 = vadd.f32 0.0, %v543
  %v545 = vpop.f32.mrf.mxu0
  %546 = vdwg.mxu0
  %v555 = vunpack.c.l.b16 %v449
  %v556 = vunpack.c.l.b16 %v450
  %v557 = vunpack.c.l.b16 %v451
  %v558 = vunpack.c.l.b16 %v452
  %v559 = vunpack.c.l.b16 %v453
  %v560 = vunpack.c.l.b16 %v454
  %v561 = vunpack.c.l.b16 %v455
  %v562 = vunpack.c.l.b16 %v456
  %v563 = vpack.c.b16 %v556, %v555
  %v564 = vpack.c.b16 %v558, %v557
  %v565 = vpack.c.b16 %v560, %v559
  %v566 = vpack.c.b16 %v562, %v561
  %v572 = vsel %vm95, %v447, 0
  %v575 = vsel %vm95, %v448, 0
  %577 = vmatprep.subr.bf16.mxu0 0
  %578 = vmatpush1.bf16.msra.mxu0 0
  %579 = vmatprep.subr.bf16.mxu0 0
  %580 = vmatpush1.bf16.msra.mxu0 0
  %581 = vmatprep.subr.bf16.mxu0 0
  %582 = vmatpush1.bf16.msra.mxu0 0
  %583 = vmatprep.subr.bf16.mxu0 0
  %584 = vmatpush1.bf16.msra.mxu0 0
  %585 = vmatprep.subr.bf16.mxu0 0
  %586 = vmatpush1.bf16.msra.mxu0 %v566
  %587 = vmatprep.subr.bf16.mxu0 0
  %588 = vmatpush1.bf16.msra.mxu0 %v565
  %589 = vmatprep.subr.bf16.mxu0 0
  %590 = vmatpush1.bf16.msra.mxu0 %v564
  %591 = vmatprep.subr.bf16.mxu0 0
  %592 = vmatpush1.bf16.msra.mxu0 %v563
  %593 = vmatprep.subr.bf16.mxu0 0
  %594 = vmatpush2.bf16.msra.mxu0 0
  %595 = vmatprep.subr.bf16.mxu0 0
  %596 = vmatpush2.bf16.msra.mxu0 0
  %597 = vmatprep.subr.bf16.mxu0 0
  %598 = vmatpush2.bf16.msra.mxu0 0
  %599 = vmatprep.subr.bf16.mxu0 0
  %600 = vmatpush2.bf16.msra.mxu0 0
  %601 = vmatprep.subr.bf16.mxu0 0
  %602 = vmatpush2.bf16.msra.mxu0 0
  %603 = vmatprep.subr.bf16.mxu0 0
  %604 = vmatpush2.bf16.msra.mxu0 0
  %605 = vmatprep.subr.bf16.mxu0 0
  %606 = vmatpush2.bf16.msra.mxu0 0
  %607 = vmatprep.subr.bf16.mxu0 0
  %608 = vmatpush2.bf16.msra.mxu0 0
  %609 = vmatprep.mubr.bf16.mxu0 0
  %610 = vmatmul.mubr.bf16.gmra.mxu0 %v572
  %v611 = vpop.f32.mrf.mxu0
  %v612 = vadd.f32 %v533, %v611
  %v613 = vpop.f32.mrf.mxu0
  %v614 = vpop.f32.mrf.mxu0
  %v615 = vadd.f32 %v536, %v614
  %v616 = vpop.f32.mrf.mxu0
  %617 = vmatprep.mubr.bf16.mxu0 0
  %618 = vmatmul.mubr.bf16.gmra.mxu0 %v575
  %v619 = vpop.f32.mrf.mxu0
  %v620 = vadd.f32 %v541, %v619
  %v621 = vpop.f32.mrf.mxu0
  %v622 = vpop.f32.mrf.mxu0
  %v623 = vadd.f32 %v544, %v622
  %v624 = vpop.f32.mrf.mxu0
  %625 = vdwg.mxu0
  %v626 = vpack.c.bf16 %v444, %v443
  %v627 = vpack.c.bf16 %v446, %v445
  %s628 = scalar_lea.vmem %s4, 64
  %v629 = vld [vmem:[%s628] sm:$0xf]
  %v630 = vld [vmem:[%s628 + $0x4] sm:$0xf]
  %v631 = vld [vmem:[%s628 + $0x8] sm:$0xf]
  %v632 = vld [vmem:[%s628 + $0xc] sm:$0xf]
  %v633 = vld [vmem:[%s628 + $0x10] sm:$0xf]
  %v634 = vld [vmem:[%s628 + $0x14] sm:$0xf]
  %v635 = vld [vmem:[%s628 + $0x18] sm:$0xf]
  %v636 = vld [vmem:[%s628 + $0x1c] sm:$0xf]
  %v645 = vunpack.c.l.b16 %v629
  %v646 = vunpack.c.l.b16 %v630
  %v647 = vunpack.c.l.b16 %v631
  %v648 = vunpack.c.l.b16 %v632
  %v649 = vunpack.c.l.b16 %v633
  %v650 = vunpack.c.l.b16 %v634
  %v651 = vunpack.c.l.b16 %v635
  %v652 = vunpack.c.l.b16 %v636
  %v653 = vpack.c.b16 %v646, %v645
  %v654 = vpack.c.b16 %v648, %v647
  %v655 = vpack.c.b16 %v650, %v649
  %v656 = vpack.c.b16 %v652, %v651
  %v662 = vsel %vm95, %v626, 0
  %v665 = vsel %vm95, %v627, 0
  %667 = vmatprep.subr.bf16.mxu0 0
  %668 = vmatpush1.bf16.msra.mxu0 0
  %669 = vmatprep.subr.bf16.mxu0 0
  %670 = vmatpush1.bf16.msra.mxu0 0
  %671 = vmatprep.subr.bf16.mxu0 0
  %672 = vmatpush1.bf16.msra.mxu0 0
  %673 = vmatprep.subr.bf16.mxu0 0
  %674 = vmatpush1.bf16.msra.mxu0 0
  %675 = vmatprep.subr.bf16.mxu0 0
  %676 = vmatpush1.bf16.msra.mxu0 %v656
  %677 = vmatprep.subr.bf16.mxu0 0
  %678 = vmatpush1.bf16.msra.mxu0 %v655
  %679 = vmatprep.subr.bf16.mxu0 0
  %680 = vmatpush1.bf16.msra.mxu0 %v654
  %681 = vmatprep.subr.bf16.mxu0 0
  %682 = vmatpush1.bf16.msra.mxu0 %v653
  %683 = vmatprep.subr.bf16.mxu0 0
  %684 = vmatpush2.bf16.msra.mxu0 0
  %685 = vmatprep.subr.bf16.mxu0 0
  %686 = vmatpush2.bf16.msra.mxu0 0
  %687 = vmatprep.subr.bf16.mxu0 0
  %688 = vmatpush2.bf16.msra.mxu0 0
  %689 = vmatprep.subr.bf16.mxu0 0
  %690 = vmatpush2.bf16.msra.mxu0 0
  %691 = vmatprep.subr.bf16.mxu0 0
  %692 = vmatpush2.bf16.msra.mxu0 0
  %693 = vmatprep.subr.bf16.mxu0 0
  %694 = vmatpush2.bf16.msra.mxu0 0
  %695 = vmatprep.subr.bf16.mxu0 0
  %696 = vmatpush2.bf16.msra.mxu0 0
  %697 = vmatprep.subr.bf16.mxu0 0
  %698 = vmatpush2.bf16.msra.mxu0 0
  %699 = vmatprep.mubr.bf16.mxu0 0
  %700 = vmatmul.mubr.bf16.gmra.mxu0 %v662
  %v701 = vpop.f32.mrf.mxu0
  %v702 = vadd.f32 0.0, %v701
  %v703 = vpop.f32.mrf.mxu0
  %v704 = vpop.f32.mrf.mxu0
  %v705 = vadd.f32 0.0, %v704
  %v706 = vpop.f32.mrf.mxu0
  %707 = vmatprep.mubr.bf16.mxu0 0
  %708 = vmatmul.mubr.bf16.gmra.mxu0 %v665
  %v709 = vpop.f32.mrf.mxu0
  %v710 = vadd.f32 0.0, %v709
  %v711 = vpop.f32.mrf.mxu0
  %v712 = vpop.f32.mrf.mxu0
  %v713 = vadd.f32 0.0, %v712
  %v714 = vpop.f32.mrf.mxu0
  %715 = vdwg.mxu0
  %v716 = vadd.f32 %v612, %v702
  %v717 = vadd.f32 %v615, %v705
  %v718 = vadd.f32 %v620, %v710
  %v719 = vadd.f32 %v623, %v713
  %v720 = vld [vmem:[%s5] sm:$0x1]
  %v722 = vlaneseq
  %v723 = vshrl.u32 %v722, 7
  %v724 = vsub.s32 0, %v723
  %v725 = vrot.slane %v720, %v724
  %v727 = vadd.f32 %v716, %v725
  %v728 = vadd.f32 %v717, %v725
  %v729 = vadd.f32 %v718, %v725
  %v730 = vadd.f32 %v719, %v725
  %v731 = vld [vmem:[%s6] sm:$0xf]
  %v732 = vld [vmem:[%s6 + $0x4] sm:$0xf]
  %v733 = vld [vmem:[%s6 + $0x8] sm:$0xf]
  %v734 = vld [vmem:[%s6 + $0xc] sm:$0xf]
  %v735 = vld [vmem:[%s7] sm:$0x1]
  %v737 = vlaneseq
  %v738 = vshrl.u32 %v737, 7
  %v739 = vsub.s32 0, %v738
  %v740 = vrot.slane %v735, %v739
  %v746 = vunpack.c.l.b16 %v731
  %v747 = vunpack.c.l.b16 %v732
  %v748 = vunpack.c.l.b16 %v733
  %v749 = vunpack.c.l.b16 %v734
  %v750 = vpack.c.b16 %v747, %v746
  %v751 = vpack.c.b16 %v749, %v748
  %v755 = vsel %vm253, %v92, 0
  %757 = vmatprep.subr.bf16.mxu0 0
  %758 = vmatpush1.bf16.msra.mxu0 0
  %759 = vmatprep.subr.bf16.mxu0 0
  %760 = vmatpush1.bf16.msra.mxu0 0
  %761 = vmatprep.subr.bf16.mxu0 0
  %762 = vmatpush1.bf16.msra.mxu0 0
  %763 = vmatprep.subr.bf16.mxu0 0
  %764 = vmatpush1.bf16.msra.mxu0 0
  %765 = vmatprep.subr.bf16.mxu0 0
  %766 = vmatpush1.bf16.msra.mxu0 0
  %767 = vmatprep.subr.bf16.mxu0 0
  %768 = vmatpush1.bf16.msra.mxu0 0
  %769 = vmatprep.subr.bf16.mxu0 0
  %770 = vmatpush1.bf16.msra.mxu0 %v751
  %771 = vmatprep.subr.bf16.mxu0 0
  %772 = vmatpush1.bf16.msra.mxu0 %v750
  %773 = vmatprep.subr.bf16.mxu0 0
  %774 = vmatpush2.bf16.msra.mxu0 0
  %775 = vmatprep.subr.bf16.mxu0 0
  %776 = vmatpush2.bf16.msra.mxu0 0
  %777 = vmatprep.subr.bf16.mxu0 0
  %778 = vmatpush2.bf16.msra.mxu0 0
  %779 = vmatprep.subr.bf16.mxu0 0
  %780 = vmatpush2.bf16.msra.mxu0 0
  %781 = vmatprep.subr.bf16.mxu0 0
  %782 = vmatpush2.bf16.msra.mxu0 0
  %783 = vmatprep.subr.bf16.mxu0 0
  %784 = vmatpush2.bf16.msra.mxu0 0
  %785 = vmatprep.subr.bf16.mxu0 0
  %786 = vmatpush2.bf16.msra.mxu0 0
  %787 = vmatprep.subr.bf16.mxu0 0
  %788 = vmatpush2.bf16.msra.mxu0 0
  %789 = vmatprep.mubr.bf16.mxu0 0
  %790 = vmatmul.mubr.bf16.gmra.mxu0 %v755
  %v791 = vpop.f32.mrf.mxu0
  %v792 = vadd.f32 %v740, %v791
  %v793 = vpop.f32.mrf.mxu0
  %v794 = vpop.f32.mrf.mxu0
  %v795 = vpop.f32.mrf.mxu0
  %796 = vdwg.mxu0
  %798 = vrot.lane.b32.xlu0 %v792, 8
  %v799 = vpop.permute.xlu0 %798
  %801 = vrot.lane.b32.xlu0 %v792, 16
  %v802 = vpop.permute.xlu0 %801
  %804 = vrot.lane.b32.xlu0 %v792, 24
  %v805 = vpop.permute.xlu0 %804
  %807 = vrot.lane.b32.xlu0 %v792, 32
  %v808 = vpop.permute.xlu0 %807
  %810 = vrot.lane.b32.xlu0 %v792, 40
  %v811 = vpop.permute.xlu0 %810
  %813 = vrot.lane.b32.xlu0 %v792, 48
  %v814 = vpop.permute.xlu0 %813
  %816 = vrot.lane.b32.xlu0 %v792, 56
  %v817 = vpop.permute.xlu0 %816
  %819 = vrot.lane.b32.xlu0 %v792, 64
  %v820 = vpop.permute.xlu0 %819
  %822 = vrot.lane.b32.xlu0 %v792, 72
  %v823 = vpop.permute.xlu0 %822
  %825 = vrot.lane.b32.xlu0 %v792, 80
  %v826 = vpop.permute.xlu0 %825
  %828 = vrot.lane.b32.xlu0 %v792, 88
  %v829 = vpop.permute.xlu0 %828
  %831 = vrot.lane.b32.xlu0 %v792, 96
  %v832 = vpop.permute.xlu0 %831
  %834 = vrot.lane.b32.xlu0 %v792, 104
  %v835 = vpop.permute.xlu0 %834
  %837 = vrot.lane.b32.xlu0 %v792, 112
  %v838 = vpop.permute.xlu0 %837
  %840 = vrot.lane.b32.xlu0 %v792, 120
  %v841 = vpop.permute.xlu0 %840
  %v843 = vsel %vm241, %v792, %v799
  %v844 = vsel %vm245, %v843, %v802
  %v845 = vsel %vm249, %v844, %v805
  %v846 = vsel %vm253, %v845, %v808
  %v847 = vsel %vm257, %v846, %v811
  %v848 = vsel %vm261, %v847, %v814
  %v849 = vsel %vm265, %v848, %v817
  %v850 = vsel %vm95, %v849, %v820
  %vm851 = vcmask 588800
  %v852 = vsel %vm851, %v850, %v823
  %vm853 = vcmask 654336
  %v854 = vsel %vm853, %v852, %v826
  %vm855 = vcmask 719872
  %v856 = vsel %vm855, %v854, %v829
  %vm857 = vcmask 785408
  %v858 = vsel %vm857, %v856, %v832
  %vm859 = vcmask 850944
  %v860 = vsel %vm859, %v858, %v835
  %vm861 = vcmask 916480
  %v862 = vsel %vm861, %v860, %v838
  %vm863 = vcmask 982016
  %v864 = vsel %vm863, %v862, %v841
  %v867 = vunpack.c.l.s4 1966171168
  %v868 = vunpack.c.0.s8 %v867
  %v869 = vlaneseq
  %v870 = vshrl.u32 %v869, 7
  %v871 = vsub.s32 %v868, %v870
  %v872 = vrot.slane %v864, %v871
  %v873 = vcombine.high %v872, %v872
  %v875 = vunpack.c.l.s4 1966171168
  %v876 = vunpack.c.0.s8 %v875
  %v877 = vlaneseq
  %v878 = vshrl.u32 %v877, 7
  %v879 = vsub.s32 %v876, %v878
  %v880 = vrot.slane %v872, %v879
  %v882 = vunpack.c.l.s4 1966171168
  %v883 = vunpack.c.0.s8 %v882
  %v884 = vlaneseq
  %v885 = vshrl.u32 %v884, 7
  %v886 = vsub.s32 %v883, %v885
  %v887 = vrot.slane %v873, %v886
  %v888 = vlaneseq
  %v889 = vshrl.u32 %v888, 7
  %v890 = vsub.s32 0, %v889
  %v891 = vrot.slane %v880, %v890
  %v892 = vlaneseq
  %v893 = vshrl.u32 %v892, 7
  %v894 = vsub.s32 0, %v893
  %v895 = vrot.slane %v887, %v894
  %v898 = vadd.f32 %v727, %v891
  %v899 = vadd.f32 %v728, %v891
  %v900 = vadd.f32 %v729, %v895
  %v901 = vadd.f32 %v730, %v895
  %v902 = vld [vmem:[%s8] sm:$0x1]
  %v903 = vld [vmem:[%s9] sm:$0x1]
  %v904 = vadd.f32 %v898, %v899
  %v905 = vadd.f32 %v904, %v900
  %v906 = vadd.f32 %v905, %v901
  %v907 = vrot.slane %v906, 4
  %v908 = vadd.f32 %v906, %v907
  %v909 = vrot.slane %v908, 2
  %v910 = vadd.f32 %v908, %v909
  %v911 = vrot.slane %v910, 1
  %v912 = vadd.f32 %v910, %v911
  %v913 = vmul.f32 %v912, %v109
  %v914 = vmul.f32 %v898, %v898
  %v915 = vmul.f32 %v899, %v899
  %v916 = vmul.f32 %v900, %v900
  %v917 = vmul.f32 %v901, %v901
  %v918 = vadd.f32 %v914, %v915
  %v919 = vadd.f32 %v918, %v916
  %v920 = vadd.f32 %v919, %v917
  %v921 = vrot.slane %v920, 4
  %v922 = vadd.f32 %v920, %v921
  %v923 = vrot.slane %v922, 2
  %v924 = vadd.f32 %v922, %v923
  %v925 = vrot.slane %v924, 1
  %v926 = vadd.f32 %v924, %v925
  %v927 = vmul.f32 %v926, %v109
  %v928 = vsel %vm129, %v913, %v927
  %930 = vrot.lane.b32.xlu0 %v928, 120
  %v931 = vpop.permute.xlu0 %930
  %v933 = vadd.f32 %v928, %v931
  %934 = vrot.lane.b32.xlu0 %v928, 112
  %v935 = vpop.permute.xlu0 %934
  %v937 = vadd.f32 %v933, %v935
  %938 = vrot.lane.b32.xlu0 %v928, 104
  %v939 = vpop.permute.xlu0 %938
  %v941 = vadd.f32 %v937, %v939
  %942 = vrot.lane.b32.xlu0 %v928, 96
  %v943 = vpop.permute.xlu0 %942
  %v945 = vadd.f32 %v941, %v943
  %946 = vrot.lane.b32.xlu0 %v928, 88
  %v947 = vpop.permute.xlu0 %946
  %v949 = vadd.f32 %v945, %v947
  %950 = vrot.lane.b32.xlu0 %v928, 80
  %v951 = vpop.permute.xlu0 %950
  %v953 = vadd.f32 %v949, %v951
  %954 = vrot.lane.b32.xlu0 %v928, 72
  %v955 = vpop.permute.xlu0 %954
  %v957 = vadd.f32 %v953, %v955
  %958 = vrot.lane.b32.xlu0 %v928, 64
  %v959 = vpop.permute.xlu0 %958
  %v961 = vadd.f32 %v957, %v959
  %962 = vrot.lane.b32.xlu0 %v928, 56
  %v963 = vpop.permute.xlu0 %962
  %v965 = vadd.f32 %v961, %v963
  %966 = vrot.lane.b32.xlu0 %v928, 48
  %v967 = vpop.permute.xlu0 %966
  %v969 = vadd.f32 %v965, %v967
  %970 = vrot.lane.b32.xlu0 %v928, 40
  %v971 = vpop.permute.xlu0 %970
  %v973 = vadd.f32 %v969, %v971
  %974 = vrot.lane.b32.xlu0 %v928, 32
  %v975 = vpop.permute.xlu0 %974
  %v977 = vadd.f32 %v973, %v975
  %978 = vrot.lane.b32.xlu0 %v928, 24
  %v979 = vpop.permute.xlu0 %978
  %v981 = vadd.f32 %v977, %v979
  %982 = vrot.lane.b32.xlu0 %v928, 16
  %v983 = vpop.permute.xlu0 %982
  %v985 = vadd.f32 %v981, %v983
  %986 = vrot.lane.b32.xlu0 %v928, 8
  %v987 = vpop.permute.xlu0 %986
  %v989 = vadd.f32 %v985, %v987
  %v990 = vmul.f32 %v989, 0.0625
  %992 = vrot.lane.b32.xlu0 %v990, 8
  %v993 = vpop.permute.xlu0 %992
  %995 = vrot.lane.b32.xlu0 %v990, 16
  %v996 = vpop.permute.xlu0 %995
  %998 = vrot.lane.b32.xlu0 %v990, 24
  %v999 = vpop.permute.xlu0 %998
  %1001 = vrot.lane.b32.xlu0 %v990, 32
  %v1002 = vpop.permute.xlu0 %1001
  %1004 = vrot.lane.b32.xlu0 %v990, 40
  %v1005 = vpop.permute.xlu0 %1004
  %1007 = vrot.lane.b32.xlu0 %v990, 48
  %v1008 = vpop.permute.xlu0 %1007
  %1010 = vrot.lane.b32.xlu0 %v990, 56
  %v1011 = vpop.permute.xlu0 %1010
  %1013 = vrot.lane.b32.xlu0 %v990, 64
  %v1014 = vpop.permute.xlu0 %1013
  %1016 = vrot.lane.b32.xlu0 %v990, 72
  %v1017 = vpop.permute.xlu0 %1016
  %1019 = vrot.lane.b32.xlu0 %v990, 80
  %v1020 = vpop.permute.xlu0 %1019
  %1022 = vrot.lane.b32.xlu0 %v990, 88
  %v1023 = vpop.permute.xlu0 %1022
  %1025 = vrot.lane.b32.xlu0 %v990, 96
  %v1026 = vpop.permute.xlu0 %1025
  %1028 = vrot.lane.b32.xlu0 %v990, 104
  %v1029 = vpop.permute.xlu0 %1028
  %1031 = vrot.lane.b32.xlu0 %v990, 112
  %v1032 = vpop.permute.xlu0 %1031
  %1034 = vrot.lane.b32.xlu0 %v990, 120
  %v1035 = vpop.permute.xlu0 %1034
  %v1037 = vsel %vm241, %v990, %v993
  %v1038 = vsel %vm245, %v1037, %v996
  %v1039 = vsel %vm249, %v1038, %v999
  %v1040 = vsel %vm253, %v1039, %v1002
  %v1041 = vsel %vm257, %v1040, %v1005
  %v1042 = vsel %vm261, %v1041, %v1008
  %v1043 = vsel %vm265, %v1042, %v1011
  %v1044 = vsel %vm95, %v1043, %v1014
  %v1045 = vsel %vm851, %v1044, %v1017
  %v1046 = vsel %vm853, %v1045, %v1020
  %v1047 = vsel %vm855, %v1046, %v1023
  %v1048 = vsel %vm857, %v1047, %v1026
  %v1049 = vsel %vm859, %v1048, %v1029
  %v1050 = vsel %vm861, %v1049, %v1032
  %v1051 = vsel %vm863, %v1050, %v1035
  %v1052 = vmul.f32 %v1051, %v1051
  %v1054 = vrot.slane %v1052, 7
  %v1056 = vsub.f32 %v1051, %v1054
  %v1057 = vadd.f32 %v1056, 1e-05
  %v1058 = vrsqrt.pop %v1057
  %v1061 = vunpack.c.l.s4 1966171168
  %v1062 = vunpack.c.0.s8 %v1061
  %v1063 = vlaneseq
  %v1064 = vshrl.u32 %v1063, 7
  %v1065 = vsub.s32 %v1062, %v1064
  %v1066 = vrot.slane %v1058, %v1065
  %v1067 = vcombine.high %v1066, %v1066
  %v1069 = vunpack.c.l.s4 1966171168
  %v1070 = vunpack.c.0.s8 %v1069
  %v1071 = vlaneseq
  %v1072 = vshrl.u32 %v1071, 7
  %v1073 = vsub.s32 %v1070, %v1072
  %v1074 = vrot.slane %v1067, %v1073
  %v1076 = vmul.f32 %v902, %v1074
  %v1077 = vmul.f32 %v1051, %v1076
  %v1078 = vsub.f32 %v903, %v1077
  %v1080 = vlaneseq
  %v1081 = vshrl.u32 %v1080, 7
  %v1082 = vsub.s32 0, %v1081
  %v1083 = vrot.slane %v1076, %v1082
  %v1085 = vmul.f32 %v898, %v1083
  %v1086 = vmul.f32 %v899, %v1083
  %v1087 = vmul.f32 %v900, %v1083
  %v1088 = vmul.f32 %v901, %v1083
  %v1090 = vlaneseq
  %v1091 = vshrl.u32 %v1090, 7
  %v1092 = vsub.s32 0, %v1091
  %v1093 = vrot.slane %v1078, %v1092
  %v1095 = vadd.f32 %v1085, %v1093
  %v1096 = vadd.f32 %v1086, %v1093
  %v1097 = vadd.f32 %v1087, %v1093
  %v1098 = vadd.f32 %v1088, %v1093
  %v1099 = vxor.u32 %v1095, 2147483648
  %v1100 = vxor.u32 %v1096, 2147483648
  %v1101 = vxor.u32 %v1097, 2147483648
  %v1102 = vxor.u32 %v1098, 2147483648
  %v1103 = vmul.f32 %v1099, 1.442695
  %v1104 = vpow.pop %v1103
  %v1105 = vmul.f32 %v1100, 1.442695
  %v1106 = vpow.pop %v1105
  %v1107 = vmul.f32 %v1101, 1.442695
  %v1108 = vpow.pop %v1107
  %v1109 = vmul.f32 %v1102, 1.442695
  %v1110 = vpow.pop %v1109
  %v1111 = vadd.f32 %v1104, 1.0
  %v1112 = vadd.f32 %v1106, 1.0
  %v1113 = vadd.f32 %v1108, 1.0
  %v1114 = vadd.f32 %v1110, 1.0
  %v1115 = vrcp.pop %v1111
  %v1116 = vmul.f32 1.0, %v1115
  %v1117 = vrcp.pop %v1112
  %v1118 = vmul.f32 1.0, %v1117
  %v1119 = vrcp.pop %v1113
  %v1120 = vmul.f32 1.0, %v1119
  %v1121 = vrcp.pop %v1114
  %v1122 = vmul.f32 1.0, %v1121
  %v1123 = vmul.f32 %v1095, %v1116
  %v1124 = vmul.f32 %v1096, %v1118
  %v1125 = vmul.f32 %v1097, %v1120
  %v1126 = vmul.f32 %v1098, %v1122
  %v1127 = vrot.slane %v1123, 7
  %v1128 = vrot.slane %v1124, 7
  %v1129 = vrot.slane %v1125, 7
  %v1130 = vrot.slane %v1126, 7
  %v1131 = vsel %vm401, %v1129, %v1130
  %v1132 = vsel %vm401, %v1128, %v1129
  %v1133 = vsel %vm401, %v1127, %v1128
  %v1134 = vsel %vm401, %v1130, %v1127
  %v1135 = vmul.f32 %v1134, %v414
  %v1136 = vmul.f32 %v1133, %v415
  %v1137 = vmul.f32 %v1132, %v416
  %v1138 = vmul.f32 %v1131, %v417
  %v1139 = vrot.slane %v1123, 1
  %v1140 = vrot.slane %v1124, 1
  %v1141 = vrot.slane %v1125, 1
  %v1142 = vrot.slane %v1126, 1
  %v1143 = vsel %vm426, %v1141, %v1142
  %v1144 = vsel %vm426, %v1140, %v1141
  %v1145 = vsel %vm426, %v1139, %v1140
  %v1146 = vsel %vm426, %v1142, %v1139
  %v1147 = vmul.f32 %v1145, %v439
  %v1148 = vmul.f32 %v1144, %v440
  %v1149 = vmul.f32 %v1143, %v441
  %v1150 = vmul.f32 %v1146, %v442
  %v1151 = vpack.c.bf16 %v1136, %v1135
  %v1152 = vpack.c.bf16 %v1138, %v1137
  %v1153 = vld [vmem:[%s10] sm:$0xf]
  %v1154 = vld [vmem:[%s10 + $0x4] sm:$0xf]
  %v1155 = vld [vmem:[%s10 + $0x8] sm:$0xf]
  %v1156 = vld [vmem:[%s10 + $0xc] sm:$0xf]
  %v1157 = vld [vmem:[%s10 + $0x10] sm:$0xf]
  %v1158 = vld [vmem:[%s10 + $0x14] sm:$0xf]
  %v1159 = vld [vmem:[%s10 + $0x18] sm:$0xf]
  %v1160 = vld [vmem:[%s10 + $0x1c] sm:$0xf]
  %v1161 = vld [vmem:[%s10 + $0x20] sm:$0xf]
  %v1162 = vld [vmem:[%s10 + $0x24] sm:$0xf]
  %v1163 = vld [vmem:[%s10 + $0x28] sm:$0xf]
  %v1164 = vld [vmem:[%s10 + $0x2c] sm:$0xf]
  %v1165 = vld [vmem:[%s10 + $0x30] sm:$0xf]
  %v1166 = vld [vmem:[%s10 + $0x34] sm:$0xf]
  %v1167 = vld [vmem:[%s10 + $0x38] sm:$0xf]
  %v1168 = vld [vmem:[%s10 + $0x3c] sm:$0xf]
  %v1169 = vpack.c.bf16 %v1124, %v1123
  %v1170 = vpack.c.bf16 %v1126, %v1125
  %s1171 = scalar_lea.vmem %s10, 64
  %v1172 = vld [vmem:[%s1171] sm:$0xf]
  %v1173 = vld [vmem:[%s1171 + $0x4] sm:$0xf]
  %v1174 = vld [vmem:[%s1171 + $0x8] sm:$0xf]
  %v1175 = vld [vmem:[%s1171 + $0xc] sm:$0xf]
  %v1176 = vld [vmem:[%s1171 + $0x10] sm:$0xf]
  %v1177 = vld [vmem:[%s1171 + $0x14] sm:$0xf]
  %v1178 = vld [vmem:[%s1171 + $0x18] sm:$0xf]
  %v1179 = vld [vmem:[%s1171 + $0x1c] sm:$0xf]
  %v1180 = vld [vmem:[%s1171 + $0x20] sm:$0xf]
  %v1181 = vld [vmem:[%s1171 + $0x24] sm:$0xf]
  %v1182 = vld [vmem:[%s1171 + $0x28] sm:$0xf]
  %v1183 = vld [vmem:[%s1171 + $0x2c] sm:$0xf]
  %v1184 = vld [vmem:[%s1171 + $0x30] sm:$0xf]
  %v1185 = vld [vmem:[%s1171 + $0x34] sm:$0xf]
  %v1186 = vld [vmem:[%s1171 + $0x38] sm:$0xf]
  %v1187 = vld [vmem:[%s1171 + $0x3c] sm:$0xf]
  %v1204 = vunpack.c.l.b16 %v1172
  %v1205 = vunpack.c.l.b16 %v1173
  %v1206 = vunpack.c.l.b16 %v1174
  %v1207 = vunpack.c.l.b16 %v1175
  %v1208 = vunpack.c.l.b16 %v1176
  %v1209 = vunpack.c.l.b16 %v1177
  %v1210 = vunpack.c.l.b16 %v1178
  %v1211 = vunpack.c.l.b16 %v1179
  %v1212 = vunpack.c.l.b16 %v1180
  %v1213 = vunpack.c.l.b16 %v1181
  %v1214 = vunpack.c.l.b16 %v1182
  %v1215 = vunpack.c.l.b16 %v1183
  %v1216 = vunpack.c.l.b16 %v1184
  %v1217 = vunpack.c.l.b16 %v1185
  %v1218 = vunpack.c.l.b16 %v1186
  %v1219 = vunpack.c.l.b16 %v1187
  %v1220 = vpack.c.b16 %v1205, %v1204
  %v1221 = vpack.c.b16 %v1207, %v1206
  %v1222 = vpack.c.b16 %v1209, %v1208
  %v1223 = vpack.c.b16 %v1211, %v1210
  %v1224 = vpack.c.b16 %v1213, %v1212
  %v1225 = vpack.c.b16 %v1215, %v1214
  %v1226 = vpack.c.b16 %v1217, %v1216
  %v1227 = vpack.c.b16 %v1219, %v1218
  %1236 = vmatprep.subr.bf16.mxu0 0
  %1237 = vmatpush1.bf16.msra.mxu0 %v1227
  %1238 = vmatprep.subr.bf16.mxu0 0
  %1239 = vmatpush1.bf16.msra.mxu0 %v1226
  %1240 = vmatprep.subr.bf16.mxu0 0
  %1241 = vmatpush1.bf16.msra.mxu0 %v1225
  %1242 = vmatprep.subr.bf16.mxu0 0
  %1243 = vmatpush1.bf16.msra.mxu0 %v1224
  %1244 = vmatprep.subr.bf16.mxu0 0
  %1245 = vmatpush1.bf16.msra.mxu0 %v1223
  %1246 = vmatprep.subr.bf16.mxu0 0
  %1247 = vmatpush1.bf16.msra.mxu0 %v1222
  %1248 = vmatprep.subr.bf16.mxu0 0
  %1249 = vmatpush1.bf16.msra.mxu0 %v1221
  %1250 = vmatprep.subr.bf16.mxu0 0
  %1251 = vmatpush1.bf16.msra.mxu0 %v1220
  %1252 = vmatprep.subr.bf16.mxu0 0
  %1253 = vmatpush2.bf16.msra.mxu0 0
  %1254 = vmatprep.subr.bf16.mxu0 0
  %1255 = vmatpush2.bf16.msra.mxu0 0
  %1256 = vmatprep.subr.bf16.mxu0 0
  %1257 = vmatpush2.bf16.msra.mxu0 0
  %1258 = vmatprep.subr.bf16.mxu0 0
  %1259 = vmatpush2.bf16.msra.mxu0 0
  %1260 = vmatprep.subr.bf16.mxu0 0
  %1261 = vmatpush2.bf16.msra.mxu0 0
  %1262 = vmatprep.subr.bf16.mxu0 0
  %1263 = vmatpush2.bf16.msra.mxu0 0
  %1264 = vmatprep.subr.bf16.mxu0 0
  %1265 = vmatpush2.bf16.msra.mxu0 0
  %1266 = vmatprep.subr.bf16.mxu0 0
  %1267 = vmatpush2.bf16.msra.mxu0 0
  %1268 = vmatprep.mubr.bf16.mxu0 0
  %1269 = vmatmul.mubr.bf16.gmra.mxu0 %v1169
  %v1270 = vpop.f32.mrf.mxu0
  %v1271 = vadd.f32 0.0, %v1270
  %v1272 = vpop.f32.mrf.mxu0
  %v1273 = vpop.f32.mrf.mxu0
  %v1274 = vadd.f32 0.0, %v1273
  %v1275 = vpop.f32.mrf.mxu0
  %1276 = vmatprep.mubr.bf16.mxu0 0
  %1277 = vmatmul.mubr.bf16.gmra.mxu0 %v1170
  %v1278 = vpop.f32.mrf.mxu0
  %v1279 = vadd.f32 0.0, %v1278
  %v1280 = vpop.f32.mrf.mxu0
  %v1281 = vpop.f32.mrf.mxu0
  %v1282 = vadd.f32 0.0, %v1281
  %v1283 = vpop.f32.mrf.mxu0
  %1284 = vdwg.mxu0
  %v1301 = vunpack.c.l.b16 %v1153
  %v1302 = vunpack.c.l.b16 %v1154
  %v1303 = vunpack.c.l.b16 %v1155
  %v1304 = vunpack.c.l.b16 %v1156
  %v1305 = vunpack.c.l.b16 %v1157
  %v1306 = vunpack.c.l.b16 %v1158
  %v1307 = vunpack.c.l.b16 %v1159
  %v1308 = vunpack.c.l.b16 %v1160
  %v1309 = vunpack.c.l.b16 %v1161
  %v1310 = vunpack.c.l.b16 %v1162
  %v1311 = vunpack.c.l.b16 %v1163
  %v1312 = vunpack.c.l.b16 %v1164
  %v1313 = vunpack.c.l.b16 %v1165
  %v1314 = vunpack.c.l.b16 %v1166
  %v1315 = vunpack.c.l.b16 %v1167
  %v1316 = vunpack.c.l.b16 %v1168
  %v1317 = vpack.c.b16 %v1302, %v1301
  %v1318 = vpack.c.b16 %v1304, %v1303
  %v1319 = vpack.c.b16 %v1306, %v1305
  %v1320 = vpack.c.b16 %v1308, %v1307
  %v1321 = vpack.c.b16 %v1310, %v1309
  %v1322 = vpack.c.b16 %v1312, %v1311
  %v1323 = vpack.c.b16 %v1314, %v1313
  %v1324 = vpack.c.b16 %v1316, %v1315
  %1333 = vmatprep.subr.bf16.mxu0 0
  %1334 = vmatpush1.bf16.msra.mxu0 %v1324
  %1335 = vmatprep.subr.bf16.mxu0 0
  %1336 = vmatpush1.bf16.msra.mxu0 %v1323
  %1337 = vmatprep.subr.bf16.mxu0 0
  %1338 = vmatpush1.bf16.msra.mxu0 %v1322
  %1339 = vmatprep.subr.bf16.mxu0 0
  %1340 = vmatpush1.bf16.msra.mxu0 %v1321
  %1341 = vmatprep.subr.bf16.mxu0 0
  %1342 = vmatpush1.bf16.msra.mxu0 %v1320
  %1343 = vmatprep.subr.bf16.mxu0 0
  %1344 = vmatpush1.bf16.msra.mxu0 %v1319
  %1345 = vmatprep.subr.bf16.mxu0 0
  %1346 = vmatpush1.bf16.msra.mxu0 %v1318
  %1347 = vmatprep.subr.bf16.mxu0 0
  %1348 = vmatpush1.bf16.msra.mxu0 %v1317
  %1349 = vmatprep.subr.bf16.mxu0 0
  %1350 = vmatpush2.bf16.msra.mxu0 0
  %1351 = vmatprep.subr.bf16.mxu0 0
  %1352 = vmatpush2.bf16.msra.mxu0 0
  %1353 = vmatprep.subr.bf16.mxu0 0
  %1354 = vmatpush2.bf16.msra.mxu0 0
  %1355 = vmatprep.subr.bf16.mxu0 0
  %1356 = vmatpush2.bf16.msra.mxu0 0
  %1357 = vmatprep.subr.bf16.mxu0 0
  %1358 = vmatpush2.bf16.msra.mxu0 0
  %1359 = vmatprep.subr.bf16.mxu0 0
  %1360 = vmatpush2.bf16.msra.mxu0 0
  %1361 = vmatprep.subr.bf16.mxu0 0
  %1362 = vmatpush2.bf16.msra.mxu0 0
  %1363 = vmatprep.subr.bf16.mxu0 0
  %1364 = vmatpush2.bf16.msra.mxu0 0
  %1365 = vmatprep.mubr.bf16.mxu0 0
  %1366 = vmatmul.mubr.bf16.gmra.mxu0 %v1151
  %v1367 = vpop.f32.mrf.mxu0
  %v1368 = vadd.f32 %v1271, %v1367
  %v1369 = vpop.f32.mrf.mxu0
  %v1370 = vpop.f32.mrf.mxu0
  %v1371 = vadd.f32 %v1274, %v1370
  %v1372 = vpop.f32.mrf.mxu0
  %1373 = vmatprep.mubr.bf16.mxu0 0
  %1374 = vmatmul.mubr.bf16.gmra.mxu0 %v1152
  %v1375 = vpop.f32.mrf.mxu0
  %v1376 = vadd.f32 %v1279, %v1375
  %v1377 = vpop.f32.mrf.mxu0
  %v1378 = vpop.f32.mrf.mxu0
  %v1379 = vadd.f32 %v1282, %v1378
  %v1380 = vpop.f32.mrf.mxu0
  %1381 = vdwg.mxu0
  %v1382 = vpack.c.bf16 %v1148, %v1147
  %v1383 = vpack.c.bf16 %v1150, %v1149
  %s1384 = scalar_lea.vmem %s10, 128
  %v1385 = vld [vmem:[%s1384] sm:$0xf]
  %v1386 = vld [vmem:[%s1384 + $0x4] sm:$0xf]
  %v1387 = vld [vmem:[%s1384 + $0x8] sm:$0xf]
  %v1388 = vld [vmem:[%s1384 + $0xc] sm:$0xf]
  %v1389 = vld [vmem:[%s1384 + $0x10] sm:$0xf]
  %v1390 = vld [vmem:[%s1384 + $0x14] sm:$0xf]
  %v1391 = vld [vmem:[%s1384 + $0x18] sm:$0xf]
  %v1392 = vld [vmem:[%s1384 + $0x1c] sm:$0xf]
  %v1393 = vld [vmem:[%s1384 + $0x20] sm:$0xf]
  %v1394 = vld [vmem:[%s1384 + $0x24] sm:$0xf]
  %v1395 = vld [vmem:[%s1384 + $0x28] sm:$0xf]
  %v1396 = vld [vmem:[%s1384 + $0x2c] sm:$0xf]
  %v1397 = vld [vmem:[%s1384 + $0x30] sm:$0xf]
  %v1398 = vld [vmem:[%s1384 + $0x34] sm:$0xf]
  %v1399 = vld [vmem:[%s1384 + $0x38] sm:$0xf]
  %v1400 = vld [vmem:[%s1384 + $0x3c] sm:$0xf]
  %v1417 = vunpack.c.l.b16 %v1385
  %v1418 = vunpack.c.l.b16 %v1386
  %v1419 = vunpack.c.l.b16 %v1387
  %v1420 = vunpack.c.l.b16 %v1388
  %v1421 = vunpack.c.l.b16 %v1389
  %v1422 = vunpack.c.l.b16 %v1390
  %v1423 = vunpack.c.l.b16 %v1391
  %v1424 = vunpack.c.l.b16 %v1392
  %v1425 = vunpack.c.l.b16 %v1393
  %v1426 = vunpack.c.l.b16 %v1394
  %v1427 = vunpack.c.l.b16 %v1395
  %v1428 = vunpack.c.l.b16 %v1396
  %v1429 = vunpack.c.l.b16 %v1397
  %v1430 = vunpack.c.l.b16 %v1398
  %v1431 = vunpack.c.l.b16 %v1399
  %v1432 = vunpack.c.l.b16 %v1400
  %v1433 = vpack.c.b16 %v1418, %v1417
  %v1434 = vpack.c.b16 %v1420, %v1419
  %v1435 = vpack.c.b16 %v1422, %v1421
  %v1436 = vpack.c.b16 %v1424, %v1423
  %v1437 = vpack.c.b16 %v1426, %v1425
  %v1438 = vpack.c.b16 %v1428, %v1427
  %v1439 = vpack.c.b16 %v1430, %v1429
  %v1440 = vpack.c.b16 %v1432, %v1431
  %1449 = vmatprep.subr.bf16.mxu0 0
  %1450 = vmatpush1.bf16.msra.mxu0 %v1440
  %1451 = vmatprep.subr.bf16.mxu0 0
  %1452 = vmatpush1.bf16.msra.mxu0 %v1439
  %1453 = vmatprep.subr.bf16.mxu0 0
  %1454 = vmatpush1.bf16.msra.mxu0 %v1438
  %1455 = vmatprep.subr.bf16.mxu0 0
  %1456 = vmatpush1.bf16.msra.mxu0 %v1437
  %1457 = vmatprep.subr.bf16.mxu0 0
  %1458 = vmatpush1.bf16.msra.mxu0 %v1436
  %1459 = vmatprep.subr.bf16.mxu0 0
  %1460 = vmatpush1.bf16.msra.mxu0 %v1435
  %1461 = vmatprep.subr.bf16.mxu0 0
  %1462 = vmatpush1.bf16.msra.mxu0 %v1434
  %1463 = vmatprep.subr.bf16.mxu0 0
  %1464 = vmatpush1.bf16.msra.mxu0 %v1433
  %1465 = vmatprep.subr.bf16.mxu0 0
  %1466 = vmatpush2.bf16.msra.mxu0 0
  %1467 = vmatprep.subr.bf16.mxu0 0
  %1468 = vmatpush2.bf16.msra.mxu0 0
  %1469 = vmatprep.subr.bf16.mxu0 0
  %1470 = vmatpush2.bf16.msra.mxu0 0
  %1471 = vmatprep.subr.bf16.mxu0 0
  %1472 = vmatpush2.bf16.msra.mxu0 0
  %1473 = vmatprep.subr.bf16.mxu0 0
  %1474 = vmatpush2.bf16.msra.mxu0 0
  %1475 = vmatprep.subr.bf16.mxu0 0
  %1476 = vmatpush2.bf16.msra.mxu0 0
  %1477 = vmatprep.subr.bf16.mxu0 0
  %1478 = vmatpush2.bf16.msra.mxu0 0
  %1479 = vmatprep.subr.bf16.mxu0 0
  %1480 = vmatpush2.bf16.msra.mxu0 0
  %1481 = vmatprep.mubr.bf16.mxu0 0
  %1482 = vmatmul.mubr.bf16.gmra.mxu0 %v1382
  %v1483 = vpop.f32.mrf.mxu0
  %v1484 = vadd.f32 0.0, %v1483
  %v1485 = vpop.f32.mrf.mxu0
  %v1486 = vpop.f32.mrf.mxu0
  %v1487 = vadd.f32 0.0, %v1486
  %v1488 = vpop.f32.mrf.mxu0
  %1489 = vmatprep.mubr.bf16.mxu0 0
  %1490 = vmatmul.mubr.bf16.gmra.mxu0 %v1383
  %v1491 = vpop.f32.mrf.mxu0
  %v1492 = vadd.f32 0.0, %v1491
  %v1493 = vpop.f32.mrf.mxu0
  %v1494 = vpop.f32.mrf.mxu0
  %v1495 = vadd.f32 0.0, %v1494
  %v1496 = vpop.f32.mrf.mxu0
  %1497 = vdwg.mxu0
  %v1498 = vadd.f32 %v1368, %v1484
  %v1499 = vadd.f32 %v1371, %v1487
  %v1500 = vadd.f32 %v1376, %v1492
  %v1501 = vadd.f32 %v1379, %v1495
  %v1502 = vld [vmem:[%s11] sm:$0x1]
  %v1504 = vlaneseq
  %v1505 = vshrl.u32 %v1504, 7
  %v1506 = vsub.s32 0, %v1505
  %v1507 = vrot.slane %v1502, %v1506
  %v1509 = vadd.f32 %v1498, %v1507
  %v1510 = vadd.f32 %v1499, %v1507
  %v1511 = vadd.f32 %v1500, %v1507
  %v1512 = vadd.f32 %v1501, %v1507
  %v1513 = vpack.c.bf16 %v81, %v80
  %v1514 = vpack.c.bf16 %v83, %v82
  %v1515 = vld [vmem:[%s12] sm:$0xf]
  %v1516 = vld [vmem:[%s12 + $0x4] sm:$0xf]
  %v1517 = vld [vmem:[%s12 + $0x8] sm:$0xf]
  %v1518 = vld [vmem:[%s12 + $0xc] sm:$0xf]
  %v1519 = vld [vmem:[%s12 + $0x10] sm:$0xf]
  %v1520 = vld [vmem:[%s12 + $0x14] sm:$0xf]
  %v1521 = vld [vmem:[%s12 + $0x18] sm:$0xf]
  %v1522 = vld [vmem:[%s12 + $0x1c] sm:$0xf]
  %v1523 = vld [vmem:[%s13] sm:$0x1]
  %v1525 = vlaneseq
  %v1526 = vshrl.u32 %v1525, 7
  %v1527 = vsub.s32 0, %v1526
  %v1528 = vrot.slane %v1523, %v1527
  %v1538 = vunpack.c.l.b16 %v1515
  %v1539 = vunpack.c.l.b16 %v1516
  %v1540 = vunpack.c.l.b16 %v1517
  %v1541 = vunpack.c.l.b16 %v1518
  %v1542 = vunpack.c.l.b16 %v1519
  %v1543 = vunpack.c.l.b16 %v1520
  %v1544 = vunpack.c.l.b16 %v1521
  %v1545 = vunpack.c.l.b16 %v1522
  %v1546 = vpack.c.b16 %v1539, %v1538
  %v1547 = vpack.c.b16 %v1541, %v1540
  %v1548 = vpack.c.b16 %v1543, %v1542
  %v1549 = vpack.c.b16 %v1545, %v1544
  %v1555 = vsel %vm95, %v1513, 0
  %v1558 = vsel %vm95, %v1514, 0
  %1560 = vmatprep.subr.bf16.mxu0 0
  %1561 = vmatpush1.bf16.msra.mxu0 0
  %1562 = vmatprep.subr.bf16.mxu0 0
  %1563 = vmatpush1.bf16.msra.mxu0 0
  %1564 = vmatprep.subr.bf16.mxu0 0
  %1565 = vmatpush1.bf16.msra.mxu0 0
  %1566 = vmatprep.subr.bf16.mxu0 0
  %1567 = vmatpush1.bf16.msra.mxu0 0
  %1568 = vmatprep.subr.bf16.mxu0 0
  %1569 = vmatpush1.bf16.msra.mxu0 %v1549
  %1570 = vmatprep.subr.bf16.mxu0 0
  %1571 = vmatpush1.bf16.msra.mxu0 %v1548
  %1572 = vmatprep.subr.bf16.mxu0 0
  %1573 = vmatpush1.bf16.msra.mxu0 %v1547
  %1574 = vmatprep.subr.bf16.mxu0 0
  %1575 = vmatpush1.bf16.msra.mxu0 %v1546
  %1576 = vmatprep.subr.bf16.mxu0 0
  %1577 = vmatpush2.bf16.msra.mxu0 0
  %1578 = vmatprep.subr.bf16.mxu0 0
  %1579 = vmatpush2.bf16.msra.mxu0 0
  %1580 = vmatprep.subr.bf16.mxu0 0
  %1581 = vmatpush2.bf16.msra.mxu0 0
  %1582 = vmatprep.subr.bf16.mxu0 0
  %1583 = vmatpush2.bf16.msra.mxu0 0
  %1584 = vmatprep.subr.bf16.mxu0 0
  %1585 = vmatpush2.bf16.msra.mxu0 0
  %1586 = vmatprep.subr.bf16.mxu0 0
  %1587 = vmatpush2.bf16.msra.mxu0 0
  %1588 = vmatprep.subr.bf16.mxu0 0
  %1589 = vmatpush2.bf16.msra.mxu0 0
  %1590 = vmatprep.subr.bf16.mxu0 0
  %1591 = vmatpush2.bf16.msra.mxu0 0
  %1592 = vmatprep.mubr.bf16.mxu0 0
  %1593 = vmatmul.mubr.bf16.gmra.mxu0 %v1555
  %v1594 = vpop.f32.mrf.mxu0
  %v1595 = vadd.f32 %v1528, %v1594
  %v1596 = vpop.f32.mrf.mxu0
  %v1597 = vpop.f32.mrf.mxu0
  %v1598 = vadd.f32 %v1528, %v1597
  %v1599 = vpop.f32.mrf.mxu0
  %1600 = vmatprep.mubr.bf16.mxu0 0
  %1601 = vmatmul.mubr.bf16.gmra.mxu0 %v1558
  %v1602 = vpop.f32.mrf.mxu0
  %v1603 = vadd.f32 %v1528, %v1602
  %v1604 = vpop.f32.mrf.mxu0
  %v1605 = vpop.f32.mrf.mxu0
  %v1606 = vadd.f32 %v1528, %v1605
  %v1607 = vpop.f32.mrf.mxu0
  %1608 = vdwg.mxu0
  %v1609 = vadd.f32 %v1509, %v1595
  %v1610 = vadd.f32 %v1510, %v1598
  %v1611 = vadd.f32 %v1511, %v1603
  %v1612 = vadd.f32 %v1512, %v1606
  %v1613 = vld [vmem:[%s14] sm:$0x1]
  %v1614 = vld [vmem:[%s15] sm:$0x1]
  %v1615 = vadd.f32 %v1609, %v1610
  %v1616 = vadd.f32 %v1615, %v1611
  %v1617 = vadd.f32 %v1616, %v1612
  %v1618 = vrot.slane %v1617, 4
  %v1619 = vadd.f32 %v1617, %v1618
  %v1620 = vrot.slane %v1619, 2
  %v1621 = vadd.f32 %v1619, %v1620
  %v1622 = vrot.slane %v1621, 1
  %v1623 = vadd.f32 %v1621, %v1622
  %v1624 = vmul.f32 %v1623, %v109
  %v1625 = vmul.f32 %v1609, %v1609
  %v1626 = vmul.f32 %v1610, %v1610
  %v1627 = vmul.f32 %v1611, %v1611
  %v1628 = vmul.f32 %v1612, %v1612
  %v1629 = vadd.f32 %v1625, %v1626
  %v1630 = vadd.f32 %v1629, %v1627
  %v1631 = vadd.f32 %v1630, %v1628
  %v1632 = vrot.slane %v1631, 4
  %v1633 = vadd.f32 %v1631, %v1632
  %v1634 = vrot.slane %v1633, 2
  %v1635 = vadd.f32 %v1633, %v1634
  %v1636 = vrot.slane %v1635, 1
  %v1637 = vadd.f32 %v1635, %v1636
  %v1638 = vmul.f32 %v1637, %v109
  %v1639 = vsel %vm129, %v1624, %v1638
  %1641 = vrot.lane.b32.xlu0 %v1639, 120
  %v1642 = vpop.permute.xlu0 %1641
  %v1644 = vadd.f32 %v1639, %v1642
  %1645 = vrot.lane.b32.xlu0 %v1639, 112
  %v1646 = vpop.permute.xlu0 %1645
  %v1648 = vadd.f32 %v1644, %v1646
  %1649 = vrot.lane.b32.xlu0 %v1639, 104
  %v1650 = vpop.permute.xlu0 %1649
  %v1652 = vadd.f32 %v1648, %v1650
  %1653 = vrot.lane.b32.xlu0 %v1639, 96
  %v1654 = vpop.permute.xlu0 %1653
  %v1656 = vadd.f32 %v1652, %v1654
  %1657 = vrot.lane.b32.xlu0 %v1639, 88
  %v1658 = vpop.permute.xlu0 %1657
  %v1660 = vadd.f32 %v1656, %v1658
  %1661 = vrot.lane.b32.xlu0 %v1639, 80
  %v1662 = vpop.permute.xlu0 %1661
  %v1664 = vadd.f32 %v1660, %v1662
  %1665 = vrot.lane.b32.xlu0 %v1639, 72
  %v1666 = vpop.permute.xlu0 %1665
  %v1668 = vadd.f32 %v1664, %v1666
  %1669 = vrot.lane.b32.xlu0 %v1639, 64
  %v1670 = vpop.permute.xlu0 %1669
  %v1672 = vadd.f32 %v1668, %v1670
  %1673 = vrot.lane.b32.xlu0 %v1639, 56
  %v1674 = vpop.permute.xlu0 %1673
  %v1676 = vadd.f32 %v1672, %v1674
  %1677 = vrot.lane.b32.xlu0 %v1639, 48
  %v1678 = vpop.permute.xlu0 %1677
  %v1680 = vadd.f32 %v1676, %v1678
  %1681 = vrot.lane.b32.xlu0 %v1639, 40
  %v1682 = vpop.permute.xlu0 %1681
  %v1684 = vadd.f32 %v1680, %v1682
  %1685 = vrot.lane.b32.xlu0 %v1639, 32
  %v1686 = vpop.permute.xlu0 %1685
  %v1688 = vadd.f32 %v1684, %v1686
  %1689 = vrot.lane.b32.xlu0 %v1639, 24
  %v1690 = vpop.permute.xlu0 %1689
  %v1692 = vadd.f32 %v1688, %v1690
  %1693 = vrot.lane.b32.xlu0 %v1639, 16
  %v1694 = vpop.permute.xlu0 %1693
  %v1696 = vadd.f32 %v1692, %v1694
  %1697 = vrot.lane.b32.xlu0 %v1639, 8
  %v1698 = vpop.permute.xlu0 %1697
  %v1700 = vadd.f32 %v1696, %v1698
  %v1701 = vmul.f32 %v1700, 0.0625
  %1703 = vrot.lane.b32.xlu0 %v1701, 8
  %v1704 = vpop.permute.xlu0 %1703
  %1706 = vrot.lane.b32.xlu0 %v1701, 16
  %v1707 = vpop.permute.xlu0 %1706
  %1709 = vrot.lane.b32.xlu0 %v1701, 24
  %v1710 = vpop.permute.xlu0 %1709
  %1712 = vrot.lane.b32.xlu0 %v1701, 32
  %v1713 = vpop.permute.xlu0 %1712
  %1715 = vrot.lane.b32.xlu0 %v1701, 40
  %v1716 = vpop.permute.xlu0 %1715
  %1718 = vrot.lane.b32.xlu0 %v1701, 48
  %v1719 = vpop.permute.xlu0 %1718
  %1721 = vrot.lane.b32.xlu0 %v1701, 56
  %v1722 = vpop.permute.xlu0 %1721
  %1724 = vrot.lane.b32.xlu0 %v1701, 64
  %v1725 = vpop.permute.xlu0 %1724
  %1727 = vrot.lane.b32.xlu0 %v1701, 72
  %v1728 = vpop.permute.xlu0 %1727
  %1730 = vrot.lane.b32.xlu0 %v1701, 80
  %v1731 = vpop.permute.xlu0 %1730
  %1733 = vrot.lane.b32.xlu0 %v1701, 88
  %v1734 = vpop.permute.xlu0 %1733
  %1736 = vrot.lane.b32.xlu0 %v1701, 96
  %v1737 = vpop.permute.xlu0 %1736
  %1739 = vrot.lane.b32.xlu0 %v1701, 104
  %v1740 = vpop.permute.xlu0 %1739
  %1742 = vrot.lane.b32.xlu0 %v1701, 112
  %v1743 = vpop.permute.xlu0 %1742
  %1745 = vrot.lane.b32.xlu0 %v1701, 120
  %v1746 = vpop.permute.xlu0 %1745
  %v1748 = vsel %vm241, %v1701, %v1704
  %v1749 = vsel %vm245, %v1748, %v1707
  %v1750 = vsel %vm249, %v1749, %v1710
  %v1751 = vsel %vm253, %v1750, %v1713
  %v1752 = vsel %vm257, %v1751, %v1716
  %v1753 = vsel %vm261, %v1752, %v1719
  %v1754 = vsel %vm265, %v1753, %v1722
  %v1755 = vsel %vm95, %v1754, %v1725
  %v1756 = vsel %vm851, %v1755, %v1728
  %v1757 = vsel %vm853, %v1756, %v1731
  %v1758 = vsel %vm855, %v1757, %v1734
  %v1759 = vsel %vm857, %v1758, %v1737
  %v1760 = vsel %vm859, %v1759, %v1740
  %v1761 = vsel %vm861, %v1760, %v1743
  %v1762 = vsel %vm863, %v1761, %v1746
  %v1763 = vmul.f32 %v1762, %v1762
  %v1765 = vrot.slane %v1763, 7
  %v1767 = vsub.f32 %v1762, %v1765
  %v1768 = vadd.f32 %v1767, 1e-05
  %v1769 = vrsqrt.pop %v1768
  %v1772 = vunpack.c.l.s4 1966171168
  %v1773 = vunpack.c.0.s8 %v1772
  %v1774 = vlaneseq
  %v1775 = vshrl.u32 %v1774, 7
  %v1776 = vsub.s32 %v1773, %v1775
  %v1777 = vrot.slane %v1769, %v1776
  %v1778 = vcombine.high %v1777, %v1777
  %v1780 = vunpack.c.l.s4 1966171168
  %v1781 = vunpack.c.0.s8 %v1780
  %v1782 = vlaneseq
  %v1783 = vshrl.u32 %v1782, 7
  %v1784 = vsub.s32 %v1781, %v1783
  %v1785 = vrot.slane %v1778, %v1784
  %v1787 = vmul.f32 %v1613, %v1785
  %v1788 = vmul.f32 %v1762, %v1787
  %v1789 = vsub.f32 %v1614, %v1788
  %v1791 = vlaneseq
  %v1792 = vshrl.u32 %v1791, 7
  %v1793 = vsub.s32 0, %v1792
  %v1794 = vrot.slane %v1787, %v1793
  %v1796 = vmul.f32 %v1609, %v1794
  %v1797 = vmul.f32 %v1610, %v1794
  %v1798 = vmul.f32 %v1611, %v1794
  %v1799 = vmul.f32 %v1612, %v1794
  %v1801 = vlaneseq
  %v1802 = vshrl.u32 %v1801, 7
  %v1803 = vsub.s32 0, %v1802
  %v1804 = vrot.slane %v1789, %v1803
  %v1806 = vadd.f32 %v1796, %v1804
  %v1807 = vadd.f32 %v1797, %v1804
  %v1808 = vadd.f32 %v1798, %v1804
  %v1809 = vadd.f32 %v1799, %v1804
  %v1810 = vxor.u32 %v1806, 2147483648
  %v1811 = vxor.u32 %v1807, 2147483648
  %v1812 = vxor.u32 %v1808, 2147483648
  %v1813 = vxor.u32 %v1809, 2147483648
  %v1814 = vmul.f32 %v1810, 1.442695
  %v1815 = vpow.pop %v1814
  %v1816 = vmul.f32 %v1811, 1.442695
  %v1817 = vpow.pop %v1816
  %v1818 = vmul.f32 %v1812, 1.442695
  %v1819 = vpow.pop %v1818
  %v1820 = vmul.f32 %v1813, 1.442695
  %v1821 = vpow.pop %v1820
  %v1822 = vadd.f32 %v1815, 1.0
  %v1823 = vadd.f32 %v1817, 1.0
  %v1824 = vadd.f32 %v1819, 1.0
  %v1825 = vadd.f32 %v1821, 1.0
  %v1826 = vrcp.pop %v1822
  %v1827 = vmul.f32 1.0, %v1826
  %v1828 = vrcp.pop %v1823
  %v1829 = vmul.f32 1.0, %v1828
  %v1830 = vrcp.pop %v1824
  %v1831 = vmul.f32 1.0, %v1830
  %v1832 = vrcp.pop %v1825
  %v1833 = vmul.f32 1.0, %v1832
  %v1834 = vmul.f32 %v1806, %v1827
  %v1835 = vmul.f32 %v1807, %v1829
  %v1836 = vmul.f32 %v1808, %v1831
  %v1837 = vmul.f32 %v1809, %v1833
  %v1838 = vrot.slane %v1834, 7
  %v1839 = vrot.slane %v1835, 7
  %v1840 = vrot.slane %v1836, 7
  %v1841 = vrot.slane %v1837, 7
  %v1842 = vsel %vm401, %v1840, %v1841
  %v1843 = vsel %vm401, %v1839, %v1840
  %v1844 = vsel %vm401, %v1838, %v1839
  %v1845 = vsel %vm401, %v1841, %v1838
  %v1846 = vmul.f32 %v1845, %v414
  %v1847 = vmul.f32 %v1844, %v415
  %v1848 = vmul.f32 %v1843, %v416
  %v1849 = vmul.f32 %v1842, %v417
  %v1850 = vrot.slane %v1834, 1
  %v1851 = vrot.slane %v1835, 1
  %v1852 = vrot.slane %v1836, 1
  %v1853 = vrot.slane %v1837, 1
  %v1854 = vsel %vm426, %v1852, %v1853
  %v1855 = vsel %vm426, %v1851, %v1852
  %v1856 = vsel %vm426, %v1850, %v1851
  %v1857 = vsel %vm426, %v1853, %v1850
  %v1858 = vmul.f32 %v1856, %v439
  %v1859 = vmul.f32 %v1855, %v440
  %v1860 = vmul.f32 %v1854, %v441
  %v1861 = vmul.f32 %v1857, %v442
  %v1862 = vpack.c.bf16 %v1847, %v1846
  %v1863 = vpack.c.bf16 %v1849, %v1848
  %v1864 = vld [vmem:[%s16] sm:$0xf]
  %v1865 = vld [vmem:[%s16 + $0x4] sm:$0xf]
  %v1866 = vld [vmem:[%s16 + $0x8] sm:$0xf]
  %v1867 = vld [vmem:[%s16 + $0xc] sm:$0xf]
  %v1868 = vld [vmem:[%s16 + $0x10] sm:$0xf]
  %v1869 = vld [vmem:[%s16 + $0x14] sm:$0xf]
  %v1870 = vld [vmem:[%s16 + $0x18] sm:$0xf]
  %v1871 = vld [vmem:[%s16 + $0x1c] sm:$0xf]
  %v1872 = vld [vmem:[%s16 + $0x20] sm:$0xf]
  %v1873 = vld [vmem:[%s16 + $0x24] sm:$0xf]
  %v1874 = vld [vmem:[%s16 + $0x28] sm:$0xf]
  %v1875 = vld [vmem:[%s16 + $0x2c] sm:$0xf]
  %v1876 = vld [vmem:[%s16 + $0x30] sm:$0xf]
  %v1877 = vld [vmem:[%s16 + $0x34] sm:$0xf]
  %v1878 = vld [vmem:[%s16 + $0x38] sm:$0xf]
  %v1879 = vld [vmem:[%s16 + $0x3c] sm:$0xf]
  %v1880 = vpack.c.bf16 %v1835, %v1834
  %v1881 = vpack.c.bf16 %v1837, %v1836
  %s1882 = scalar_lea.vmem %s16, 64
  %v1883 = vld [vmem:[%s1882] sm:$0xf]
  %v1884 = vld [vmem:[%s1882 + $0x4] sm:$0xf]
  %v1885 = vld [vmem:[%s1882 + $0x8] sm:$0xf]
  %v1886 = vld [vmem:[%s1882 + $0xc] sm:$0xf]
  %v1887 = vld [vmem:[%s1882 + $0x10] sm:$0xf]
  %v1888 = vld [vmem:[%s1882 + $0x14] sm:$0xf]
  %v1889 = vld [vmem:[%s1882 + $0x18] sm:$0xf]
  %v1890 = vld [vmem:[%s1882 + $0x1c] sm:$0xf]
  %v1891 = vld [vmem:[%s1882 + $0x20] sm:$0xf]
  %v1892 = vld [vmem:[%s1882 + $0x24] sm:$0xf]
  %v1893 = vld [vmem:[%s1882 + $0x28] sm:$0xf]
  %v1894 = vld [vmem:[%s1882 + $0x2c] sm:$0xf]
  %v1895 = vld [vmem:[%s1882 + $0x30] sm:$0xf]
  %v1896 = vld [vmem:[%s1882 + $0x34] sm:$0xf]
  %v1897 = vld [vmem:[%s1882 + $0x38] sm:$0xf]
  %v1898 = vld [vmem:[%s1882 + $0x3c] sm:$0xf]
  %v1915 = vunpack.c.l.b16 %v1883
  %v1916 = vunpack.c.l.b16 %v1884
  %v1917 = vunpack.c.l.b16 %v1885
  %v1918 = vunpack.c.l.b16 %v1886
  %v1919 = vunpack.c.l.b16 %v1887
  %v1920 = vunpack.c.l.b16 %v1888
  %v1921 = vunpack.c.l.b16 %v1889
  %v1922 = vunpack.c.l.b16 %v1890
  %v1923 = vunpack.c.l.b16 %v1891
  %v1924 = vunpack.c.l.b16 %v1892
  %v1925 = vunpack.c.l.b16 %v1893
  %v1926 = vunpack.c.l.b16 %v1894
  %v1927 = vunpack.c.l.b16 %v1895
  %v1928 = vunpack.c.l.b16 %v1896
  %v1929 = vunpack.c.l.b16 %v1897
  %v1930 = vunpack.c.l.b16 %v1898
  %v1931 = vpack.c.b16 %v1916, %v1915
  %v1932 = vpack.c.b16 %v1918, %v1917
  %v1933 = vpack.c.b16 %v1920, %v1919
  %v1934 = vpack.c.b16 %v1922, %v1921
  %v1935 = vpack.c.b16 %v1924, %v1923
  %v1936 = vpack.c.b16 %v1926, %v1925
  %v1937 = vpack.c.b16 %v1928, %v1927
  %v1938 = vpack.c.b16 %v1930, %v1929
  %1947 = vmatprep.subr.bf16.mxu0 0
  %1948 = vmatpush1.bf16.msra.mxu0 %v1938
  %1949 = vmatprep.subr.bf16.mxu0 0
  %1950 = vmatpush1.bf16.msra.mxu0 %v1937
  %1951 = vmatprep.subr.bf16.mxu0 0
  %1952 = vmatpush1.bf16.msra.mxu0 %v1936
  %1953 = vmatprep.subr.bf16.mxu0 0
  %1954 = vmatpush1.bf16.msra.mxu0 %v1935
  %1955 = vmatprep.subr.bf16.mxu0 0
  %1956 = vmatpush1.bf16.msra.mxu0 %v1934
  %1957 = vmatprep.subr.bf16.mxu0 0
  %1958 = vmatpush1.bf16.msra.mxu0 %v1933
  %1959 = vmatprep.subr.bf16.mxu0 0
  %1960 = vmatpush1.bf16.msra.mxu0 %v1932
  %1961 = vmatprep.subr.bf16.mxu0 0
  %1962 = vmatpush1.bf16.msra.mxu0 %v1931
  %1963 = vmatprep.subr.bf16.mxu0 0
  %1964 = vmatpush2.bf16.msra.mxu0 0
  %1965 = vmatprep.subr.bf16.mxu0 0
  %1966 = vmatpush2.bf16.msra.mxu0 0
  %1967 = vmatprep.subr.bf16.mxu0 0
  %1968 = vmatpush2.bf16.msra.mxu0 0
  %1969 = vmatprep.subr.bf16.mxu0 0
  %1970 = vmatpush2.bf16.msra.mxu0 0
  %1971 = vmatprep.subr.bf16.mxu0 0
  %1972 = vmatpush2.bf16.msra.mxu0 0
  %1973 = vmatprep.subr.bf16.mxu0 0
  %1974 = vmatpush2.bf16.msra.mxu0 0
  %1975 = vmatprep.subr.bf16.mxu0 0
  %1976 = vmatpush2.bf16.msra.mxu0 0
  %1977 = vmatprep.subr.bf16.mxu0 0
  %1978 = vmatpush2.bf16.msra.mxu0 0
  %1979 = vmatprep.mubr.bf16.mxu0 0
  %1980 = vmatmul.mubr.bf16.gmra.mxu0 %v1880
  %v1981 = vpop.f32.mrf.mxu0
  %v1982 = vadd.f32 0.0, %v1981
  %v1983 = vpop.f32.mrf.mxu0
  %v1984 = vpop.f32.mrf.mxu0
  %v1985 = vadd.f32 0.0, %v1984
  %v1986 = vpop.f32.mrf.mxu0
  %1987 = vmatprep.mubr.bf16.mxu0 0
  %1988 = vmatmul.mubr.bf16.gmra.mxu0 %v1881
  %v1989 = vpop.f32.mrf.mxu0
  %v1990 = vadd.f32 0.0, %v1989
  %v1991 = vpop.f32.mrf.mxu0
  %v1992 = vpop.f32.mrf.mxu0
  %v1993 = vadd.f32 0.0, %v1992
  %v1994 = vpop.f32.mrf.mxu0
  %1995 = vdwg.mxu0
  %v2012 = vunpack.c.l.b16 %v1864
  %v2013 = vunpack.c.l.b16 %v1865
  %v2014 = vunpack.c.l.b16 %v1866
  %v2015 = vunpack.c.l.b16 %v1867
  %v2016 = vunpack.c.l.b16 %v1868
  %v2017 = vunpack.c.l.b16 %v1869
  %v2018 = vunpack.c.l.b16 %v1870
  %v2019 = vunpack.c.l.b16 %v1871
  %v2020 = vunpack.c.l.b16 %v1872
  %v2021 = vunpack.c.l.b16 %v1873
  %v2022 = vunpack.c.l.b16 %v1874
  %v2023 = vunpack.c.l.b16 %v1875
  %v2024 = vunpack.c.l.b16 %v1876
  %v2025 = vunpack.c.l.b16 %v1877
  %v2026 = vunpack.c.l.b16 %v1878
  %v2027 = vunpack.c.l.b16 %v1879
  %v2028 = vpack.c.b16 %v2013, %v2012
  %v2029 = vpack.c.b16 %v2015, %v2014
  %v2030 = vpack.c.b16 %v2017, %v2016
  %v2031 = vpack.c.b16 %v2019, %v2018
  %v2032 = vpack.c.b16 %v2021, %v2020
  %v2033 = vpack.c.b16 %v2023, %v2022
  %v2034 = vpack.c.b16 %v2025, %v2024
  %v2035 = vpack.c.b16 %v2027, %v2026
  %2044 = vmatprep.subr.bf16.mxu0 0
  %2045 = vmatpush1.bf16.msra.mxu0 %v2035
  %2046 = vmatprep.subr.bf16.mxu0 0
  %2047 = vmatpush1.bf16.msra.mxu0 %v2034
  %2048 = vmatprep.subr.bf16.mxu0 0
  %2049 = vmatpush1.bf16.msra.mxu0 %v2033
  %2050 = vmatprep.subr.bf16.mxu0 0
  %2051 = vmatpush1.bf16.msra.mxu0 %v2032
  %2052 = vmatprep.subr.bf16.mxu0 0
  %2053 = vmatpush1.bf16.msra.mxu0 %v2031
  %2054 = vmatprep.subr.bf16.mxu0 0
  %2055 = vmatpush1.bf16.msra.mxu0 %v2030
  %2056 = vmatprep.subr.bf16.mxu0 0
  %2057 = vmatpush1.bf16.msra.mxu0 %v2029
  %2058 = vmatprep.subr.bf16.mxu0 0
  %2059 = vmatpush1.bf16.msra.mxu0 %v2028
  %2060 = vmatprep.subr.bf16.mxu0 0
  %2061 = vmatpush2.bf16.msra.mxu0 0
  %2062 = vmatprep.subr.bf16.mxu0 0
  %2063 = vmatpush2.bf16.msra.mxu0 0
  %2064 = vmatprep.subr.bf16.mxu0 0
  %2065 = vmatpush2.bf16.msra.mxu0 0
  %2066 = vmatprep.subr.bf16.mxu0 0
  %2067 = vmatpush2.bf16.msra.mxu0 0
  %2068 = vmatprep.subr.bf16.mxu0 0
  %2069 = vmatpush2.bf16.msra.mxu0 0
  %2070 = vmatprep.subr.bf16.mxu0 0
  %2071 = vmatpush2.bf16.msra.mxu0 0
  %2072 = vmatprep.subr.bf16.mxu0 0
  %2073 = vmatpush2.bf16.msra.mxu0 0
  %2074 = vmatprep.subr.bf16.mxu0 0
  %2075 = vmatpush2.bf16.msra.mxu0 0
  %2076 = vmatprep.mubr.bf16.mxu0 0
  %2077 = vmatmul.mubr.bf16.gmra.mxu0 %v1862
  %v2078 = vpop.f32.mrf.mxu0
  %v2079 = vadd.f32 %v1982, %v2078
  %v2080 = vpop.f32.mrf.mxu0
  %v2081 = vpop.f32.mrf.mxu0
  %v2082 = vadd.f32 %v1985, %v2081
  %v2083 = vpop.f32.mrf.mxu0
  %2084 = vmatprep.mubr.bf16.mxu0 0
  %2085 = vmatmul.mubr.bf16.gmra.mxu0 %v1863
  %v2086 = vpop.f32.mrf.mxu0
  %v2087 = vadd.f32 %v1990, %v2086
  %v2088 = vpop.f32.mrf.mxu0
  %v2089 = vpop.f32.mrf.mxu0
  %v2090 = vadd.f32 %v1993, %v2089
  %v2091 = vpop.f32.mrf.mxu0
  %2092 = vdwg.mxu0
  %v2093 = vpack.c.bf16 %v1859, %v1858
  %v2094 = vpack.c.bf16 %v1861, %v1860
  %s2095 = scalar_lea.vmem %s16, 128
  %v2096 = vld [vmem:[%s2095] sm:$0xf]
  %v2097 = vld [vmem:[%s2095 + $0x4] sm:$0xf]
  %v2098 = vld [vmem:[%s2095 + $0x8] sm:$0xf]
  %v2099 = vld [vmem:[%s2095 + $0xc] sm:$0xf]
  %v2100 = vld [vmem:[%s2095 + $0x10] sm:$0xf]
  %v2101 = vld [vmem:[%s2095 + $0x14] sm:$0xf]
  %v2102 = vld [vmem:[%s2095 + $0x18] sm:$0xf]
  %v2103 = vld [vmem:[%s2095 + $0x1c] sm:$0xf]
  %v2104 = vld [vmem:[%s2095 + $0x20] sm:$0xf]
  %v2105 = vld [vmem:[%s2095 + $0x24] sm:$0xf]
  %v2106 = vld [vmem:[%s2095 + $0x28] sm:$0xf]
  %v2107 = vld [vmem:[%s2095 + $0x2c] sm:$0xf]
  %v2108 = vld [vmem:[%s2095 + $0x30] sm:$0xf]
  %v2109 = vld [vmem:[%s2095 + $0x34] sm:$0xf]
  %v2110 = vld [vmem:[%s2095 + $0x38] sm:$0xf]
  %v2111 = vld [vmem:[%s2095 + $0x3c] sm:$0xf]
  %v2128 = vunpack.c.l.b16 %v2096
  %v2129 = vunpack.c.l.b16 %v2097
  %v2130 = vunpack.c.l.b16 %v2098
  %v2131 = vunpack.c.l.b16 %v2099
  %v2132 = vunpack.c.l.b16 %v2100
  %v2133 = vunpack.c.l.b16 %v2101
  %v2134 = vunpack.c.l.b16 %v2102
  %v2135 = vunpack.c.l.b16 %v2103
  %v2136 = vunpack.c.l.b16 %v2104
  %v2137 = vunpack.c.l.b16 %v2105
  %v2138 = vunpack.c.l.b16 %v2106
  %v2139 = vunpack.c.l.b16 %v2107
  %v2140 = vunpack.c.l.b16 %v2108
  %v2141 = vunpack.c.l.b16 %v2109
  %v2142 = vunpack.c.l.b16 %v2110
  %v2143 = vunpack.c.l.b16 %v2111
  %v2144 = vpack.c.b16 %v2129, %v2128
  %v2145 = vpack.c.b16 %v2131, %v2130
  %v2146 = vpack.c.b16 %v2133, %v2132
  %v2147 = vpack.c.b16 %v2135, %v2134
  %v2148 = vpack.c.b16 %v2137, %v2136
  %v2149 = vpack.c.b16 %v2139, %v2138
  %v2150 = vpack.c.b16 %v2141, %v2140
  %v2151 = vpack.c.b16 %v2143, %v2142
  %2160 = vmatprep.subr.bf16.mxu0 0
  %2161 = vmatpush1.bf16.msra.mxu0 %v2151
  %2162 = vmatprep.subr.bf16.mxu0 0
  %2163 = vmatpush1.bf16.msra.mxu0 %v2150
  %2164 = vmatprep.subr.bf16.mxu0 0
  %2165 = vmatpush1.bf16.msra.mxu0 %v2149
  %2166 = vmatprep.subr.bf16.mxu0 0
  %2167 = vmatpush1.bf16.msra.mxu0 %v2148
  %2168 = vmatprep.subr.bf16.mxu0 0
  %2169 = vmatpush1.bf16.msra.mxu0 %v2147
  %2170 = vmatprep.subr.bf16.mxu0 0
  %2171 = vmatpush1.bf16.msra.mxu0 %v2146
  %2172 = vmatprep.subr.bf16.mxu0 0
  %2173 = vmatpush1.bf16.msra.mxu0 %v2145
  %2174 = vmatprep.subr.bf16.mxu0 0
  %2175 = vmatpush1.bf16.msra.mxu0 %v2144
  %2176 = vmatprep.subr.bf16.mxu0 0
  %2177 = vmatpush2.bf16.msra.mxu0 0
  %2178 = vmatprep.subr.bf16.mxu0 0
  %2179 = vmatpush2.bf16.msra.mxu0 0
  %2180 = vmatprep.subr.bf16.mxu0 0
  %2181 = vmatpush2.bf16.msra.mxu0 0
  %2182 = vmatprep.subr.bf16.mxu0 0
  %2183 = vmatpush2.bf16.msra.mxu0 0
  %2184 = vmatprep.subr.bf16.mxu0 0
  %2185 = vmatpush2.bf16.msra.mxu0 0
  %2186 = vmatprep.subr.bf16.mxu0 0
  %2187 = vmatpush2.bf16.msra.mxu0 0
  %2188 = vmatprep.subr.bf16.mxu0 0
  %2189 = vmatpush2.bf16.msra.mxu0 0
  %2190 = vmatprep.subr.bf16.mxu0 0
  %2191 = vmatpush2.bf16.msra.mxu0 0
  %2192 = vmatprep.mubr.bf16.mxu0 0
  %2193 = vmatmul.mubr.bf16.gmra.mxu0 %v2093
  %v2194 = vpop.f32.mrf.mxu0
  %v2195 = vadd.f32 0.0, %v2194
  %v2196 = vpop.f32.mrf.mxu0
  %v2197 = vpop.f32.mrf.mxu0
  %v2198 = vadd.f32 0.0, %v2197
  %v2199 = vpop.f32.mrf.mxu0
  %2200 = vmatprep.mubr.bf16.mxu0 0
  %2201 = vmatmul.mubr.bf16.gmra.mxu0 %v2094
  %v2202 = vpop.f32.mrf.mxu0
  %v2203 = vadd.f32 0.0, %v2202
  %v2204 = vpop.f32.mrf.mxu0
  %v2205 = vpop.f32.mrf.mxu0
  %v2206 = vadd.f32 0.0, %v2205
  %v2207 = vpop.f32.mrf.mxu0
  %2208 = vdwg.mxu0
  %v2209 = vadd.f32 %v2079, %v2195
  %v2210 = vadd.f32 %v2082, %v2198
  %v2211 = vadd.f32 %v2087, %v2203
  %v2212 = vadd.f32 %v2090, %v2206
  %v2213 = vld [vmem:[%s17] sm:$0x1]
  %v2215 = vlaneseq
  %v2216 = vshrl.u32 %v2215, 7
  %v2217 = vsub.s32 0, %v2216
  %v2218 = vrot.slane %v2213, %v2217
  %v2220 = vadd.f32 %v2209, %v2218
  %v2221 = vadd.f32 %v2210, %v2218
  %v2222 = vadd.f32 %v2211, %v2218
  %v2223 = vadd.f32 %v2212, %v2218
  %v2224 = vld [vmem:[%s18] sm:$0xf]
  %v2225 = vld [vmem:[%s18 + $0x4] sm:$0xf]
  %v2226 = vld [vmem:[%s18 + $0x8] sm:$0xf]
  %v2227 = vld [vmem:[%s18 + $0xc] sm:$0xf]
  %v2228 = vld [vmem:[%s19] sm:$0x1]
  %v2230 = vlaneseq
  %v2231 = vshrl.u32 %v2230, 7
  %v2232 = vsub.s32 0, %v2231
  %v2233 = vrot.slane %v2228, %v2232
  %v2239 = vunpack.c.l.b16 %v2224
  %v2240 = vunpack.c.l.b16 %v2225
  %v2241 = vunpack.c.l.b16 %v2226
  %v2242 = vunpack.c.l.b16 %v2227
  %v2243 = vpack.c.b16 %v2240, %v2239
  %v2244 = vpack.c.b16 %v2242, %v2241
  %2247 = vmatprep.subr.bf16.mxu0 0
  %2248 = vmatpush1.bf16.msra.mxu0 0
  %2249 = vmatprep.subr.bf16.mxu0 0
  %2250 = vmatpush1.bf16.msra.mxu0 0
  %2251 = vmatprep.subr.bf16.mxu0 0
  %2252 = vmatpush1.bf16.msra.mxu0 0
  %2253 = vmatprep.subr.bf16.mxu0 0
  %2254 = vmatpush1.bf16.msra.mxu0 0
  %2255 = vmatprep.subr.bf16.mxu0 0
  %2256 = vmatpush1.bf16.msra.mxu0 0
  %2257 = vmatprep.subr.bf16.mxu0 0
  %2258 = vmatpush1.bf16.msra.mxu0 0
  %2259 = vmatprep.subr.bf16.mxu0 0
  %2260 = vmatpush1.bf16.msra.mxu0 %v2244
  %2261 = vmatprep.subr.bf16.mxu0 0
  %2262 = vmatpush1.bf16.msra.mxu0 %v2243
  %2263 = vmatprep.subr.bf16.mxu0 0
  %2264 = vmatpush2.bf16.msra.mxu0 0
  %2265 = vmatprep.subr.bf16.mxu0 0
  %2266 = vmatpush2.bf16.msra.mxu0 0
  %2267 = vmatprep.subr.bf16.mxu0 0
  %2268 = vmatpush2.bf16.msra.mxu0 0
  %2269 = vmatprep.subr.bf16.mxu0 0
  %2270 = vmatpush2.bf16.msra.mxu0 0
  %2271 = vmatprep.subr.bf16.mxu0 0
  %2272 = vmatpush2.bf16.msra.mxu0 0
  %2273 = vmatprep.subr.bf16.mxu0 0
  %2274 = vmatpush2.bf16.msra.mxu0 0
  %2275 = vmatprep.subr.bf16.mxu0 0
  %2276 = vmatpush2.bf16.msra.mxu0 0
  %2277 = vmatprep.subr.bf16.mxu0 0
  %2278 = vmatpush2.bf16.msra.mxu0 0
  %2279 = vmatprep.mubr.bf16.mxu0 0
  %2280 = vmatmul.mubr.bf16.gmra.mxu0 %v755
  %v2281 = vpop.f32.mrf.mxu0
  %v2282 = vadd.f32 %v2233, %v2281
  %v2283 = vpop.f32.mrf.mxu0
  %v2284 = vpop.f32.mrf.mxu0
  %v2285 = vpop.f32.mrf.mxu0
  %2286 = vdwg.mxu0
  %2288 = vrot.lane.b32.xlu0 %v2282, 8
  %v2289 = vpop.permute.xlu0 %2288
  %2291 = vrot.lane.b32.xlu0 %v2282, 16
  %v2292 = vpop.permute.xlu0 %2291
  %2294 = vrot.lane.b32.xlu0 %v2282, 24
  %v2295 = vpop.permute.xlu0 %2294
  %2297 = vrot.lane.b32.xlu0 %v2282, 32
  %v2298 = vpop.permute.xlu0 %2297
  %2300 = vrot.lane.b32.xlu0 %v2282, 40
  %v2301 = vpop.permute.xlu0 %2300
  %2303 = vrot.lane.b32.xlu0 %v2282, 48
  %v2304 = vpop.permute.xlu0 %2303
  %2306 = vrot.lane.b32.xlu0 %v2282, 56
  %v2307 = vpop.permute.xlu0 %2306
  %2309 = vrot.lane.b32.xlu0 %v2282, 64
  %v2310 = vpop.permute.xlu0 %2309
  %2312 = vrot.lane.b32.xlu0 %v2282, 72
  %v2313 = vpop.permute.xlu0 %2312
  %2315 = vrot.lane.b32.xlu0 %v2282, 80
  %v2316 = vpop.permute.xlu0 %2315
  %2318 = vrot.lane.b32.xlu0 %v2282, 88
  %v2319 = vpop.permute.xlu0 %2318
  %2321 = vrot.lane.b32.xlu0 %v2282, 96
  %v2322 = vpop.permute.xlu0 %2321
  %2324 = vrot.lane.b32.xlu0 %v2282, 104
  %v2325 = vpop.permute.xlu0 %2324
  %2327 = vrot.lane.b32.xlu0 %v2282, 112
  %v2328 = vpop.permute.xlu0 %2327
  %2330 = vrot.lane.b32.xlu0 %v2282, 120
  %v2331 = vpop.permute.xlu0 %2330
  %v2333 = vsel %vm241, %v2282, %v2289
  %v2334 = vsel %vm245, %v2333, %v2292
  %v2335 = vsel %vm249, %v2334, %v2295
  %v2336 = vsel %vm253, %v2335, %v2298
  %v2337 = vsel %vm257, %v2336, %v2301
  %v2338 = vsel %vm261, %v2337, %v2304
  %v2339 = vsel %vm265, %v2338, %v2307
  %v2340 = vsel %vm95, %v2339, %v2310
  %v2341 = vsel %vm851, %v2340, %v2313
  %v2342 = vsel %vm853, %v2341, %v2316
  %v2343 = vsel %vm855, %v2342, %v2319
  %v2344 = vsel %vm857, %v2343, %v2322
  %v2345 = vsel %vm859, %v2344, %v2325
  %v2346 = vsel %vm861, %v2345, %v2328
  %v2347 = vsel %vm863, %v2346, %v2331
  %v2350 = vunpack.c.l.s4 1966171168
  %v2351 = vunpack.c.0.s8 %v2350
  %v2352 = vlaneseq
  %v2353 = vshrl.u32 %v2352, 7
  %v2354 = vsub.s32 %v2351, %v2353
  %v2355 = vrot.slane %v2347, %v2354
  %v2356 = vcombine.high %v2355, %v2355
  %v2358 = vunpack.c.l.s4 1966171168
  %v2359 = vunpack.c.0.s8 %v2358
  %v2360 = vlaneseq
  %v2361 = vshrl.u32 %v2360, 7
  %v2362 = vsub.s32 %v2359, %v2361
  %v2363 = vrot.slane %v2355, %v2362
  %v2365 = vunpack.c.l.s4 1966171168
  %v2366 = vunpack.c.0.s8 %v2365
  %v2367 = vlaneseq
  %v2368 = vshrl.u32 %v2367, 7
  %v2369 = vsub.s32 %v2366, %v2368
  %v2370 = vrot.slane %v2356, %v2369
  %v2371 = vlaneseq
  %v2372 = vshrl.u32 %v2371, 7
  %v2373 = vsub.s32 0, %v2372
  %v2374 = vrot.slane %v2363, %v2373
  %v2375 = vlaneseq
  %v2376 = vshrl.u32 %v2375, 7
  %v2377 = vsub.s32 0, %v2376
  %v2378 = vrot.slane %v2370, %v2377
  %v2381 = vadd.f32 %v2220, %v2374
  %v2382 = vadd.f32 %v2221, %v2374
  %v2383 = vadd.f32 %v2222, %v2378
  %v2384 = vadd.f32 %v2223, %v2378
  %v2385 = vld [vmem:[%s20] sm:$0x1]
  %v2386 = vld [vmem:[%s21] sm:$0x1]
  %v2387 = vadd.f32 %v2381, %v2382
  %v2388 = vadd.f32 %v2387, %v2383
  %v2389 = vadd.f32 %v2388, %v2384
  %v2390 = vrot.slane %v2389, 4
  %v2391 = vadd.f32 %v2389, %v2390
  %v2392 = vrot.slane %v2391, 2
  %v2393 = vadd.f32 %v2391, %v2392
  %v2394 = vrot.slane %v2393, 1
  %v2395 = vadd.f32 %v2393, %v2394
  %v2396 = vmul.f32 %v2395, %v109
  %v2397 = vmul.f32 %v2381, %v2381
  %v2398 = vmul.f32 %v2382, %v2382
  %v2399 = vmul.f32 %v2383, %v2383
  %v2400 = vmul.f32 %v2384, %v2384
  %v2401 = vadd.f32 %v2397, %v2398
  %v2402 = vadd.f32 %v2401, %v2399
  %v2403 = vadd.f32 %v2402, %v2400
  %v2404 = vrot.slane %v2403, 4
  %v2405 = vadd.f32 %v2403, %v2404
  %v2406 = vrot.slane %v2405, 2
  %v2407 = vadd.f32 %v2405, %v2406
  %v2408 = vrot.slane %v2407, 1
  %v2409 = vadd.f32 %v2407, %v2408
  %v2410 = vmul.f32 %v2409, %v109
  %v2411 = vsel %vm129, %v2396, %v2410
  %2413 = vrot.lane.b32.xlu0 %v2411, 120
  %v2414 = vpop.permute.xlu0 %2413
  %v2416 = vadd.f32 %v2411, %v2414
  %2417 = vrot.lane.b32.xlu0 %v2411, 112
  %v2418 = vpop.permute.xlu0 %2417
  %v2420 = vadd.f32 %v2416, %v2418
  %2421 = vrot.lane.b32.xlu0 %v2411, 104
  %v2422 = vpop.permute.xlu0 %2421
  %v2424 = vadd.f32 %v2420, %v2422
  %2425 = vrot.lane.b32.xlu0 %v2411, 96
  %v2426 = vpop.permute.xlu0 %2425
  %v2428 = vadd.f32 %v2424, %v2426
  %2429 = vrot.lane.b32.xlu0 %v2411, 88
  %v2430 = vpop.permute.xlu0 %2429
  %v2432 = vadd.f32 %v2428, %v2430
  %2433 = vrot.lane.b32.xlu0 %v2411, 80
  %v2434 = vpop.permute.xlu0 %2433
  %v2436 = vadd.f32 %v2432, %v2434
  %2437 = vrot.lane.b32.xlu0 %v2411, 72
  %v2438 = vpop.permute.xlu0 %2437
  %v2440 = vadd.f32 %v2436, %v2438
  %2441 = vrot.lane.b32.xlu0 %v2411, 64
  %v2442 = vpop.permute.xlu0 %2441
  %v2444 = vadd.f32 %v2440, %v2442
  %2445 = vrot.lane.b32.xlu0 %v2411, 56
  %v2446 = vpop.permute.xlu0 %2445
  %v2448 = vadd.f32 %v2444, %v2446
  %2449 = vrot.lane.b32.xlu0 %v2411, 48
  %v2450 = vpop.permute.xlu0 %2449
  %v2452 = vadd.f32 %v2448, %v2450
  %2453 = vrot.lane.b32.xlu0 %v2411, 40
  %v2454 = vpop.permute.xlu0 %2453
  %v2456 = vadd.f32 %v2452, %v2454
  %2457 = vrot.lane.b32.xlu0 %v2411, 32
  %v2458 = vpop.permute.xlu0 %2457
  %v2460 = vadd.f32 %v2456, %v2458
  %2461 = vrot.lane.b32.xlu0 %v2411, 24
  %v2462 = vpop.permute.xlu0 %2461
  %v2464 = vadd.f32 %v2460, %v2462
  %2465 = vrot.lane.b32.xlu0 %v2411, 16
  %v2466 = vpop.permute.xlu0 %2465
  %v2468 = vadd.f32 %v2464, %v2466
  %2469 = vrot.lane.b32.xlu0 %v2411, 8
  %v2470 = vpop.permute.xlu0 %2469
  %v2472 = vadd.f32 %v2468, %v2470
  %v2473 = vmul.f32 %v2472, 0.0625
  %2475 = vrot.lane.b32.xlu0 %v2473, 8
  %v2476 = vpop.permute.xlu0 %2475
  %2478 = vrot.lane.b32.xlu0 %v2473, 16
  %v2479 = vpop.permute.xlu0 %2478
  %2481 = vrot.lane.b32.xlu0 %v2473, 24
  %v2482 = vpop.permute.xlu0 %2481
  %2484 = vrot.lane.b32.xlu0 %v2473, 32
  %v2485 = vpop.permute.xlu0 %2484
  %2487 = vrot.lane.b32.xlu0 %v2473, 40
  %v2488 = vpop.permute.xlu0 %2487
  %2490 = vrot.lane.b32.xlu0 %v2473, 48
  %v2491 = vpop.permute.xlu0 %2490
  %2493 = vrot.lane.b32.xlu0 %v2473, 56
  %v2494 = vpop.permute.xlu0 %2493
  %2496 = vrot.lane.b32.xlu0 %v2473, 64
  %v2497 = vpop.permute.xlu0 %2496
  %2499 = vrot.lane.b32.xlu0 %v2473, 72
  %v2500 = vpop.permute.xlu0 %2499
  %2502 = vrot.lane.b32.xlu0 %v2473, 80
  %v2503 = vpop.permute.xlu0 %2502
  %2505 = vrot.lane.b32.xlu0 %v2473, 88
  %v2506 = vpop.permute.xlu0 %2505
  %2508 = vrot.lane.b32.xlu0 %v2473, 96
  %v2509 = vpop.permute.xlu0 %2508
  %2511 = vrot.lane.b32.xlu0 %v2473, 104
  %v2512 = vpop.permute.xlu0 %2511
  %2514 = vrot.lane.b32.xlu0 %v2473, 112
  %v2515 = vpop.permute.xlu0 %2514
  %2517 = vrot.lane.b32.xlu0 %v2473, 120
  %v2518 = vpop.permute.xlu0 %2517
  %v2520 = vsel %vm241, %v2473, %v2476
  %v2521 = vsel %vm245, %v2520, %v2479
  %v2522 = vsel %vm249, %v2521, %v2482
  %v2523 = vsel %vm253, %v2522, %v2485
  %v2524 = vsel %vm257, %v2523, %v2488
  %v2525 = vsel %vm261, %v2524, %v2491
  %v2526 = vsel %vm265, %v2525, %v2494
  %v2527 = vsel %vm95, %v2526, %v2497
  %v2528 = vsel %vm851, %v2527, %v2500
  %v2529 = vsel %vm853, %v2528, %v2503
  %v2530 = vsel %vm855, %v2529, %v2506
  %v2531 = vsel %vm857, %v2530, %v2509
  %v2532 = vsel %vm859, %v2531, %v2512
  %v2533 = vsel %vm861, %v2532, %v2515
  %v2534 = vsel %vm863, %v2533, %v2518
  %v2535 = vmul.f32 %v2534, %v2534
  %v2537 = vrot.slane %v2535, 7
  %v2539 = vsub.f32 %v2534, %v2537
  %v2540 = vadd.f32 %v2539, 1e-05
  %v2541 = vrsqrt.pop %v2540
  %v2544 = vunpack.c.l.s4 1966171168
  %v2545 = vunpack.c.0.s8 %v2544
  %v2546 = vlaneseq
  %v2547 = vshrl.u32 %v2546, 7
  %v2548 = vsub.s32 %v2545, %v2547
  %v2549 = vrot.slane %v2541, %v2548
  %v2550 = vcombine.high %v2549, %v2549
  %v2552 = vunpack.c.l.s4 1966171168
  %v2553 = vunpack.c.0.s8 %v2552
  %v2554 = vlaneseq
  %v2555 = vshrl.u32 %v2554, 7
  %v2556 = vsub.s32 %v2553, %v2555
  %v2557 = vrot.slane %v2550, %v2556
  %v2559 = vmul.f32 %v2385, %v2557
  %v2560 = vmul.f32 %v2534, %v2559
  %v2561 = vsub.f32 %v2386, %v2560
  %v2563 = vlaneseq
  %v2564 = vshrl.u32 %v2563, 7
  %v2565 = vsub.s32 0, %v2564
  %v2566 = vrot.slane %v2559, %v2565
  %v2568 = vmul.f32 %v2381, %v2566
  %v2569 = vmul.f32 %v2382, %v2566
  %v2570 = vmul.f32 %v2383, %v2566
  %v2571 = vmul.f32 %v2384, %v2566
  %v2573 = vlaneseq
  %v2574 = vshrl.u32 %v2573, 7
  %v2575 = vsub.s32 0, %v2574
  %v2576 = vrot.slane %v2561, %v2575
  %v2578 = vadd.f32 %v2568, %v2576
  %v2579 = vadd.f32 %v2569, %v2576
  %v2580 = vadd.f32 %v2570, %v2576
  %v2581 = vadd.f32 %v2571, %v2576
  %v2582 = vxor.u32 %v2578, 2147483648
  %v2583 = vxor.u32 %v2579, 2147483648
  %v2584 = vxor.u32 %v2580, 2147483648
  %v2585 = vxor.u32 %v2581, 2147483648
  %v2586 = vmul.f32 %v2582, 1.442695
  %v2587 = vpow.pop %v2586
  %v2588 = vmul.f32 %v2583, 1.442695
  %v2589 = vpow.pop %v2588
  %v2590 = vmul.f32 %v2584, 1.442695
  %v2591 = vpow.pop %v2590
  %v2592 = vmul.f32 %v2585, 1.442695
  %v2593 = vpow.pop %v2592
  %v2594 = vadd.f32 %v2587, 1.0
  %v2595 = vadd.f32 %v2589, 1.0
  %v2596 = vadd.f32 %v2591, 1.0
  %v2597 = vadd.f32 %v2593, 1.0
  %v2598 = vrcp.pop %v2594
  %v2599 = vmul.f32 1.0, %v2598
  %v2600 = vrcp.pop %v2595
  %v2601 = vmul.f32 1.0, %v2600
  %v2602 = vrcp.pop %v2596
  %v2603 = vmul.f32 1.0, %v2602
  %v2604 = vrcp.pop %v2597
  %v2605 = vmul.f32 1.0, %v2604
  %v2606 = vmul.f32 %v2578, %v2599
  %v2607 = vmul.f32 %v2579, %v2601
  %v2608 = vmul.f32 %v2580, %v2603
  %v2609 = vmul.f32 %v2581, %v2605
  %v2610 = vrot.slane %v2606, 7
  %v2611 = vrot.slane %v2607, 7
  %v2612 = vrot.slane %v2608, 7
  %v2613 = vrot.slane %v2609, 7
  %v2614 = vsel %vm401, %v2612, %v2613
  %v2615 = vsel %vm401, %v2611, %v2612
  %v2616 = vsel %vm401, %v2610, %v2611
  %v2617 = vsel %vm401, %v2613, %v2610
  %v2618 = vmul.f32 %v2617, %v414
  %v2619 = vmul.f32 %v2616, %v415
  %v2620 = vmul.f32 %v2615, %v416
  %v2621 = vmul.f32 %v2614, %v417
  %v2622 = vrot.slane %v2606, 1
  %v2623 = vrot.slane %v2607, 1
  %v2624 = vrot.slane %v2608, 1
  %v2625 = vrot.slane %v2609, 1
  %v2626 = vsel %vm426, %v2624, %v2625
  %v2627 = vsel %vm426, %v2623, %v2624
  %v2628 = vsel %vm426, %v2622, %v2623
  %v2629 = vsel %vm426, %v2625, %v2622
  %v2630 = vmul.f32 %v2628, %v439
  %v2631 = vmul.f32 %v2627, %v440
  %v2632 = vmul.f32 %v2626, %v441
  %v2633 = vmul.f32 %v2629, %v442
  %v2634 = vpack.c.bf16 %v2619, %v2618
  %v2635 = vpack.c.bf16 %v2621, %v2620
  %v2636 = vld [vmem:[%s22] sm:$0xf]
  %v2637 = vld [vmem:[%s22 + $0x4] sm:$0xf]
  %v2638 = vld [vmem:[%s22 + $0x8] sm:$0xf]
  %v2639 = vld [vmem:[%s22 + $0xc] sm:$0xf]
  %v2640 = vld [vmem:[%s22 + $0x10] sm:$0xf]
  %v2641 = vld [vmem:[%s22 + $0x14] sm:$0xf]
  %v2642 = vld [vmem:[%s22 + $0x18] sm:$0xf]
  %v2643 = vld [vmem:[%s22 + $0x1c] sm:$0xf]
  %v2644 = vld [vmem:[%s22 + $0x20] sm:$0xf]
  %v2645 = vld [vmem:[%s22 + $0x24] sm:$0xf]
  %v2646 = vld [vmem:[%s22 + $0x28] sm:$0xf]
  %v2647 = vld [vmem:[%s22 + $0x2c] sm:$0xf]
  %v2648 = vld [vmem:[%s22 + $0x30] sm:$0xf]
  %v2649 = vld [vmem:[%s22 + $0x34] sm:$0xf]
  %v2650 = vld [vmem:[%s22 + $0x38] sm:$0xf]
  %v2651 = vld [vmem:[%s22 + $0x3c] sm:$0xf]
  %v2652 = vpack.c.bf16 %v2607, %v2606
  %v2653 = vpack.c.bf16 %v2609, %v2608
  %s2654 = scalar_lea.vmem %s22, 64
  %v2655 = vld [vmem:[%s2654] sm:$0xf]
  %v2656 = vld [vmem:[%s2654 + $0x4] sm:$0xf]
  %v2657 = vld [vmem:[%s2654 + $0x8] sm:$0xf]
  %v2658 = vld [vmem:[%s2654 + $0xc] sm:$0xf]
  %v2659 = vld [vmem:[%s2654 + $0x10] sm:$0xf]
  %v2660 = vld [vmem:[%s2654 + $0x14] sm:$0xf]
  %v2661 = vld [vmem:[%s2654 + $0x18] sm:$0xf]
  %v2662 = vld [vmem:[%s2654 + $0x1c] sm:$0xf]
  %v2663 = vld [vmem:[%s2654 + $0x20] sm:$0xf]
  %v2664 = vld [vmem:[%s2654 + $0x24] sm:$0xf]
  %v2665 = vld [vmem:[%s2654 + $0x28] sm:$0xf]
  %v2666 = vld [vmem:[%s2654 + $0x2c] sm:$0xf]
  %v2667 = vld [vmem:[%s2654 + $0x30] sm:$0xf]
  %v2668 = vld [vmem:[%s2654 + $0x34] sm:$0xf]
  %v2669 = vld [vmem:[%s2654 + $0x38] sm:$0xf]
  %v2670 = vld [vmem:[%s2654 + $0x3c] sm:$0xf]
  %v2687 = vunpack.c.l.b16 %v2655
  %v2688 = vunpack.c.l.b16 %v2656
  %v2689 = vunpack.c.l.b16 %v2657
  %v2690 = vunpack.c.l.b16 %v2658
  %v2691 = vunpack.c.l.b16 %v2659
  %v2692 = vunpack.c.l.b16 %v2660
  %v2693 = vunpack.c.l.b16 %v2661
  %v2694 = vunpack.c.l.b16 %v2662
  %v2695 = vunpack.c.l.b16 %v2663
  %v2696 = vunpack.c.l.b16 %v2664
  %v2697 = vunpack.c.l.b16 %v2665
  %v2698 = vunpack.c.l.b16 %v2666
  %v2699 = vunpack.c.l.b16 %v2667
  %v2700 = vunpack.c.l.b16 %v2668
  %v2701 = vunpack.c.l.b16 %v2669
  %v2702 = vunpack.c.l.b16 %v2670
  %v2703 = vpack.c.b16 %v2688, %v2687
  %v2704 = vpack.c.b16 %v2690, %v2689
  %v2705 = vpack.c.b16 %v2692, %v2691
  %v2706 = vpack.c.b16 %v2694, %v2693
  %v2707 = vpack.c.b16 %v2696, %v2695
  %v2708 = vpack.c.b16 %v2698, %v2697
  %v2709 = vpack.c.b16 %v2700, %v2699
  %v2710 = vpack.c.b16 %v2702, %v2701
  %2719 = vmatprep.subr.bf16.mxu0 0
  %2720 = vmatpush1.bf16.msra.mxu0 %v2710
  %2721 = vmatprep.subr.bf16.mxu0 0
  %2722 = vmatpush1.bf16.msra.mxu0 %v2709
  %2723 = vmatprep.subr.bf16.mxu0 0
  %2724 = vmatpush1.bf16.msra.mxu0 %v2708
  %2725 = vmatprep.subr.bf16.mxu0 0
  %2726 = vmatpush1.bf16.msra.mxu0 %v2707
  %2727 = vmatprep.subr.bf16.mxu0 0
  %2728 = vmatpush1.bf16.msra.mxu0 %v2706
  %2729 = vmatprep.subr.bf16.mxu0 0
  %2730 = vmatpush1.bf16.msra.mxu0 %v2705
  %2731 = vmatprep.subr.bf16.mxu0 0
  %2732 = vmatpush1.bf16.msra.mxu0 %v2704
  %2733 = vmatprep.subr.bf16.mxu0 0
  %2734 = vmatpush1.bf16.msra.mxu0 %v2703
  %2735 = vmatprep.subr.bf16.mxu0 0
  %2736 = vmatpush2.bf16.msra.mxu0 0
  %2737 = vmatprep.subr.bf16.mxu0 0
  %2738 = vmatpush2.bf16.msra.mxu0 0
  %2739 = vmatprep.subr.bf16.mxu0 0
  %2740 = vmatpush2.bf16.msra.mxu0 0
  %2741 = vmatprep.subr.bf16.mxu0 0
  %2742 = vmatpush2.bf16.msra.mxu0 0
  %2743 = vmatprep.subr.bf16.mxu0 0
  %2744 = vmatpush2.bf16.msra.mxu0 0
  %2745 = vmatprep.subr.bf16.mxu0 0
  %2746 = vmatpush2.bf16.msra.mxu0 0
  %2747 = vmatprep.subr.bf16.mxu0 0
  %2748 = vmatpush2.bf16.msra.mxu0 0
  %2749 = vmatprep.subr.bf16.mxu0 0
  %2750 = vmatpush2.bf16.msra.mxu0 0
  %2751 = vmatprep.mubr.bf16.mxu0 0
  %2752 = vmatmul.mubr.bf16.gmra.mxu0 %v2652
  %v2753 = vpop.f32.mrf.mxu0
  %v2754 = vadd.f32 0.0, %v2753
  %v2755 = vpop.f32.mrf.mxu0
  %v2756 = vpop.f32.mrf.mxu0
  %v2757 = vadd.f32 0.0, %v2756
  %v2758 = vpop.f32.mrf.mxu0
  %2759 = vmatprep.mubr.bf16.mxu0 0
  %2760 = vmatmul.mubr.bf16.gmra.mxu0 %v2653
  %v2761 = vpop.f32.mrf.mxu0
  %v2762 = vadd.f32 0.0, %v2761
  %v2763 = vpop.f32.mrf.mxu0
  %v2764 = vpop.f32.mrf.mxu0
  %v2765 = vadd.f32 0.0, %v2764
  %v2766 = vpop.f32.mrf.mxu0
  %2767 = vdwg.mxu0
  %v2784 = vunpack.c.l.b16 %v2636
  %v2785 = vunpack.c.l.b16 %v2637
  %v2786 = vunpack.c.l.b16 %v2638
  %v2787 = vunpack.c.l.b16 %v2639
  %v2788 = vunpack.c.l.b16 %v2640
  %v2789 = vunpack.c.l.b16 %v2641
  %v2790 = vunpack.c.l.b16 %v2642
  %v2791 = vunpack.c.l.b16 %v2643
  %v2792 = vunpack.c.l.b16 %v2644
  %v2793 = vunpack.c.l.b16 %v2645
  %v2794 = vunpack.c.l.b16 %v2646
  %v2795 = vunpack.c.l.b16 %v2647
  %v2796 = vunpack.c.l.b16 %v2648
  %v2797 = vunpack.c.l.b16 %v2649
  %v2798 = vunpack.c.l.b16 %v2650
  %v2799 = vunpack.c.l.b16 %v2651
  %v2800 = vpack.c.b16 %v2785, %v2784
  %v2801 = vpack.c.b16 %v2787, %v2786
  %v2802 = vpack.c.b16 %v2789, %v2788
  %v2803 = vpack.c.b16 %v2791, %v2790
  %v2804 = vpack.c.b16 %v2793, %v2792
  %v2805 = vpack.c.b16 %v2795, %v2794
  %v2806 = vpack.c.b16 %v2797, %v2796
  %v2807 = vpack.c.b16 %v2799, %v2798
  %2816 = vmatprep.subr.bf16.mxu0 0
  %2817 = vmatpush1.bf16.msra.mxu0 %v2807
  %2818 = vmatprep.subr.bf16.mxu0 0
  %2819 = vmatpush1.bf16.msra.mxu0 %v2806
  %2820 = vmatprep.subr.bf16.mxu0 0
  %2821 = vmatpush1.bf16.msra.mxu0 %v2805
  %2822 = vmatprep.subr.bf16.mxu0 0
  %2823 = vmatpush1.bf16.msra.mxu0 %v2804
  %2824 = vmatprep.subr.bf16.mxu0 0
  %2825 = vmatpush1.bf16.msra.mxu0 %v2803
  %2826 = vmatprep.subr.bf16.mxu0 0
  %2827 = vmatpush1.bf16.msra.mxu0 %v2802
  %2828 = vmatprep.subr.bf16.mxu0 0
  %2829 = vmatpush1.bf16.msra.mxu0 %v2801
  %2830 = vmatprep.subr.bf16.mxu0 0
  %2831 = vmatpush1.bf16.msra.mxu0 %v2800
  %2832 = vmatprep.subr.bf16.mxu0 0
  %2833 = vmatpush2.bf16.msra.mxu0 0
  %2834 = vmatprep.subr.bf16.mxu0 0
  %2835 = vmatpush2.bf16.msra.mxu0 0
  %2836 = vmatprep.subr.bf16.mxu0 0
  %2837 = vmatpush2.bf16.msra.mxu0 0
  %2838 = vmatprep.subr.bf16.mxu0 0
  %2839 = vmatpush2.bf16.msra.mxu0 0
  %2840 = vmatprep.subr.bf16.mxu0 0
  %2841 = vmatpush2.bf16.msra.mxu0 0
  %2842 = vmatprep.subr.bf16.mxu0 0
  %2843 = vmatpush2.bf16.msra.mxu0 0
  %2844 = vmatprep.subr.bf16.mxu0 0
  %2845 = vmatpush2.bf16.msra.mxu0 0
  %2846 = vmatprep.subr.bf16.mxu0 0
  %2847 = vmatpush2.bf16.msra.mxu0 0
  %2848 = vmatprep.mubr.bf16.mxu0 0
  %2849 = vmatmul.mubr.bf16.gmra.mxu0 %v2634
  %v2850 = vpop.f32.mrf.mxu0
  %v2851 = vadd.f32 %v2754, %v2850
  %v2852 = vpop.f32.mrf.mxu0
  %v2853 = vpop.f32.mrf.mxu0
  %v2854 = vadd.f32 %v2757, %v2853
  %v2855 = vpop.f32.mrf.mxu0
  %2856 = vmatprep.mubr.bf16.mxu0 0
  %2857 = vmatmul.mubr.bf16.gmra.mxu0 %v2635
  %v2858 = vpop.f32.mrf.mxu0
  %v2859 = vadd.f32 %v2762, %v2858
  %v2860 = vpop.f32.mrf.mxu0
  %v2861 = vpop.f32.mrf.mxu0
  %v2862 = vadd.f32 %v2765, %v2861
  %v2863 = vpop.f32.mrf.mxu0
  %2864 = vdwg.mxu0
  %v2865 = vpack.c.bf16 %v2631, %v2630
  %v2866 = vpack.c.bf16 %v2633, %v2632
  %s2867 = scalar_lea.vmem %s22, 128
  %v2868 = vld [vmem:[%s2867] sm:$0xf]
  %v2869 = vld [vmem:[%s2867 + $0x4] sm:$0xf]
  %v2870 = vld [vmem:[%s2867 + $0x8] sm:$0xf]
  %v2871 = vld [vmem:[%s2867 + $0xc] sm:$0xf]
  %v2872 = vld [vmem:[%s2867 + $0x10] sm:$0xf]
  %v2873 = vld [vmem:[%s2867 + $0x14] sm:$0xf]
  %v2874 = vld [vmem:[%s2867 + $0x18] sm:$0xf]
  %v2875 = vld [vmem:[%s2867 + $0x1c] sm:$0xf]
  %v2876 = vld [vmem:[%s2867 + $0x20] sm:$0xf]
  %v2877 = vld [vmem:[%s2867 + $0x24] sm:$0xf]
  %v2878 = vld [vmem:[%s2867 + $0x28] sm:$0xf]
  %v2879 = vld [vmem:[%s2867 + $0x2c] sm:$0xf]
  %v2880 = vld [vmem:[%s2867 + $0x30] sm:$0xf]
  %v2881 = vld [vmem:[%s2867 + $0x34] sm:$0xf]
  %v2882 = vld [vmem:[%s2867 + $0x38] sm:$0xf]
  %v2883 = vld [vmem:[%s2867 + $0x3c] sm:$0xf]
  %v2900 = vunpack.c.l.b16 %v2868
  %v2901 = vunpack.c.l.b16 %v2869
  %v2902 = vunpack.c.l.b16 %v2870
  %v2903 = vunpack.c.l.b16 %v2871
  %v2904 = vunpack.c.l.b16 %v2872
  %v2905 = vunpack.c.l.b16 %v2873
  %v2906 = vunpack.c.l.b16 %v2874
  %v2907 = vunpack.c.l.b16 %v2875
  %v2908 = vunpack.c.l.b16 %v2876
  %v2909 = vunpack.c.l.b16 %v2877
  %v2910 = vunpack.c.l.b16 %v2878
  %v2911 = vunpack.c.l.b16 %v2879
  %v2912 = vunpack.c.l.b16 %v2880
  %v2913 = vunpack.c.l.b16 %v2881
  %v2914 = vunpack.c.l.b16 %v2882
  %v2915 = vunpack.c.l.b16 %v2883
  %v2916 = vpack.c.b16 %v2901, %v2900
  %v2917 = vpack.c.b16 %v2903, %v2902
  %v2918 = vpack.c.b16 %v2905, %v2904
  %v2919 = vpack.c.b16 %v2907, %v2906
  %v2920 = vpack.c.b16 %v2909, %v2908
  %v2921 = vpack.c.b16 %v2911, %v2910
  %v2922 = vpack.c.b16 %v2913, %v2912
  %v2923 = vpack.c.b16 %v2915, %v2914
  %2932 = vmatprep.subr.bf16.mxu0 0
  %2933 = vmatpush1.bf16.msra.mxu0 %v2923
  %2934 = vmatprep.subr.bf16.mxu0 0
  %2935 = vmatpush1.bf16.msra.mxu0 %v2922
  %2936 = vmatprep.subr.bf16.mxu0 0
  %2937 = vmatpush1.bf16.msra.mxu0 %v2921
  %2938 = vmatprep.subr.bf16.mxu0 0
  %2939 = vmatpush1.bf16.msra.mxu0 %v2920
  %2940 = vmatprep.subr.bf16.mxu0 0
  %2941 = vmatpush1.bf16.msra.mxu0 %v2919
  %2942 = vmatprep.subr.bf16.mxu0 0
  %2943 = vmatpush1.bf16.msra.mxu0 %v2918
  %2944 = vmatprep.subr.bf16.mxu0 0
  %2945 = vmatpush1.bf16.msra.mxu0 %v2917
  %2946 = vmatprep.subr.bf16.mxu0 0
  %2947 = vmatpush1.bf16.msra.mxu0 %v2916
  %2948 = vmatprep.subr.bf16.mxu0 0
  %2949 = vmatpush2.bf16.msra.mxu0 0
  %2950 = vmatprep.subr.bf16.mxu0 0
  %2951 = vmatpush2.bf16.msra.mxu0 0
  %2952 = vmatprep.subr.bf16.mxu0 0
  %2953 = vmatpush2.bf16.msra.mxu0 0
  %2954 = vmatprep.subr.bf16.mxu0 0
  %2955 = vmatpush2.bf16.msra.mxu0 0
  %2956 = vmatprep.subr.bf16.mxu0 0
  %2957 = vmatpush2.bf16.msra.mxu0 0
  %2958 = vmatprep.subr.bf16.mxu0 0
  %2959 = vmatpush2.bf16.msra.mxu0 0
  %2960 = vmatprep.subr.bf16.mxu0 0
  %2961 = vmatpush2.bf16.msra.mxu0 0
  %2962 = vmatprep.subr.bf16.mxu0 0
  %2963 = vmatpush2.bf16.msra.mxu0 0
  %2964 = vmatprep.mubr.bf16.mxu0 0
  %2965 = vmatmul.mubr.bf16.gmra.mxu0 %v2865
  %v2966 = vpop.f32.mrf.mxu0
  %v2967 = vadd.f32 0.0, %v2966
  %v2968 = vpop.f32.mrf.mxu0
  %v2969 = vpop.f32.mrf.mxu0
  %v2970 = vadd.f32 0.0, %v2969
  %v2971 = vpop.f32.mrf.mxu0
  %2972 = vmatprep.mubr.bf16.mxu0 0
  %2973 = vmatmul.mubr.bf16.gmra.mxu0 %v2866
  %v2974 = vpop.f32.mrf.mxu0
  %v2975 = vadd.f32 0.0, %v2974
  %v2976 = vpop.f32.mrf.mxu0
  %v2977 = vpop.f32.mrf.mxu0
  %v2978 = vadd.f32 0.0, %v2977
  %v2979 = vpop.f32.mrf.mxu0
  %2980 = vdwg.mxu0
  %v2981 = vadd.f32 %v2851, %v2967
  %v2982 = vadd.f32 %v2854, %v2970
  %v2983 = vadd.f32 %v2859, %v2975
  %v2984 = vadd.f32 %v2862, %v2978
  %v2985 = vld [vmem:[%s23] sm:$0x1]
  %v2987 = vlaneseq
  %v2988 = vshrl.u32 %v2987, 7
  %v2989 = vsub.s32 0, %v2988
  %v2990 = vrot.slane %v2985, %v2989
  %v2992 = vadd.f32 %v2981, %v2990
  %v2993 = vadd.f32 %v2982, %v2990
  %v2994 = vadd.f32 %v2983, %v2990
  %v2995 = vadd.f32 %v2984, %v2990
  %v2996 = vadd.f32 %v2992, %v1609
  %v2997 = vadd.f32 %v2993, %v1610
  %v2998 = vadd.f32 %v2994, %v1611
  %v2999 = vadd.f32 %v2995, %v1612
  %3000 = vst [vmem:[%s24] sm:$0xff] %v2996
  %3001 = vst [vmem:[%s24 + $0x8] sm:$0xff] %v2997
  %3002 = vst [vmem:[%s24 + $0x10] sm:$0xff] %v2998
  %3003 = vst [vmem:[%s24 + $0x18] sm:$0xff] %v2999
  %3004 = vrot.lane.b32.xlu0 %v2996, 120
  %v3005 = vpop.permute.xlu0 %3004
  %3006 = vrot.lane.b32.xlu0 %v2997, 120
  %v3007 = vpop.permute.xlu0 %3006
  %3008 = vrot.lane.b32.xlu0 %v2998, 120
  %v3009 = vpop.permute.xlu0 %3008
  %3010 = vrot.lane.b32.xlu0 %v2999, 120
  %v3011 = vpop.permute.xlu0 %3010
  %v3012 = vmax.f32 %v2996, %v3005
  %v3013 = vmax.f32 %v2997, %v3007
  %v3014 = vmax.f32 %v2998, %v3009
  %v3015 = vmax.f32 %v2999, %v3011
  %v3020 = vcombine.high %v3012, %v3012
  %v3022 = vunpack.c.l.s4 1983009808
  %v3023 = vunpack.c.0.s8 %v3022
  %v3024 = vlaneseq
  %v3025 = vshrl.u32 %v3024, 7
  %v3026 = vsub.s32 %v3023, %v3025
  %v3027 = vrot.slane %v3012, %v3026
  %v3029 = vunpack.c.l.s4 1983009808
  %v3030 = vunpack.c.0.s8 %v3029
  %v3031 = vlaneseq
  %v3032 = vshrl.u32 %v3031, 7
  %v3033 = vsub.s32 %v3030, %v3032
  %v3034 = vrot.slane %v3020, %v3033
  %v3035 = vcombine.high %v3027, %v3027
  %v3036 = vcombine.high %v3034, %v3034
  %v3037 = vcombine.high %v3013, %v3013
  %v3039 = vunpack.c.l.s4 1983009808
  %v3040 = vunpack.c.0.s8 %v3039
  %v3041 = vlaneseq
  %v3042 = vshrl.u32 %v3041, 7
  %v3043 = vsub.s32 %v3040, %v3042
  %v3044 = vrot.slane %v3013, %v3043
  %v3046 = vunpack.c.l.s4 1983009808
  %v3047 = vunpack.c.0.s8 %v3046
  %v3048 = vlaneseq
  %v3049 = vshrl.u32 %v3048, 7
  %v3050 = vsub.s32 %v3047, %v3049
  %v3051 = vrot.slane %v3037, %v3050
  %v3052 = vcombine.high %v3044, %v3044
  %v3053 = vcombine.high %v3051, %v3051
  %v3054 = vcombine.high %v3014, %v3014
  %v3056 = vunpack.c.l.s4 1983009808
  %v3057 = vunpack.c.0.s8 %v3056
  %v3058 = vlaneseq
  %v3059 = vshrl.u32 %v3058, 7
  %v3060 = vsub.s32 %v3057, %v3059
  %v3061 = vrot.slane %v3014, %v3060
  %v3063 = vunpack.c.l.s4 1983009808
  %v3064 = vunpack.c.0.s8 %v3063
  %v3065 = vlaneseq
  %v3066 = vshrl.u32 %v3065, 7
  %v3067 = vsub.s32 %v3064, %v3066
  %v3068 = vrot.slane %v3054, %v3067
  %v3069 = vcombine.high %v3061, %v3061
  %v3070 = vcombine.high %v3068, %v3068
  %v3071 = vcombine.high %v3015, %v3015
  %v3073 = vunpack.c.l.s4 1983009808
  %v3074 = vunpack.c.0.s8 %v3073
  %v3075 = vlaneseq
  %v3076 = vshrl.u32 %v3075, 7
  %v3077 = vsub.s32 %v3074, %v3076
  %v3078 = vrot.slane %v3015, %v3077
  %v3080 = vunpack.c.l.s4 1983009808
  %v3081 = vunpack.c.0.s8 %v3080
  %v3082 = vlaneseq
  %v3083 = vshrl.u32 %v3082, 7
  %v3084 = vsub.s32 %v3081, %v3083
  %v3085 = vrot.slane %v3071, %v3084
  %v3086 = vcombine.high %v3078, %v3078
  %v3087 = vcombine.high %v3085, %v3085
  %vm3104 = vcmask 1041408
  %v3105 = vsel %vm3104, %v3027, -inf
  %v3106 = vrot.slane %v3105, 4
  %v3107 = vmax.f32 %v3105, %v3106
  %v3108 = vrot.slane %v3107, 2
  %v3109 = vmax.f32 %v3107, %v3108
  %v3110 = vrot.slane %v3109, 1
  %v3111 = vmax.f32 %v3109, %v3110
  %v3112 = vsel %vm3104, %v3035, -inf
  %v3113 = vrot.slane %v3112, 4
  %v3114 = vmax.f32 %v3112, %v3113
  %v3115 = vrot.slane %v3114, 2
  %v3116 = vmax.f32 %v3114, %v3115
  %v3117 = vrot.slane %v3116, 1
  %v3118 = vmax.f32 %v3116, %v3117
  %v3119 = vsel %vm3104, %v3034, -inf
  %v3120 = vrot.slane %v3119, 4
  %v3121 = vmax.f32 %v3119, %v3120
  %v3122 = vrot.slane %v3121, 2
  %v3123 = vmax.f32 %v3121, %v3122
  %v3124 = vrot.slane %v3123, 1
  %v3125 = vmax.f32 %v3123, %v3124
  %v3126 = vsel %vm3104, %v3036, -inf
  %v3127 = vrot.slane %v3126, 4
  %v3128 = vmax.f32 %v3126, %v3127
  %v3129 = vrot.slane %v3128, 2
  %v3130 = vmax.f32 %v3128, %v3129
  %v3131 = vrot.slane %v3130, 1
  %v3132 = vmax.f32 %v3130, %v3131
  %v3133 = vsel %vm3104, %v3044, -inf
  %v3134 = vrot.slane %v3133, 4
  %v3135 = vmax.f32 %v3133, %v3134
  %v3136 = vrot.slane %v3135, 2
  %v3137 = vmax.f32 %v3135, %v3136
  %v3138 = vrot.slane %v3137, 1
  %v3139 = vmax.f32 %v3137, %v3138
  %v3140 = vsel %vm3104, %v3052, -inf
  %v3141 = vrot.slane %v3140, 4
  %v3142 = vmax.f32 %v3140, %v3141
  %v3143 = vrot.slane %v3142, 2
  %v3144 = vmax.f32 %v3142, %v3143
  %v3145 = vrot.slane %v3144, 1
  %v3146 = vmax.f32 %v3144, %v3145
  %v3147 = vsel %vm3104, %v3051, -inf
  %v3148 = vrot.slane %v3147, 4
  %v3149 = vmax.f32 %v3147, %v3148
  %v3150 = vrot.slane %v3149, 2
  %v3151 = vmax.f32 %v3149, %v3150
  %v3152 = vrot.slane %v3151, 1
  %v3153 = vmax.f32 %v3151, %v3152
  %v3154 = vsel %vm3104, %v3053, -inf
  %v3155 = vrot.slane %v3154, 4
  %v3156 = vmax.f32 %v3154, %v3155
  %v3157 = vrot.slane %v3156, 2
  %v3158 = vmax.f32 %v3156, %v3157
  %v3159 = vrot.slane %v3158, 1
  %v3160 = vmax.f32 %v3158, %v3159
  %v3161 = vsel %vm3104, %v3061, -inf
  %v3162 = vrot.slane %v3161, 4
  %v3163 = vmax.f32 %v3161, %v3162
  %v3164 = vrot.slane %v3163, 2
  %v3165 = vmax.f32 %v3163, %v3164
  %v3166 = vrot.slane %v3165, 1
  %v3167 = vmax.f32 %v3165, %v3166
  %v3168 = vsel %vm3104, %v3069, -inf
  %v3169 = vrot.slane %v3168, 4
  %v3170 = vmax.f32 %v3168, %v3169
  %v3171 = vrot.slane %v3170, 2
  %v3172 = vmax.f32 %v3170, %v3171
  %v3173 = vrot.slane %v3172, 1
  %v3174 = vmax.f32 %v3172, %v3173
  %v3175 = vsel %vm3104, %v3068, -inf
  %v3176 = vrot.slane %v3175, 4
  %v3177 = vmax.f32 %v3175, %v3176
  %v3178 = vrot.slane %v3177, 2
  %v3179 = vmax.f32 %v3177, %v3178
  %v3180 = vrot.slane %v3179, 1
  %v3181 = vmax.f32 %v3179, %v3180
  %v3182 = vsel %vm3104, %v3070, -inf
  %v3183 = vrot.slane %v3182, 4
  %v3184 = vmax.f32 %v3182, %v3183
  %v3185 = vrot.slane %v3184, 2
  %v3186 = vmax.f32 %v3184, %v3185
  %v3187 = vrot.slane %v3186, 1
  %v3188 = vmax.f32 %v3186, %v3187
  %v3189 = vsel %vm3104, %v3078, -inf
  %v3190 = vrot.slane %v3189, 4
  %v3191 = vmax.f32 %v3189, %v3190
  %v3192 = vrot.slane %v3191, 2
  %v3193 = vmax.f32 %v3191, %v3192
  %v3194 = vrot.slane %v3193, 1
  %v3195 = vmax.f32 %v3193, %v3194
  %v3196 = vsel %vm3104, %v3086, -inf
  %v3197 = vrot.slane %v3196, 4
  %v3198 = vmax.f32 %v3196, %v3197
  %v3199 = vrot.slane %v3198, 2
  %v3200 = vmax.f32 %v3198, %v3199
  %v3201 = vrot.slane %v3200, 1
  %v3202 = vmax.f32 %v3200, %v3201
  %v3203 = vsel %vm3104, %v3085, -inf
  %v3204 = vrot.slane %v3203, 4
  %v3205 = vmax.f32 %v3203, %v3204
  %v3206 = vrot.slane %v3205, 2
  %v3207 = vmax.f32 %v3205, %v3206
  %v3208 = vrot.slane %v3207, 1
  %v3209 = vmax.f32 %v3207, %v3208
  %v3210 = vsel %vm3104, %v3087, -inf
  %v3211 = vrot.slane %v3210, 4
  %v3212 = vmax.f32 %v3210, %v3211
  %v3213 = vrot.slane %v3212, 2
  %v3214 = vmax.f32 %v3212, %v3213
  %v3215 = vrot.slane %v3214, 1
  %v3216 = vmax.f32 %v3214, %v3215
  %vm3233 = vcmask 1041409
  %v3234 = vsel %vm3233, %v3118, %v3111
  %vm3235 = vcmask 1042434
  %v3236 = vsel %vm3235, %v3125, %v3234
  %vm3237 = vcmask 1043459
  %v3238 = vsel %vm3237, %v3132, %v3236
  %vm3239 = vcmask 1044484
  %v3240 = vsel %vm3239, %v3139, %v3238
  %vm3241 = vcmask 1045509
  %v3242 = vsel %vm3241, %v3146, %v3240
  %vm3243 = vcmask 1046534
  %v3244 = vsel %vm3243, %v3153, %v3242
  %vm3245 = vcmask 1047559
  %v3246 = vsel %vm3245, %v3160, %v3244
  %v3247 = vsel %vm3233, %v3174, %v3167
  %v3248 = vsel %vm3235, %v3181, %v3247
  %v3249 = vsel %vm3237, %v3188, %v3248
  %v3250 = vsel %vm3239, %v3195, %v3249
  %v3251 = vsel %vm3241, %v3202, %v3250
  %v3252 = vsel %vm3243, %v3209, %v3251
  %v3253 = vsel %vm3245, %v3216, %v3252
  %3256 = vrot.lane.b32.xlu0 %v3246, 120
  %v3257 = vpop.permute.xlu0 %3256
  %3258 = vrot.lane.b32.xlu0 %v3253, 120
  %v3259 = vpop.permute.xlu0 %3258
  %3262 = vrot.lane.b32.xlu0 %v3246, 112
  %v3263 = vpop.permute.xlu0 %3262
  %3264 = vrot.lane.b32.xlu0 %v3253, 112
  %v3265 = vpop.permute.xlu0 %3264
  %3268 = vrot.lane.b32.xlu0 %v3246, 104
  %v3269 = vpop.permute.xlu0 %3268
  %3270 = vrot.lane.b32.xlu0 %v3253, 104
  %v3271 = vpop.permute.xlu0 %3270
  %3274 = vrot.lane.b32.xlu0 %v3246, 96
  %v3275 = vpop.permute.xlu0 %3274
  %3276 = vrot.lane.b32.xlu0 %v3253, 96
  %v3277 = vpop.permute.xlu0 %3276
  %3280 = vrot.lane.b32.xlu0 %v3246, 88
  %v3281 = vpop.permute.xlu0 %3280
  %3282 = vrot.lane.b32.xlu0 %v3253, 88
  %v3283 = vpop.permute.xlu0 %3282
  %3286 = vrot.lane.b32.xlu0 %v3246, 80
  %v3287 = vpop.permute.xlu0 %3286
  %3288 = vrot.lane.b32.xlu0 %v3253, 80
  %v3289 = vpop.permute.xlu0 %3288
  %3292 = vrot.lane.b32.xlu0 %v3246, 72
  %v3293 = vpop.permute.xlu0 %3292
  %3294 = vrot.lane.b32.xlu0 %v3253, 72
  %v3295 = vpop.permute.xlu0 %3294
  %v3298 = vsel %vm241, %v3246, %v3257
  %v3299 = vsel %vm241, %v3253, %v3259
  %v3300 = vsel %vm245, %v3298, %v3263
  %v3301 = vsel %vm245, %v3299, %v3265
  %v3302 = vsel %vm249, %v3300, %v3269
  %v3303 = vsel %vm249, %v3301, %v3271
  %v3304 = vsel %vm253, %v3302, %v3275
  %v3305 = vsel %vm253, %v3303, %v3277
  %v3306 = vsel %vm257, %v3304, %v3281
  %v3307 = vsel %vm257, %v3305, %v3283
  %v3308 = vsel %vm261, %v3306, %v3287
  %v3309 = vsel %vm261, %v3307, %v3289
  %v3310 = vsel %vm265, %v3308, %v3293
  %v3311 = vsel %vm265, %v3309, %v3295
  %3312 = vst.msk [vmem:[%s25] sm:$0xff] %vm95, %v3310
  %3313 = vst.msk [vmem:[%s25 + $0x8] sm:$0xff] %vm95, %v3311
  // Predicated region
  $region98: #{downblock_forward.1} parent=0 // pred_check
    _
  $region99: #{downblock_forward.1} parent=0 // pred_check_branch
    %3315 = sbr.rel (0) target = $region101
  $region100: #{downblock_forward.1} parent=0 // pred_region
    _
  $region101: #{downblock_forward.1} parent=0 // pred_fallthru
    _
  // Predicated region
  $region102: #{downblock_forward.1} parent=0 // pred_check
    _
  $region103: #{downblock_forward.1} parent=0 // pred_check_branch
    %3317 = sbr.rel (0) target = $region105
  $region104: #{downblock_forward.1} parent=0 // pred_region
    _
  $region105: #{downblock_forward.1} parent=0 // pred_fallthru
    _
  // Predicated region
  $region106: #{downblock_forward.1} parent=0 // pred_check
    _
  $region107: #{downblock_forward.1} parent=0 // pred_check_branch
    %3319 = sbr.rel (0) target = $region109
  $region108: #{downblock_forward.1} parent=0 // pred_region
    _
  $region109: #{downblock_forward.1} parent=0 // pred_fallthru
    _
  // Predicated region
  $region110: #{downblock_forward.1} parent=0 // pred_check
    _
  $region111: #{downblock_forward.1} parent=0 // pred_check_branch
    %3321 = sbr.rel (0) target = $region113
  $region112: #{downblock_forward.1} parent=0 // pred_region
    _
  $region113: #{downblock_forward.1} parent=0 // pred_fallthru
    _

</llo_original>
